<compile_context>
chip_gen: v5e
topology: v5e:2x2
jax: 0.10.0
libtpu: 0.0.40
codegen_flags: <defaults>
</compile_context>

<pallas_src>
import functools

import jax
import jax.numpy as jnp
from jax import lax
from jax.experimental import pallas as pl
from jax.experimental.pallas import tpu as pltpu

F32 = jnp.float32
BF16 = jnp.bfloat16


# --------------------------------------------------------------------------
# Small helpers
# --------------------------------------------------------------------------
@functools.lru_cache(maxsize=None)
def _vmem_limit_bytes():
    """Scoped-VMEM request per generation: ~96 MiB on v5e/v6e (128 MiB physical),
    ~48 MiB on v7x (64 MiB physical).  Conservative fallback if the query fails."""
    try:
        cap = int(pltpu.get_tpu_info().vmem_capacity_bytes)
    except Exception:
        cap = 0
    if cap <= 0:
        cap = 64 * 1024 * 1024
    return max(32 * 1024 * 1024, min(cap * 3 // 4, 100 * 1024 * 1024))


def _fold_bn(bn, eps):
    gamma, beta, mean, var = bn
    scale = gamma / jnp.sqrt(var + eps)
    return scale, beta - mean * scale


def _same_pad_amounts(size, k, s):
    out = -(-size // s)
    pad = max((out - 1) * s + k - size, 0)
    return pad // 2, pad - pad // 2


def _sigmoid(v):
    # sigmoid(x) = 0.5*(1 + tanh(x/2)): one EUP op + cheap VALU instead of exp+divide;
    # the two full-tensor swishes otherwise load the single EUP slot.
    return 0.5 * (jnp.tanh(0.5 * v) + 1.0)


# --------------------------------------------------------------------------
# Kernel 1: expand(1x1)+BN0+swish + depthwise KxK+BN1+swish + SE pool + SE gate
# --------------------------------------------------------------------------
def _make_front_kernel(*, has_expand, has_se, h, w, cin, c, ksize, stride,
                       pad_t, pad_b, pad_l, pad_l_alloc, pad_r, out_h, out_w):
    inv_hw = 1.0 / float(out_h * out_w)
    hp = pad_t + h + pad_b
    wp = pad_l_alloc + w + pad_r
    col0 = pad_l_alloc - pad_l          # first column of the logical padded image

    def kernel(*refs):
        i = 0
        x_ref = refs[i]; i += 1
        if has_expand:
            ew_ref, b0_ref = refs[i], refs[i + 1]; i += 2
        dw_ref, b1_ref = refs[i], refs[i + 1]; i += 2
        if has_se:
            sw1_ref, sb1_ref, sw2_ref, sb2_ref = refs[i:i + 4]; i += 4
        y_ref = refs[i]; i += 1
        if has_se:
            gate_ref = refs[i]; i += 1
        pad_ref = refs[i]

        # ---- expand 1x1 conv + BN0 + swish (bf16 MXU operands, f32 accumulation) ----
        if has_expand:
            e = jnp.dot(x_ref[...].astype(BF16), ew_ref[...],
                        preferred_element_type=F32) + b0_ref[...]
            e = e * _sigmoid(e)
            e3 = e.reshape(h, w, c)
        else:
            e3 = x_ref[...]

        # ---- TF-SAME padding into VMEM scratch: zero only the halo border, then do a
        #      sublane-aligned interior store (pad_l_alloc is a multiple of 8). ----
        if pad_t > 0:
            pad_ref[0:pad_t, :, :] = jnp.zeros((pad_t, wp, c), F32)
        if pad_b > 0:
            pad_ref[pad_t + h:hp, :, :] = jnp.zeros((pad_b, wp, c), F32)
        if pad_l_alloc > 0:
            pad_ref[:, 0:pad_l_alloc, :] = jnp.zeros((hp, pad_l_alloc, c), F32)
        if pad_r > 0:
            pad_ref[:, pad_l_alloc + w:wp, :] = jnp.zeros((hp, pad_r, c), F32)
        pad_ref[pad_t:pad_t + h, pad_l_alloc:pad_l_alloc + w, :] = e3

        # ---- depthwise KxK conv + BN1 + swish (f32 VPU math on every generation) ----
        xp = pad_ref[...]
        dw = dw_ref[...]                               # (k, k, c); BN1 scale pre-folded
        acc = jnp.zeros((out_h, out_w, c), F32)
        for ki in range(ksize):
            for kj in range(ksize):
                patch = lax.slice(
                    xp,
                    (ki, col0 + kj, 0),
                    (ki + (out_h - 1) * stride + 1,
                     col0 + kj + (out_w - 1) * stride + 1, c),
                    None if stride == 1 else (stride, stride, 1))
                acc = acc + patch * dw[ki, kj, :]
        yv = acc + b1_ref[...]                         # folded BN1 bias
        yv = yv * _sigmoid(yv)                         # swish
        y_ref[...] = yv.astype(y_ref.dtype)            # bf16 handoff -> half HBM traffic

        # ---- SE: adaptive_avg_pool2d(.,1) + reduce/expand 1x1 convs + sigmoid gate ----
        if has_se:
            pooled = (jnp.sum(jnp.sum(yv, axis=0), axis=0) * inv_hw).reshape(1, c)
            s = jnp.dot(pooled, sw1_ref[...], preferred_element_type=F32) + sb1_ref[...]
            s = s * _sigmoid(s)                        # swish
            s = jnp.dot(s, sw2_ref[...], preferred_element_type=F32) + sb2_ref[...]
            gate_ref[...] = _sigmoid(s)                # (1, c) per-image channel gate

    return kernel


def front_block(x_nhwc, expand_w_bf16, b0, dw_scaled, b1, se_params, *, ksize, stride):
    n, h, w, cin = x_nhwc.shape
    c = dw_scaled.shape[-1]
    has_expand = expand_w_bf16 is not None
    has_se = se_params is not None

    pad_t, pad_b = _same_pad_amounts(h, ksize, stride)
    pad_l, pad_r = _same_pad_amounts(w, ksize, stride)
    out_h, out_w = -(-h // stride), -(-w // stride)
    # Over-allocate the left pad to a multiple of 8 sublanes so the interior store into
    # the padded scratch is aligned/unmasked.
    pad_l_alloc = ((pad_l + 7) // 8) * 8 if pad_l > 0 else 0
    hp = pad_t + h + pad_b
    wp = pad_l_alloc + w + pad_r

    kern = _make_front_kernel(
        has_expand=has_expand, has_se=has_se, h=h, w=w, cin=cin, c=c,
        ksize=ksize, stride=stride, pad_t=pad_t, pad_b=pad_b, pad_l=pad_l,
        pad_l_alloc=pad_l_alloc, pad_r=pad_r, out_h=out_h, out_w=out_w)

    in_specs, args = [], []
    if has_expand:
        # 2D (rows, channels) view of the input for the expand matmul.
        in_specs.append(pl.BlockSpec((None, h * w, cin), lambda i: (i, 0, 0)))
        args.append(x_nhwc.reshape(n, h * w, cin))
        in_specs += [pl.BlockSpec((cin, c), lambda i: (0, 0)),
                     pl.BlockSpec((1, c), lambda i: (0, 0))]
        args += [expand_w_bf16, b0.reshape(1, c)]
    else:
        in_specs.append(pl.BlockSpec((None, h, w, c), lambda i: (i, 0, 0, 0)))
        args.append(x_nhwc)
    in_specs += [pl.BlockSpec((ksize, ksize, c), lambda i: (0, 0, 0)),
                 pl.BlockSpec((1, c), lambda i: (0, 0))]
    args += [dw_scaled, b1.reshape(1, c)]
    if has_se:
        w1, b1se, w2, b2se = se_params
        nsq = w1.shape[1]
        in_specs += [pl.BlockSpec((c, nsq), lambda i: (0, 0)),
                     pl.BlockSpec((1, nsq), lambda i: (0, 0)),
                     pl.BlockSpec((nsq, c), lambda i: (0, 0)),
                     pl.BlockSpec((1, c), lambda i: (0, 0))]
        args += [w1, b1se.reshape(1, nsq), w2, b2se.reshape(1, c)]

    y_spec = pl.BlockSpec((None, out_h, out_w, c), lambda i: (i, 0, 0, 0))
    y_sds = jax.ShapeDtypeStruct((n, out_h, out_w, c), BF16)
    if has_se:
        out_specs = [y_spec, pl.BlockSpec((None, 1, c), lambda i: (i, 0, 0))]
        out_shape = (y_sds, jax.ShapeDtypeStruct((n, 1, c), F32))
    else:
        out_specs, out_shape = y_spec, y_sds

    outs = pl.pallas_call(
        kern,
        grid=(n,),
        in_specs=in_specs,
        out_specs=out_specs,
        out_shape=out_shape,
        scratch_shapes=[pltpu.VMEM((hp, wp, c), F32)],
        compiler_params=pltpu.CompilerParams(
            dimension_semantics=("parallel",),
            vmem_limit_bytes=_vmem_limit_bytes()),
    )(*args)

    if has_se:
        y, gate = outs
        return y, gate
    return outs, None


# --------------------------------------------------------------------------
# Kernel 2: SE gate multiply + project 1x1 conv + BN2 (+ optional identity skip)
# --------------------------------------------------------------------------
def _make_proj_kernel(*, has_se, use_skip):
    def kernel(*refs):
        i = 0
        x_ref = refs[i]; i += 1                       # (tm, c) bf16 handoff
        if has_se:
            gate_ref = refs[i]; i += 1                # (1, c)  f32 per-image gate
        w_ref, b_ref = refs[i], refs[i + 1]; i += 2   # (c, cout) bf16 / (1, cout) f32
        if use_skip:
            res_ref = refs[i]; i += 1                 # (tm, cout) f32 residual
        o_ref = refs[i]

        xv = x_ref[...]
        if has_se:
            xv = xv * gate_ref[...].astype(xv.dtype)  # per-channel SE gate
        y = jnp.dot(xv, w_ref[...], preferred_element_type=F32) + b_ref[...]
        if use_skip:
            y = y + res_ref[...]
        o_ref[...] = y
    return kernel


def project_block(x3, gate, proj_w_bf16, bias2, res3, *, tm):
    # NOTE: when m % tm != 0 the last row tile relies on Pallas OOB-block semantics:
    # padded rows hold unspecified data but every op here is row-local (the matmul only
    # contracts over channels) and OOB rows are masked on the write, so results for the
    # valid rows are unaffected.  Do not add a reduction over rows without revisiting.
    n, m, c = x3.shape
    cout = proj_w_bf16.shape[1]
    has_se = gate is not None
    use_skip = res3 is not None
    kern = _make_proj_kernel(has_se=has_se, use_skip=use_skip)

    in_specs = [pl.BlockSpec((None, tm, c), lambda i, j: (i, j, 0))]
    args = [x3]
    if has_se:
        in_specs.append(pl.BlockSpec((None, 1, c), lambda i, j: (i, 0, 0)))
        args.append(gate)
    in_specs += [pl.BlockSpec((c, cout), lambda i, j: (0, 0)),
                 pl.BlockSpec((1, cout), lambda i, j: (0, 0))]
    args += [proj_w_bf16, bias2.reshape(1, cout)]
    if use_skip:
        in_specs.append(pl.BlockSpec((None, tm, cout), lambda i, j: (i, j, 0)))
        args.append(res3)

    return pl.pallas_call(
        kern,
        grid=(n, pl.cdiv(m, tm)),
        in_specs=in_specs,
        out_specs=pl.BlockSpec((None, tm, cout), lambda i, j: (i, j, 0)),
        out_shape=jax.ShapeDtypeStruct((n, m, cout), F32),
        compiler_params=pltpu.CompilerParams(
            dimension_semantics=("parallel", "parallel"),
            vmem_limit_bytes=_vmem_limit_bytes()),
    )(*args)


# --------------------------------------------------------------------------
# Full block wrapper (NCHW in/out, matching the PyTorch module)
# --------------------------------------------------------------------------
def mbconv_forward(x_nchw, p, *, kernel_size, stride, expand_ratio, has_se,
                   id_skip, bn_eps):
    x = jnp.transpose(x_nchw, (0, 2, 3, 1)).astype(F32)    # NCHW -> NHWC
    n, h, w, cin = x.shape

    # Fold eval-mode BN into conv weights (scale) + bias; 1x1 weights pre-cast to bf16
    # so the MXU runs with bf16 operands (f32 accumulation in-kernel).
    if expand_ratio != 1:
        s0, b0 = _fold_bn(p["bn0"], bn_eps)
        ew = (p["expand_w"] * s0[None, :]).astype(BF16)
    else:
        ew, b0 = None, None
    s1, b1 = _fold_bn(p["bn1"], bn_eps)
    dw = p["dw_w"] * s1[None, None, :]                      # depthwise stays f32 (VPU)
    s2, b2 = _fold_bn(p["bn2"], bn_eps)
    pw = (p["proj_w"] * s2[None, :]).astype(BF16)
    cout = pw.shape[1]

    se_params = ((p["se_reduce_w"], p["se_reduce_b"],
                  p["se_expand_w"], p["se_expand_b"]) if has_se else None)

    # Fused expand + depthwise + BN + swish; bf16 handoff + per-image SE gate outputs.
    y, gate = front_block(x, ew, b0, dw, b1, se_params, ksize=kernel_size, stride=stride)
    _, out_h, out_w, c = y.shape
    m = out_h * out_w
    tm = m if m <= 2048 else 2048       # large row tile (multiple of 8 or full extent)
    x3 = y.reshape(n, m, c)             # contiguous reshape of the bf16 handoff (free)

    use_skip = id_skip and stride == 1 and cin == cout
    res3 = x.reshape(n, h * w, cin) if use_skip else None

    out3 = project_block(x3, gate, pw, b2, res3, tm=tm)
    out = out3.reshape(n, out_h, out_w, cout)
    return jnp.transpose(out, (0, 3, 1, 2))                 # NHWC -> NCHW


# --------------------------------------------------------------------------
# Deterministic parameter init (shapes match the PyTorch module's __init__)
# --------------------------------------------------------------------------
def init_params(key, in_channels, out_channels, kernel_size, expand_ratio, se_ratio):
    oup = in_channels * expand_ratio
    nsq = max(1, int(in_channels * se_ratio))
    ks = jax.random.split(key, 10)

    def bn_params(k, ch):
        k1, k2, k3, k4 = jax.random.split(k, 4)
        return (1.0 + 0.1 * jax.random.normal(k1, (ch,), F32),   # gamma
                0.1 * jax.random.normal(k2, (ch,), F32),          # beta
                0.1 * jax.random.normal(k3, (ch,), F32),          # running_mean
                0.5 + jax.random.uniform(k4, (ch,), F32))         # running_var

    p = {}
    if expand_ratio != 1:
        p["expand_w"] = 0.3 * jax.random.normal(ks[0], (in_channels, oup), F32)
        p["bn0"] = bn_params(ks[1], oup)
    p["dw_w"] = 0.3 * jax.random.normal(ks[2], (kernel_size, kernel_size, oup), F32)
    p["bn1"] = bn_params(ks[3], oup)
    p["se_reduce_w"] = 0.3 * jax.random.normal(ks[4], (oup, nsq), F32)
    p["se_reduce_b"] = 0.1 * jax.random.normal(ks[5], (nsq,), F32)
    p["se_expand_w"] = 0.3 * jax.random.normal(ks[6], (nsq, oup), F32)
    p["se_expand_b"] = 0.1 * jax.random.normal(ks[7], (oup,), F32)
    p["proj_w"] = 0.3 * jax.random.normal(ks[8], (oup, out_channels), F32)
    p["bn2"] = bn_params(ks[9], out_channels)
    return p


# --------------------------------------------------------------------------
# Pure-JAX f32 reference (unfolded BN, exact sigmoid).  The kernel uses bf16 for the
# handoff and the 1x1 MXU operands, so the tolerance below is loosened accordingly.
# --------------------------------------------------------------------------
def _ref_forward(x_nchw, p, *, kernel_size, stride, expand_ratio, has_se,
                 id_skip, bn_eps):
    hp = jax.lax.Precision.HIGHEST

    def swish(v):
        return v * jax.nn.sigmoid(v)

    def bn(v, b):
        g, be, m, var = b
        return (v - m) / jnp.sqrt(var + bn_eps) * g + be

    x = jnp.transpose(x_nchw, (0, 2, 3, 1)).astype(F32)
    inp = x
    n, h, w, cin = x.shape
    if expand_ratio != 1:
        x = swish(bn(jnp.einsum("nhwc,cd->nhwd", x, p["expand_w"], precision=hp), p["bn0"]))
    k = kernel_size
    pt, pb = _same_pad_amounts(h, k, stride)
    pleft, pright = _same_pad_amounts(w, k, stride)
    xp = jnp.pad(x, ((0, 0), (pt, pb), (pleft, pright), (0, 0)))
    oh, ow = -(-h // stride), -(-w // stride)
    acc = jnp.zeros((n, oh, ow, x.shape[-1]), F32)
    for ki in range(k):
        for kj in range(k):
            patch = jax.lax.slice(
                xp, (0, ki, kj, 0),
                (n, ki + (oh - 1) * stride + 1, kj + (ow - 1) * stride + 1, xp.shape[-1]),
                (1, stride, stride, 1))
            acc = acc + patch * p["dw_w"][ki, kj, :]
    x = swish(bn(acc, p["bn1"]))
    if has_se:
        s = jnp.mean(x, axis=(1, 2))
        s = swish(jnp.einsum("nc,cd->nd", s, p["se_reduce_w"], precision=hp) + p["se_reduce_b"])
        s = jnp.einsum("nc,cd->nd", s, p["se_expand_w"], precision=hp) + p["se_expand_b"]
        x = x * jax.nn.sigmoid(s)[:, None, None, :]
    y = bn(jnp.einsum("nhwc,cd->nhwd", x, p["proj_w"], precision=hp), p["bn2"])
    if id_skip and stride == 1 and cin == p["proj_w"].shape[1]:
        y = y + inp
    return jnp.transpose(y, (0, 3, 1, 2))


if __name__ == "__main__":
    key = jax.random.PRNGKey(0)
    kx, kp = jax.random.split(key)

    in_channels, out_channels = 4, 4
    kernel_size, stride = 3, 1
    expand_ratio, se_ratio = 4, 0.25
    id_skip, bn_eps = True, 1e-3

    x = jax.random.normal(kx, (2, in_channels, 16, 16), F32)
    params = init_params(kp, in_channels, out_channels, kernel_size, expand_ratio, se_ratio)

    cfg = dict(kernel_size=kernel_size, stride=stride, expand_ratio=expand_ratio,
               has_se=(se_ratio is not None and 0 < se_ratio <= 1),
               id_skip=id_skip, bn_eps=bn_eps)

    out = jax.block_until_ready(mbconv_forward(x, params, **cfg))
    ref = _ref_forward(x, params, **cfg)

    assert out.shape == (2, out_channels, 16, 16), out.shape
    max_err = float(jnp.max(jnp.abs(out - ref)))
    # Loosened vs. a pure-f32 reference because the kernel uses a bf16 handoff and bf16
    # MXU operands; structural bugs would show up as errors orders of magnitude larger.
    assert jnp.allclose(out, ref, rtol=5e-2, atol=5e-2), max_err

    print("KERNEL_OK")
</pallas_src>

<mosaic_0001>
module attributes {stable_mosaic.version = 11 : i64} {
  func.func @kernel(%arg0: i32, %arg1: memref<1x256x4xf32, #tpu.memory_space<vmem>>, %arg2: memref<4x16xbf16, #tpu.memory_space<vmem>>, %arg3: memref<1x16xf32, #tpu.memory_space<vmem>>, %arg4: memref<3x3x16xf32, #tpu.memory_space<vmem>>, %arg5: memref<1x16xf32, #tpu.memory_space<vmem>>, %arg6: memref<16x1xf32, #tpu.memory_space<vmem>>, %arg7: memref<1x1xf32, #tpu.memory_space<vmem>>, %arg8: memref<1x16xf32, #tpu.memory_space<vmem>>, %arg9: memref<1x16xf32, #tpu.memory_space<vmem>>, %arg10: memref<1x16x16x16xbf16, #tpu.memory_space<vmem>>, %arg11: memref<1x1x16xf32, #tpu.memory_space<vmem>>, %arg12: memref<18x25x16xf32, #tpu.memory_space<vmem>>) attributes {dimension_semantics = [#tpu.dimension_semantics<parallel>], iteration_bounds = array<i64: 2>, scalar_prefetch = 0 : i64, scratch_operands = 1 : i64, tpu.core_type = #tpu.core_type<tc>, window_params = [{transform_indices = @transform_0, window_bounds = array<i64: 1, 256, 4>}, {pipeline_mode = #tpu.pipeline_mode<synchronous>, transform_indices = @transform_1, window_bounds = array<i64: 4, 16>}, {pipeline_mode = #tpu.pipeline_mode<synchronous>, transform_indices = @transform_2, window_bounds = array<i64: 1, 16>}, {pipeline_mode = #tpu.pipeline_mode<synchronous>, transform_indices = @transform_3, window_bounds = array<i64: 3, 3, 16>}, {pipeline_mode = #tpu.pipeline_mode<synchronous>, transform_indices = @transform_4, window_bounds = array<i64: 1, 16>}, {pipeline_mode = #tpu.pipeline_mode<synchronous>, transform_indices = @transform_5, window_bounds = array<i64: 16, 1>}, {pipeline_mode = #tpu.pipeline_mode<synchronous>, transform_indices = @transform_6, window_bounds = array<i64: 1, 1>}, {pipeline_mode = #tpu.pipeline_mode<synchronous>, transform_indices = @transform_7, window_bounds = array<i64: 1, 16>}, {pipeline_mode = #tpu.pipeline_mode<synchronous>, transform_indices = @transform_8, window_bounds = array<i64: 1, 16>}, {transform_indices = @transform_9, window_bounds = array<i64: 1, 16, 16, 16>}, {transform_indices = @transform_10, window_bounds = array<i64: 1, 1, 16>}]} {
    %c0 = arith.constant 0 : index
    %c0_0 = arith.constant 0 : index
    %c0_1 = arith.constant 0 : index
    %0 = vector.load %arg1[%c0, %c0_0, %c0_1] : memref<1x256x4xf32, #tpu.memory_space<vmem>>, vector<1x256x4xf32>
    %1 = vector.shape_cast %0 : vector<1x256x4xf32> to vector<256x4xf32>
    %2 = arith.truncf %1 : vector<256x4xf32> to vector<256x4xbf16>
    %c0_2 = arith.constant 0 : index
    %c0_3 = arith.constant 0 : index
    %3 = vector.load %arg2[%c0_2, %c0_3] : memref<4x16xbf16, #tpu.memory_space<vmem>>, vector<4x16xbf16>
    %cst = arith.constant dense<0.000000e+00> : vector<256x16xf32>
    %4 = tpu.matmul %2, %3, %cst {dimension_numbers = #tpu.dot_dimension_numbers<[1], [0], [0], [1], [0, 0, 1, 1], [], []>} : vector<256x4xbf16>, vector<4x16xbf16>, vector<256x16xf32> -> vector<256x16xf32>
    %c0_4 = arith.constant 0 : index
    %c0_5 = arith.constant 0 : index
    %5 = vector.load %arg3[%c0_4, %c0_5] : memref<1x16xf32, #tpu.memory_space<vmem>>, vector<1x16xf32>
    %6 = vector.broadcast %5 : vector<1x16xf32> to vector<256x16xf32>
    %7 = arith.addf %4, %6 : vector<256x16xf32>
    %cst_6 = arith.constant 5.000000e-01 : f32
    %8 = vector.broadcast %cst_6 : f32 to vector<256x16xf32>
    %9 = arith.mulf %8, %7 : vector<256x16xf32>
    %10 = math.tanh %9 : vector<256x16xf32>
    %cst_7 = arith.constant 1.000000e+00 : f32
    %11 = vector.broadcast %cst_7 : f32 to vector<256x16xf32>
    %12 = arith.addf %10, %11 : vector<256x16xf32>
    %cst_8 = arith.constant 5.000000e-01 : f32
    %13 = vector.broadcast %cst_8 : f32 to vector<256x16xf32>
    %14 = arith.mulf %13, %12 : vector<256x16xf32>
    %15 = arith.mulf %7, %14 : vector<256x16xf32>
    %16 = vector.shape_cast %15 : vector<256x16xf32> to vector<16x16x16xf32>
    %cst_9 = arith.constant 0.000000e+00 : f32
    %17 = vector.broadcast %cst_9 : f32 to vector<1x25x16xf32>
    %c0_10 = arith.constant 0 : index
    %c0_11 = arith.constant 0 : index
    %c0_12 = arith.constant 0 : index
    %18 = vector.load %arg12[%c0_10, %c0_11, %c0_12] : memref<18x25x16xf32, #tpu.memory_space<vmem>>, vector<1x25x16xf32>
    tpu.vector_store %arg12[%c0_10, %c0_11, %c0_12], %17 {strides = array<i32>} : memref<18x25x16xf32, #tpu.memory_space<vmem>>, vector<1x25x16xf32>,
    %cst_13 = arith.constant 0.000000e+00 : f32
    %19 = vector.broadcast %cst_13 : f32 to vector<1x25x16xf32>
    %c17 = arith.constant 17 : index
    %c0_14 = arith.constant 0 : index
    %c0_15 = arith.constant 0 : index
    %20 = vector.load %arg12[%c17, %c0_14, %c0_15] : memref<18x25x16xf32, #tpu.memory_space<vmem>>, vector<1x25x16xf32>
    tpu.vector_store %arg12[%c17, %c0_14, %c0_15], %19 {strides = array<i32>} : memref<18x25x16xf32, #tpu.memory_space<vmem>>, vector<1x25x16xf32>,
    %cst_16 = arith.constant 0.000000e+00 : f32
    %21 = vector.broadcast %cst_16 : f32 to vector<18x8x16xf32>
    %c0_17 = arith.constant 0 : index
    %c0_18 = arith.constant 0 : index
    %c0_19 = arith.constant 0 : index
    %22 = vector.load %arg12[%c0_17, %c0_18, %c0_19] : memref<18x25x16xf32, #tpu.memory_space<vmem>>, vector<18x8x16xf32>
    tpu.vector_store %arg12[%c0_17, %c0_18, %c0_19], %21 {strides = array<i32>} : memref<18x25x16xf32, #tpu.memory_space<vmem>>, vector<18x8x16xf32>,
    %cst_20 = arith.constant 0.000000e+00 : f32
    %23 = vector.broadcast %cst_20 : f32 to vector<18x1x16xf32>
    %c0_21 = arith.constant 0 : index
    %c24 = arith.constant 24 : index
    %c0_22 = arith.constant 0 : index
    %24 = vector.load %arg12[%c0_21, %c24, %c0_22] : memref<18x25x16xf32, #tpu.memory_space<vmem>>, vector<18x1x16xf32>
    tpu.vector_store %arg12[%c0_21, %c24, %c0_22], %23 {strides = array<i32>} : memref<18x25x16xf32, #tpu.memory_space<vmem>>, vector<18x1x16xf32>,
    %c1 = arith.constant 1 : index
    %c8 = arith.constant 8 : index
    %c0_23 = arith.constant 0 : index
    %25 = vector.load %arg12[%c1, %c8, %c0_23] : memref<18x25x16xf32, #tpu.memory_space<vmem>>, vector<16x16x16xf32>
    tpu.vector_store %arg12[%c1, %c8, %c0_23], %16 {strides = array<i32>} : memref<18x25x16xf32, #tpu.memory_space<vmem>>, vector<16x16x16xf32>,
    %c0_24 = arith.constant 0 : index
    %c0_25 = arith.constant 0 : index
    %c0_26 = arith.constant 0 : index
    %26 = vector.load %arg12[%c0_24, %c0_25, %c0_26] : memref<18x25x16xf32, #tpu.memory_space<vmem>>, vector<18x25x16xf32>
    %c0_27 = arith.constant 0 : index
    %c0_28 = arith.constant 0 : index
    %c0_29 = arith.constant 0 : index
    %27 = vector.load %arg4[%c0_27, %c0_28, %c0_29] : memref<3x3x16xf32, #tpu.memory_space<vmem>>, vector<3x3x16xf32>
    %cst_30 = arith.constant 0.000000e+00 : f32
    %28 = vector.broadcast %cst_30 : f32 to vector<16x16x16xf32>
    %29 = vector.extract_strided_slice %26 {offsets = [0, 7, 0], sizes = [16, 16, 16], strides = [1, 1, 1]} : vector<18x25x16xf32> to vector<16x16x16xf32>
    %30 = vector.extract_strided_slice %27 {offsets = [0, 0, 0], sizes = [1, 1, 16], strides = [1, 1, 1]} : vector<3x3x16xf32> to vector<1x1x16xf32>
    %31 = vector.shape_cast %30 : vector<1x1x16xf32> to vector<16xf32>
    %32 = vector.shape_cast %31 : vector<16xf32> to vector<1x1x16xf32>
    %33 = vector.broadcast %32 : vector<1x1x16xf32> to vector<16x16x16xf32>
    %34 = arith.mulf %29, %33 : vector<16x16x16xf32>
    %35 = arith.addf %28, %34 : vector<16x16x16xf32>
    %36 = vector.extract_strided_slice %26 {offsets = [0, 8, 0], sizes = [16, 16, 16], strides = [1, 1, 1]} : vector<18x25x16xf32> to vector<16x16x16xf32>
    %37 = vector.extract_strided_slice %27 {offsets = [0, 1, 0], sizes = [1, 1, 16], strides = [1, 1, 1]} : vector<3x3x16xf32> to vector<1x1x16xf32>
    %38 = vector.shape_cast %37 : vector<1x1x16xf32> to vector<16xf32>
    %39 = vector.shape_cast %38 : vector<16xf32> to vector<1x1x16xf32>
    %40 = vector.broadcast %39 : vector<1x1x16xf32> to vector<16x16x16xf32>
    %41 = arith.mulf %36, %40 : vector<16x16x16xf32>
    %42 = arith.addf %35, %41 : vector<16x16x16xf32>
    %43 = vector.extract_strided_slice %26 {offsets = [0, 9, 0], sizes = [16, 16, 16], strides = [1, 1, 1]} : vector<18x25x16xf32> to vector<16x16x16xf32>
    %44 = vector.extract_strided_slice %27 {offsets = [0, 2, 0], sizes = [1, 1, 16], strides = [1, 1, 1]} : vector<3x3x16xf32> to vector<1x1x16xf32>
    %45 = vector.shape_cast %44 : vector<1x1x16xf32> to vector<16xf32>
    %46 = vector.shape_cast %45 : vector<16xf32> to vector<1x1x16xf32>
    %47 = vector.broadcast %46 : vector<1x1x16xf32> to vector<16x16x16xf32>
    %48 = arith.mulf %43, %47 : vector<16x16x16xf32>
    %49 = arith.addf %42, %48 : vector<16x16x16xf32>
    %50 = vector.extract_strided_slice %26 {offsets = [1, 7, 0], sizes = [16, 16, 16], strides = [1, 1, 1]} : vector<18x25x16xf32> to vector<16x16x16xf32>
    %51 = vector.extract_strided_slice %27 {offsets = [1, 0, 0], sizes = [1, 1, 16], strides = [1, 1, 1]} : vector<3x3x16xf32> to vector<1x1x16xf32>
    %52 = vector.shape_cast %51 : vector<1x1x16xf32> to vector<16xf32>
    %53 = vector.shape_cast %52 : vector<16xf32> to vector<1x1x16xf32>
    %54 = vector.broadcast %53 : vector<1x1x16xf32> to vector<16x16x16xf32>
    %55 = arith.mulf %50, %54 : vector<16x16x16xf32>
    %56 = arith.addf %49, %55 : vector<16x16x16xf32>
    %57 = vector.extract_strided_slice %26 {offsets = [1, 8, 0], sizes = [16, 16, 16], strides = [1, 1, 1]} : vector<18x25x16xf32> to vector<16x16x16xf32>
    %58 = vector.extract_strided_slice %27 {offsets = [1, 1, 0], sizes = [1, 1, 16], strides = [1, 1, 1]} : vector<3x3x16xf32> to vector<1x1x16xf32>
    %59 = vector.shape_cast %58 : vector<1x1x16xf32> to vector<16xf32>
    %60 = vector.shape_cast %59 : vector<16xf32> to vector<1x1x16xf32>
    %61 = vector.broadcast %60 : vector<1x1x16xf32> to vector<16x16x16xf32>
    %62 = arith.mulf %57, %61 : vector<16x16x16xf32>
    %63 = arith.addf %56, %62 : vector<16x16x16xf32>
    %64 = vector.extract_strided_slice %26 {offsets = [1, 9, 0], sizes = [16, 16, 16], strides = [1, 1, 1]} : vector<18x25x16xf32> to vector<16x16x16xf32>
    %65 = vector.extract_strided_slice %27 {offsets = [1, 2, 0], sizes = [1, 1, 16], strides = [1, 1, 1]} : vector<3x3x16xf32> to vector<1x1x16xf32>
    %66 = vector.shape_cast %65 : vector<1x1x16xf32> to vector<16xf32>
    %67 = vector.shape_cast %66 : vector<16xf32> to vector<1x1x16xf32>
    %68 = vector.broadcast %67 : vector<1x1x16xf32> to vector<16x16x16xf32>
    %69 = arith.mulf %64, %68 : vector<16x16x16xf32>
    %70 = arith.addf %63, %69 : vector<16x16x16xf32>
    %71 = vector.extract_strided_slice %26 {offsets = [2, 7, 0], sizes = [16, 16, 16], strides = [1, 1, 1]} : vector<18x25x16xf32> to vector<16x16x16xf32>
    %72 = vector.extract_strided_slice %27 {offsets = [2, 0, 0], sizes = [1, 1, 16], strides = [1, 1, 1]} : vector<3x3x16xf32> to vector<1x1x16xf32>
    %73 = vector.shape_cast %72 : vector<1x1x16xf32> to vector<16xf32>
    %74 = vector.shape_cast %73 : vector<16xf32> to vector<1x1x16xf32>
    %75 = vector.broadcast %74 : vector<1x1x16xf32> to vector<16x16x16xf32>
    %76 = arith.mulf %71, %75 : vector<16x16x16xf32>
    %77 = arith.addf %70, %76 : vector<16x16x16xf32>
    %78 = vector.extract_strided_slice %26 {offsets = [2, 8, 0], sizes = [16, 16, 16], strides = [1, 1, 1]} : vector<18x25x16xf32> to vector<16x16x16xf32>
    %79 = vector.extract_strided_slice %27 {offsets = [2, 1, 0], sizes = [1, 1, 16], strides = [1, 1, 1]} : vector<3x3x16xf32> to vector<1x1x16xf32>
    %80 = vector.shape_cast %79 : vector<1x1x16xf32> to vector<16xf32>
    %81 = vector.shape_cast %80 : vector<16xf32> to vector<1x1x16xf32>
    %82 = vector.broadcast %81 : vector<1x1x16xf32> to vector<16x16x16xf32>
    %83 = arith.mulf %78, %82 : vector<16x16x16xf32>
    %84 = arith.addf %77, %83 : vector<16x16x16xf32>
    %85 = vector.extract_strided_slice %26 {offsets = [2, 9, 0], sizes = [16, 16, 16], strides = [1, 1, 1]} : vector<18x25x16xf32> to vector<16x16x16xf32>
    %86 = vector.extract_strided_slice %27 {offsets = [2, 2, 0], sizes = [1, 1, 16], strides = [1, 1, 1]} : vector<3x3x16xf32> to vector<1x1x16xf32>
    %87 = vector.shape_cast %86 : vector<1x1x16xf32> to vector<16xf32>
    %88 = vector.shape_cast %87 : vector<16xf32> to vector<1x1x16xf32>
    %89 = vector.broadcast %88 : vector<1x1x16xf32> to vector<16x16x16xf32>
    %90 = arith.mulf %85, %89 : vector<16x16x16xf32>
    %91 = arith.addf %84, %90 : vector<16x16x16xf32>
    %c0_31 = arith.constant 0 : index
    %c0_32 = arith.constant 0 : index
    %92 = vector.load %arg5[%c0_31, %c0_32] : memref<1x16xf32, #tpu.memory_space<vmem>>, vector<1x16xf32>
    %93 = vector.shape_cast %92 : vector<1x16xf32> to vector<1x1x16xf32>
    %94 = vector.broadcast %93 : vector<1x1x16xf32> to vector<16x16x16xf32>
    %95 = arith.addf %91, %94 : vector<16x16x16xf32>
    %cst_33 = arith.constant 5.000000e-01 : f32
    %96 = vector.broadcast %cst_33 : f32 to vector<16x16x16xf32>
    %97 = arith.mulf %96, %95 : vector<16x16x16xf32>
    %98 = math.tanh %97 : vector<16x16x16xf32>
    %cst_34 = arith.constant 1.000000e+00 : f32
    %99 = vector.broadcast %cst_34 : f32 to vector<16x16x16xf32>
    %100 = arith.addf %98, %99 : vector<16x16x16xf32>
    %cst_35 = arith.constant 5.000000e-01 : f32
    %101 = vector.broadcast %cst_35 : f32 to vector<16x16x16xf32>
    %102 = arith.mulf %101, %100 : vector<16x16x16xf32>
    %103 = arith.mulf %95, %102 : vector<16x16x16xf32>
    %104 = arith.truncf %103 : vector<16x16x16xf32> to vector<16x16x16xbf16>
    %c0_36 = arith.constant 0 : index
    %c0_37 = arith.constant 0 : index
    %c0_38 = arith.constant 0 : index
    %c0_39 = arith.constant 0 : index
    %105 = vector.load %arg10[%c0_36, %c0_37, %c0_38, %c0_39] : memref<1x16x16x16xbf16, #tpu.memory_space<vmem>>, vector<1x16x16x16xbf16>
    %106 = vector.shape_cast %105 : vector<1x16x16x16xbf16> to vector<16x16x16xbf16>
    %107 = vector.shape_cast %104 : vector<16x16x16xbf16> to vector<1x16x16x16xbf16>
    tpu.vector_store %arg10[%c0_36, %c0_37, %c0_38, %c0_39], %107 {strides = array<i32>} : memref<1x16x16x16xbf16, #tpu.memory_space<vmem>>, vector<1x16x16x16xbf16>,
    %cst_40 = arith.constant dense<0.000000e+00> : vector<16x16xf32>
    %108 = vector.multi_reduction <add>, %103, %cst_40 [0] : vector<16x16x16xf32> to vector<16x16xf32>
    %cst_41 = arith.constant dense<0.000000e+00> : vector<16xf32>
    %109 = vector.multi_reduction <add>, %108, %cst_41 [0] : vector<16x16xf32> to vector<16xf32>
    %cst_42 = arith.constant 3.906250e-03 : f32
    %110 = vector.broadcast %cst_42 : f32 to vector<16xf32>
    %111 = arith.mulf %109, %110 : vector<16xf32>
    %112 = vector.shape_cast %111 : vector<16xf32> to vector<1x16xf32>
    %c0_43 = arith.constant 0 : index
    %c0_44 = arith.constant 0 : index
    %113 = vector.load %arg6[%c0_43, %c0_44] : memref<16x1xf32, #tpu.memory_space<vmem>>, vector<16x1xf32>
    %cst_45 = arith.constant dense<0.000000e+00> : vector<1x1xf32>
    %114 = tpu.matmul %112, %113, %cst_45 {dimension_numbers = #tpu.dot_dimension_numbers<[1], [0], [0], [1], [0, 0, 1, 1], [], []>} : vector<1x16xf32>, vector<16x1xf32>, vector<1x1xf32> -> vector<1x1xf32>
    %c0_46 = arith.constant 0 : index
    %c0_47 = arith.constant 0 : index
    %115 = vector.load %arg7[%c0_46, %c0_47] : memref<1x1xf32, #tpu.memory_space<vmem>>, vector<1x1xf32>
    %116 = arith.addf %114, %115 : vector<1x1xf32>
    %cst_48 = arith.constant 5.000000e-01 : f32
    %117 = vector.broadcast %cst_48 : f32 to vector<1x1xf32>
    %118 = arith.mulf %117, %116 : vector<1x1xf32>
    %119 = math.tanh %118 : vector<1x1xf32>
    %cst_49 = arith.constant 1.000000e+00 : f32
    %120 = vector.broadcast %cst_49 : f32 to vector<1x1xf32>
    %121 = arith.addf %119, %120 : vector<1x1xf32>
    %cst_50 = arith.constant 5.000000e-01 : f32
    %122 = vector.broadcast %cst_50 : f32 to vector<1x1xf32>
    %123 = arith.mulf %122, %121 : vector<1x1xf32>
    %124 = arith.mulf %116, %123 : vector<1x1xf32>
    %c0_51 = arith.constant 0 : index
    %c0_52 = arith.constant 0 : index
    %125 = vector.load %arg8[%c0_51, %c0_52] : memref<1x16xf32, #tpu.memory_space<vmem>>, vector<1x16xf32>
    %cst_53 = arith.constant dense<0.000000e+00> : vector<1x16xf32>
    %126 = tpu.matmul %124, %125, %cst_53 {dimension_numbers = #tpu.dot_dimension_numbers<[1], [0], [0], [1], [0, 0, 1, 1], [], []>} : vector<1x1xf32>, vector<1x16xf32>, vector<1x16xf32> -> vector<1x16xf32>
    %c0_54 = arith.constant 0 : index
    %c0_55 = arith.constant 0 : index
    %127 = vector.load %arg9[%c0_54, %c0_55] : memref<1x16xf32, #tpu.memory_space<vmem>>, vector<1x16xf32>
    %128 = arith.addf %126, %127 : vector<1x16xf32>
    %cst_56 = arith.constant 5.000000e-01 : f32
    %129 = vector.broadcast %cst_56 : f32 to vector<1x16xf32>
    %130 = arith.mulf %129, %128 : vector<1x16xf32>
    %131 = math.tanh %130 : vector<1x16xf32>
    %cst_57 = arith.constant 1.000000e+00 : f32
    %132 = vector.broadcast %cst_57 : f32 to vector<1x16xf32>
    %133 = arith.addf %131, %132 : vector<1x16xf32>
    %cst_58 = arith.constant 5.000000e-01 : f32
    %134 = vector.broadcast %cst_58 : f32 to vector<1x16xf32>
    %135 = arith.mulf %134, %133 : vector<1x16xf32>
    %c0_59 = arith.constant 0 : index
    %c0_60 = arith.constant 0 : index
    %c0_61 = arith.constant 0 : index
    %136 = vector.load %arg11[%c0_59, %c0_60, %c0_61] : memref<1x1x16xf32, #tpu.memory_space<vmem>>, vector<1x1x16xf32>
    %137 = vector.shape_cast %136 : vector<1x1x16xf32> to vector<1x16xf32>
    %138 = vector.shape_cast %135 : vector<1x16xf32> to vector<1x1x16xf32>
    tpu.vector_store %arg11[%c0_59, %c0_60, %c0_61], %138 {strides = array<i32>} : memref<1x1x16xf32, #tpu.memory_space<vmem>>, vector<1x1x16xf32>,
    return
  }
  func.func @transform_0(%arg0: i32) -> (i32, i32, i32) {
    %c0_i32 = arith.constant 0 : i32
    %c0_i32_0 = arith.constant 0 : i32
    %c0_i32_1 = arith.constant 0 : i32
    return %arg0, %c0_i32, %c0_i32_0 : i32, i32, i32
  }
  func.func @transform_1(%arg0: i32) -> (i32, i32) {
    %c0_i32 = arith.constant 0 : i32
    %c0_i32_0 = arith.constant 0 : i32
    %c0_i32_1 = arith.constant 0 : i32
    return %c0_i32, %c0_i32_0 : i32, i32
  }
  func.func @transform_2(%arg0: i32) -> (i32, i32) {
    %c0_i32 = arith.constant 0 : i32
    %c0_i32_0 = arith.constant 0 : i32
    %c0_i32_1 = arith.constant 0 : i32
    return %c0_i32, %c0_i32_0 : i32, i32
  }
  func.func @transform_3(%arg0: i32) -> (i32, i32, i32) {
    %c0_i32 = arith.constant 0 : i32
    %c0_i32_0 = arith.constant 0 : i32
    %c0_i32_1 = arith.constant 0 : i32
    %c0_i32_2 = arith.constant 0 : i32
    return %c0_i32, %c0_i32_0, %c0_i32_1 : i32, i32, i32
  }
  func.func @transform_4(%arg0: i32) -> (i32, i32) {
    %c0_i32 = arith.constant 0 : i32
    %c0_i32_0 = arith.constant 0 : i32
    %c0_i32_1 = arith.constant 0 : i32
    return %c0_i32, %c0_i32_0 : i32, i32
  }
  func.func @transform_5(%arg0: i32) -> (i32, i32) {
    %c0_i32 = arith.constant 0 : i32
    %c0_i32_0 = arith.constant 0 : i32
    %c0_i32_1 = arith.constant 0 : i32
    return %c0_i32, %c0_i32_0 : i32, i32
  }
  func.func @transform_6(%arg0: i32) -> (i32, i32) {
    %c0_i32 = arith.constant 0 : i32
    %c0_i32_0 = arith.constant 0 : i32
    %c0_i32_1 = arith.constant 0 : i32
    return %c0_i32, %c0_i32_0 : i32, i32
  }
  func.func @transform_7(%arg0: i32) -> (i32, i32) {
    %c0_i32 = arith.constant 0 : i32
    %c0_i32_0 = arith.constant 0 : i32
    %c0_i32_1 = arith.constant 0 : i32
    return %c0_i32, %c0_i32_0 : i32, i32
  }
  func.func @transform_8(%arg0: i32) -> (i32, i32) {
    %c0_i32 = arith.constant 0 : i32
    %c0_i32_0 = arith.constant 0 : i32
    %c0_i32_1 = arith.constant 0 : i32
    return %c0_i32, %c0_i32_0 : i32, i32
  }
  func.func @transform_9(%arg0: i32) -> (i32, i32, i32, i32) {
    %c0_i32 = arith.constant 0 : i32
    %c0_i32_0 = arith.constant 0 : i32
    %c0_i32_1 = arith.constant 0 : i32
    %c0_i32_2 = arith.constant 0 : i32
    return %arg0, %c0_i32, %c0_i32_0, %c0_i32_1 : i32, i32, i32, i32
  }
  func.func @transform_10(%arg0: i32) -> (i32, i32, i32) {
    %c0_i32 = arith.constant 0 : i32
    %c0_i32_0 = arith.constant 0 : i32
    %c0_i32_1 = arith.constant 0 : i32
    return %arg0, %c0_i32, %c0_i32_0 : i32, i32, i32
  }
}

</mosaic_0001>

<llo_original>
// kernel: tpu_custom_call.1
$region0: #{tpu_custom_call.1}
  #allocation0 [shape = 'u32[]', space=smem, size = 0x4, offset = 0x4, fixed_abs, tag = 'smem constant byte address 0x4 - core index']
  #allocation1 [shape = 'u32[72,128]{1,0:T(1,128)}', space=vmem, size = 0x9000, scoped, tag = 'internal scratch']
  #allocation2 [shape = 'f32[18,25,16]{2,1,0:T(8,128)}', space=vmem, size = 0x48000, scoped, tag = 'scratch operand']
  #allocation3 [shape = 'f32[1,1]{1,0:T(1,128)S(1)}', space=vmem, size = 0x200, scoped, tag = 'scoped memory for tpu_custom_call.1']
  %s0 = inlined_call_operand.vmem [shape: f32[2,256,4], index: 0, kind: input, shape index: {}]
  %s1 = inlined_call_operand.vmem [shape: bf16[4,16], index: 1, kind: input, shape index: {}]
  %s2 = inlined_call_operand.vmem [shape: f32[1,16], index: 2, kind: input, shape index: {}]
  %s3 = inlined_call_operand.vmem [shape: f32[3,3,16], index: 3, kind: input, shape index: {}]
  %s4 = inlined_call_operand.vmem [shape: f32[1,16], index: 4, kind: input, shape index: {}]
  %s5 = inlined_call_operand.vmem [shape: f32[16,1], index: 5, kind: input, shape index: {}]
  %s6 = inlined_call_operand.<no memory space> [shape: f32[1,1], index: 6, kind: input, shape index: {}]
  %s7 = inlined_call_operand.vmem [shape: f32[1,16], index: 7, kind: input, shape index: {}]
  %s8 = inlined_call_operand.vmem [shape: f32[1,16], index: 8, kind: input, shape index: {}]
  %s9 = inlined_call_operand.hbm [shape: bf16[2,16,16,16], index: 9, kind: output, shape index: {0}]
  %s10 = inlined_call_operand.hbm [shape: f32[2,1,16], index: 10, kind: output, shape index: {1}]
  %11 = xla_tuple %s9, %s10
  %s12 = sld [smem:[#allocation0]]
  $region77: #{tpu_custom_call.1} parent=0
    _
  %s14 = ssub.s32 1, %s12
  %s15 = scalar_select 0, %s14, %s12
  %v16 = vstv %s6
  %17 = vst [vmem:[#allocation3] sm:$0x1] %v16
  $region1: #{tpu_custom_call.1} parent=0
    #allocation4 [shape = 'u8[131072]{0}', space=vmem, size = 0x20000, scoped, tag = 'output window, operand 0']
    #allocation5 [shape = 's32[2]{0}', space=sflag, size = 0x8, scoped, tag = 'scoped memory for tpu_custom_call.1']
    #allocation6 [shape = 'u8[1024]{0}', space=vmem, size = 0x400, scoped, tag = 'output window, operand 1']
    #allocation7 [shape = 's32[2]{0}', space=sflag, size = 0x8, scoped, tag = 'scoped memory for tpu_custom_call.1']
    %18 = vsyncpa [#allocation5], 0
    %s19 = scalar_lea.sflag [#allocation5], 1
    %20 = vsyncpa %s19, 0
    %21 = vsyncpa [#allocation7], 0
    %s22 = scalar_lea.sflag [#allocation7], 1
    %23 = vsyncpa %s22, 0
    loop: start=0, step=1, limit=4
    $region2: #{tpu_custom_call.1} parent=1 // loop_pre_header
      _
    $region3: #{tpu_custom_call.1} parent=1 // loop_header
      %s25 = sphi 0, %s29
      %p26 = scmp.ge.s32.totalorder %s25, 4
      %s35 = sphi 0, %s37
      %s38 = sphi 0, %s35
      %s39 = sphi 0, %s38
      %s55 = sphi 0, %s39
      %s59 = sphi 0, %s59
      %s61 = sphi 0, %s59
      %s62 = sphi 0, %s61
      %s76 = sphi 0, %s62
      %s80 = sphi 0, %s80
      %s82 = sphi 0, %s80
      %s83 = sphi 0, %s82
      %s97 = sphi 0, %s83
      %s101 = sphi 0, %s101
      %s103 = sphi 0, %s101
      %s104 = sphi 0, %s103
      %s118 = sphi 0, %s104
      %s122 = sphi 0, %s122
      %s124 = sphi 0, %s122
      %s125 = sphi 0, %s124
      %s139 = sphi 0, %s125
      %s143 = sphi 0, %s143
      %s145 = sphi 0, %s143
      %s146 = sphi 0, %s145
      %s160 = sphi 0, %s146
      %s164 = sphi 0, %s164
      %s166 = sphi 0, %s164
      %s167 = sphi 0, %s166
      %s181 = sphi 0, %s167
      %s185 = sphi 0, %s185
      %s187 = sphi 0, %s185
      %s188 = sphi 0, %s187
      %s202 = sphi 0, %s188
      %s206 = sphi 0, %s206
      %s208 = sphi 0, %s206
      %s209 = sphi 0, %s208
      %s223 = sphi 0, %s209
      %s229 = sphi 0, %s231
      %s232 = sphi 0, %s229
      %s233 = sphi 0, %s232
      %s249 = sphi 0, %s233
      %s255 = sphi 0, %s257
      %s258 = sphi 0, %s255
      %s259 = sphi 0, %s258
      %s275 = sphi 0, %s259
    $region4: #{tpu_custom_call.1} parent=1 // loop_header_branch
      %28 = sbr.rel (%p26) target = $region8
    $region5: #{tpu_custom_call.1} parent=1 // loop_body
      %s30 = ssub.s32 %s25, 1
      %s31 = ssub.s32 %s25, 2
      %s32 = sadd.s32 %s25, 1
      %s33 = ssub.s32 %s25, %s32
      %p34 = scmp.eq.s32.totalorder %s33, 0
      %s36 = sadd.s32 %s35, 1
      %s37 = scalar_select %p34, %s35, %s36
      %p40 = pneg %p34
      %p41 = scmp.eq.s32.totalorder %s25, 1
      %p42 = por %p40, %p41
      %p43 = scmp.ne.s32.totalorder %s35, %s38
      %p44 = scmp.eq.s32.totalorder %s25, 0
      %p45 = por %p43, %p44
      %p46 = scmp.ne.s32.totalorder %s35, %s38
      %p47 = scmp.eq.s32.totalorder %s30, 1
      %p48 = por %p46, %p47
      %p49 = scmp.ne.s32.totalorder %s38, %s39
      %p50 = scmp.eq.s32.totalorder %s30, 0
      %p51 = por %p49, %p50
      %p52 = scmp.ne.s32.totalorder %s38, %s39
      %p53 = scmp.eq.s32.totalorder %s31, 1
      %p54 = por %p52, %p53
      %p56 = scmp.ne.s32.totalorder %s39, %s55
      %p57 = scmp.eq.s32.totalorder %s31, 0
      %p58 = por %p56, %p57
      %s60 = sadd.s32 %s59, 1
      %p63 = scmp.eq.s32.totalorder %s25, 1
      %p64 = scmp.ne.s32.totalorder %s59, %s61
      %p65 = scmp.eq.s32.totalorder %s25, 0
      %p66 = por %p64, %p65
      %p67 = scmp.ne.s32.totalorder %s59, %s61
      %p68 = scmp.eq.s32.totalorder %s30, 1
      %p69 = por %p67, %p68
      %p70 = scmp.ne.s32.totalorder %s61, %s62
      %p71 = scmp.eq.s32.totalorder %s30, 0
      %p72 = por %p70, %p71
      %p73 = scmp.ne.s32.totalorder %s61, %s62
      %p74 = scmp.eq.s32.totalorder %s31, 1
      %p75 = por %p73, %p74
      %p77 = scmp.ne.s32.totalorder %s62, %s76
      %p78 = scmp.eq.s32.totalorder %s31, 0
      %p79 = por %p77, %p78
      %s81 = sadd.s32 %s80, 1
      %p84 = scmp.eq.s32.totalorder %s25, 1
      %p85 = scmp.ne.s32.totalorder %s80, %s82
      %p86 = scmp.eq.s32.totalorder %s25, 0
      %p87 = por %p85, %p86
      %p88 = scmp.ne.s32.totalorder %s80, %s82
      %p89 = scmp.eq.s32.totalorder %s30, 1
      %p90 = por %p88, %p89
      %p91 = scmp.ne.s32.totalorder %s82, %s83
      %p92 = scmp.eq.s32.totalorder %s30, 0
      %p93 = por %p91, %p92
      %p94 = scmp.ne.s32.totalorder %s82, %s83
      %p95 = scmp.eq.s32.totalorder %s31, 1
      %p96 = por %p94, %p95
      %p98 = scmp.ne.s32.totalorder %s83, %s97
      %p99 = scmp.eq.s32.totalorder %s31, 0
      %p100 = por %p98, %p99
      %s102 = sadd.s32 %s101, 1
      %p105 = scmp.eq.s32.totalorder %s25, 1
      %p106 = scmp.ne.s32.totalorder %s101, %s103
      %p107 = scmp.eq.s32.totalorder %s25, 0
      %p108 = por %p106, %p107
      %p109 = scmp.ne.s32.totalorder %s101, %s103
      %p110 = scmp.eq.s32.totalorder %s30, 1
      %p111 = por %p109, %p110
      %p112 = scmp.ne.s32.totalorder %s103, %s104
      %p113 = scmp.eq.s32.totalorder %s30, 0
      %p114 = por %p112, %p113
      %p115 = scmp.ne.s32.totalorder %s103, %s104
      %p116 = scmp.eq.s32.totalorder %s31, 1
      %p117 = por %p115, %p116
      %p119 = scmp.ne.s32.totalorder %s104, %s118
      %p120 = scmp.eq.s32.totalorder %s31, 0
      %p121 = por %p119, %p120
      %s123 = sadd.s32 %s122, 1
      %p126 = scmp.eq.s32.totalorder %s25, 1
      %p127 = scmp.ne.s32.totalorder %s122, %s124
      %p128 = scmp.eq.s32.totalorder %s25, 0
      %p129 = por %p127, %p128
      %p130 = scmp.ne.s32.totalorder %s122, %s124
      %p131 = scmp.eq.s32.totalorder %s30, 1
      %p132 = por %p130, %p131
      %p133 = scmp.ne.s32.totalorder %s124, %s125
      %p134 = scmp.eq.s32.totalorder %s30, 0
      %p135 = por %p133, %p134
      %p136 = scmp.ne.s32.totalorder %s124, %s125
      %p137 = scmp.eq.s32.totalorder %s31, 1
      %p138 = por %p136, %p137
      %p140 = scmp.ne.s32.totalorder %s125, %s139
      %p141 = scmp.eq.s32.totalorder %s31, 0
      %p142 = por %p140, %p141
      %s144 = sadd.s32 %s143, 1
      %p147 = scmp.eq.s32.totalorder %s25, 1
      %p148 = scmp.ne.s32.totalorder %s143, %s145
      %p149 = scmp.eq.s32.totalorder %s25, 0
      %p150 = por %p148, %p149
      %p151 = scmp.ne.s32.totalorder %s143, %s145
      %p152 = scmp.eq.s32.totalorder %s30, 1
      %p153 = por %p151, %p152
      %p154 = scmp.ne.s32.totalorder %s145, %s146
      %p155 = scmp.eq.s32.totalorder %s30, 0
      %p156 = por %p154, %p155
      %p157 = scmp.ne.s32.totalorder %s145, %s146
      %p158 = scmp.eq.s32.totalorder %s31, 1
      %p159 = por %p157, %p158
      %p161 = scmp.ne.s32.totalorder %s146, %s160
      %p162 = scmp.eq.s32.totalorder %s31, 0
      %p163 = por %p161, %p162
      %s165 = sadd.s32 %s164, 1
      %p168 = scmp.eq.s32.totalorder %s25, 1
      %p169 = scmp.ne.s32.totalorder %s164, %s166
      %p170 = scmp.eq.s32.totalorder %s25, 0
      %p171 = por %p169, %p170
      %p172 = scmp.ne.s32.totalorder %s164, %s166
      %p173 = scmp.eq.s32.totalorder %s30, 1
      %p174 = por %p172, %p173
      %p175 = scmp.ne.s32.totalorder %s166, %s167
      %p176 = scmp.eq.s32.totalorder %s30, 0
      %p177 = por %p175, %p176
      %p178 = scmp.ne.s32.totalorder %s166, %s167
      %p179 = scmp.eq.s32.totalorder %s31, 1
      %p180 = por %p178, %p179
      %p182 = scmp.ne.s32.totalorder %s167, %s181
      %p183 = scmp.eq.s32.totalorder %s31, 0
      %p184 = por %p182, %p183
      %s186 = sadd.s32 %s185, 1
      %p189 = scmp.eq.s32.totalorder %s25, 1
      %p190 = scmp.ne.s32.totalorder %s185, %s187
      %p191 = scmp.eq.s32.totalorder %s25, 0
      %p192 = por %p190, %p191
      %p193 = scmp.ne.s32.totalorder %s185, %s187
      %p194 = scmp.eq.s32.totalorder %s30, 1
      %p195 = por %p193, %p194
      %p196 = scmp.ne.s32.totalorder %s187, %s188
      %p197 = scmp.eq.s32.totalorder %s30, 0
      %p198 = por %p196, %p197
      %p199 = scmp.ne.s32.totalorder %s187, %s188
      %p200 = scmp.eq.s32.totalorder %s31, 1
      %p201 = por %p199, %p200
      %p203 = scmp.ne.s32.totalorder %s188, %s202
      %p204 = scmp.eq.s32.totalorder %s31, 0
      %p205 = por %p203, %p204
      %s207 = sadd.s32 %s206, 1
      %p210 = scmp.eq.s32.totalorder %s25, 1
      %p211 = scmp.ne.s32.totalorder %s206, %s208
      %p212 = scmp.eq.s32.totalorder %s25, 0
      %p213 = por %p211, %p212
      %p214 = scmp.ne.s32.totalorder %s206, %s208
      %p215 = scmp.eq.s32.totalorder %s30, 1
      %p216 = por %p214, %p215
      %p217 = scmp.ne.s32.totalorder %s208, %s209
      %p218 = scmp.eq.s32.totalorder %s30, 0
      %p219 = por %p217, %p218
      %p220 = scmp.ne.s32.totalorder %s208, %s209
      %p221 = scmp.eq.s32.totalorder %s31, 1
      %p222 = por %p220, %p221
      %p224 = scmp.ne.s32.totalorder %s209, %s223
      %p225 = scmp.eq.s32.totalorder %s31, 0
      %p226 = por %p224, %p225
      %s227 = ssub.s32 %s25, %s32
      %p228 = scmp.eq.s32.totalorder %s227, 0
      %s230 = sadd.s32 %s229, 1
      %s231 = scalar_select %p228, %s229, %s230
      %p234 = pneg %p228
      %p235 = scmp.eq.s32.totalorder %s25, 1
      %p236 = por %p234, %p235
      %p237 = scmp.ne.s32.totalorder %s229, %s232
      %p238 = scmp.eq.s32.totalorder %s25, 0
      %p239 = por %p237, %p238
      %p240 = scmp.ne.s32.totalorder %s229, %s232
      %p241 = scmp.eq.s32.totalorder %s30, 1
      %p242 = por %p240, %p241
      %p243 = scmp.ne.s32.totalorder %s232, %s233
      %p244 = scmp.eq.s32.totalorder %s30, 0
      %p245 = por %p243, %p244
      %p246 = scmp.ne.s32.totalorder %s232, %s233
      %p247 = scmp.eq.s32.totalorder %s31, 1
      %p248 = por %p246, %p247
      %p250 = scmp.ne.s32.totalorder %s233, %s249
      %p251 = scmp.eq.s32.totalorder %s31, 0
      %p252 = por %p250, %p251
      %s253 = ssub.s32 %s25, %s32
      %p254 = scmp.eq.s32.totalorder %s253, 0
      %s256 = sadd.s32 %s255, 1
      %s257 = scalar_select %p254, %s255, %s256
      %p260 = pneg %p254
      %p261 = scmp.eq.s32.totalorder %s25, 1
      %p262 = por %p260, %p261
      %p263 = scmp.ne.s32.totalorder %s255, %s258
      %p264 = scmp.eq.s32.totalorder %s25, 0
      %p265 = por %p263, %p264
      %p266 = scmp.ne.s32.totalorder %s255, %s258
      %p267 = scmp.eq.s32.totalorder %s30, 1
      %p268 = por %p266, %p267
      %p269 = scmp.ne.s32.totalorder %s258, %s259
      %p270 = scmp.eq.s32.totalorder %s30, 0
      %p271 = por %p269, %p270
      %p272 = scmp.ne.s32.totalorder %s258, %s259
      %p273 = scmp.eq.s32.totalorder %s31, 1
      %p274 = por %p272, %p273
      %p276 = scmp.ne.s32.totalorder %s259, %s275
      %p277 = scmp.eq.s32.totalorder %s31, 0
      %p278 = por %p276, %p277
      %p279 = scmp.le.s32.totalorder 1, %s25
      %p280 = scmp.lt.s32.totalorder %s25, 3
      %p281 = pnand %p279, %p280
      %p282 = pneg %p281
      // Predicated region
      $region9: #{tpu_custom_call.1} parent=5 // pred_check
        _
      $region10: #{tpu_custom_call.1} parent=5 // pred_check_branch
        %284 = sbr.rel (%p281) target = $region12
      $region11: #{tpu_custom_call.1} parent=5 // pred_region
        %s285 = ssub.s32 %s25, 1
        // Predicated region
        $region13: #{tpu_custom_call.1} parent=11 // pred_check
          %p286 = pneg %p72
        $region14: #{tpu_custom_call.1} parent=11 // pred_check_branch
          %288 = sbr.rel (%p286) target = $region16
        $region15: #{tpu_custom_call.1} parent=11 // pred_region
          _
        $region16: #{tpu_custom_call.1} parent=11 // pred_fallthru
          _
        // Predicated region
        $region17: #{tpu_custom_call.1} parent=11 // pred_check
          %p289 = pneg %p93
        $region18: #{tpu_custom_call.1} parent=11 // pred_check_branch
          %291 = sbr.rel (%p289) target = $region20
        $region19: #{tpu_custom_call.1} parent=11 // pred_region
          _
        $region20: #{tpu_custom_call.1} parent=11 // pred_fallthru
          _
        // Predicated region
        $region21: #{tpu_custom_call.1} parent=11 // pred_check
          %p292 = pneg %p114
        $region22: #{tpu_custom_call.1} parent=11 // pred_check_branch
          %294 = sbr.rel (%p292) target = $region24
        $region23: #{tpu_custom_call.1} parent=11 // pred_region
          _
        $region24: #{tpu_custom_call.1} parent=11 // pred_fallthru
          _
        // Predicated region
        $region25: #{tpu_custom_call.1} parent=11 // pred_check
          %p295 = pneg %p135
        $region26: #{tpu_custom_call.1} parent=11 // pred_check_branch
          %297 = sbr.rel (%p295) target = $region28
        $region27: #{tpu_custom_call.1} parent=11 // pred_region
          _
        $region28: #{tpu_custom_call.1} parent=11 // pred_fallthru
          _
        // Predicated region
        $region29: #{tpu_custom_call.1} parent=11 // pred_check
          %p298 = pneg %p156
        $region30: #{tpu_custom_call.1} parent=11 // pred_check_branch
          %300 = sbr.rel (%p298) target = $region32
        $region31: #{tpu_custom_call.1} parent=11 // pred_region
          _
        $region32: #{tpu_custom_call.1} parent=11 // pred_fallthru
          _
        // Predicated region
        $region33: #{tpu_custom_call.1} parent=11 // pred_check
          %p301 = pneg %p177
        $region34: #{tpu_custom_call.1} parent=11 // pred_check_branch
          %303 = sbr.rel (%p301) target = $region36
        $region35: #{tpu_custom_call.1} parent=11 // pred_region
          _
        $region36: #{tpu_custom_call.1} parent=11 // pred_fallthru
          _
        // Predicated region
        $region37: #{tpu_custom_call.1} parent=11 // pred_check
          %p304 = pneg %p198
        $region38: #{tpu_custom_call.1} parent=11 // pred_check_branch
          %306 = sbr.rel (%p304) target = $region40
        $region39: #{tpu_custom_call.1} parent=11 // pred_region
          _
        $region40: #{tpu_custom_call.1} parent=11 // pred_fallthru
          _
        // Predicated region
        $region41: #{tpu_custom_call.1} parent=11 // pred_check
          %p307 = pneg %p219
        $region42: #{tpu_custom_call.1} parent=11 // pred_check_branch
          %309 = sbr.rel (%p307) target = $region44
        $region43: #{tpu_custom_call.1} parent=11 // pred_region
          _
        $region44: #{tpu_custom_call.1} parent=11 // pred_fallthru
          _
      $region12: #{tpu_custom_call.1} parent=5 // pred_fallthru
        _
      %p310 = scmp.lt.s32.totalorder %s25, 2
      // Predicated region
      $region45: #{tpu_custom_call.1} parent=5 // pred_check
        %p311 = pneg %p310
      $region46: #{tpu_custom_call.1} parent=5 // pred_check_branch
        %313 = sbr.rel (%p311) target = $region48
      $region47: #{tpu_custom_call.1} parent=5 // pred_region
        // Predicated region
        $region49: #{tpu_custom_call.1} parent=47 // pred_check
          %p314 = pneg %p45
        $region50: #{tpu_custom_call.1} parent=47 // pred_check_branch
          %316 = sbr.rel (%p314) target = $region52
        $region51: #{tpu_custom_call.1} parent=47 // pred_region
          %p317 = scmp.lt.s32.totalorder %s25, 1
          %s318 = scalar_select %p317, %s25, 1
          %s319 = smul.addr %s318, 32
          %s320 = smul.addr %s319, 8
          %s321 = scalar_lea.vmem %s0, %s320
        $region52: #{tpu_custom_call.1} parent=47 // pred_fallthru
          _
      $region48: #{tpu_custom_call.1} parent=5 // pred_fallthru
        _
      %p322 = scmp.le.s32.totalorder 1, %s25
      %p323 = scmp.lt.s32.totalorder %s25, 3
      %p324 = pnand %p322, %p323
      %p325 = pneg %p324
      // Predicated region
      $region53: #{tpu_custom_call.1} parent=5 // pred_check
        _
      $region54: #{tpu_custom_call.1} parent=5 // pred_check_branch
        %327 = sbr.rel (%p324) target = $region56
      $region55: #{tpu_custom_call.1} parent=5 // pred_region
        %s328 = ssub.s32 %s25, 1
        %p329 = scmp.lt.s32.totalorder %s30, 1
        %s330 = scalar_select %p329, %s30, 1
        %s331 = smul.addr %s330, 32
        %s332 = smul.addr %s331, 8
        %s333 = scalar_lea.vmem %s0, %s332
        %p334 = pneg %p51
        %p335 = pneg %p48
        %p336 = pneg %p72
        %p337 = pneg %p69
        %p338 = pneg %p93
        %p339 = pneg %p90
        %p340 = pneg %p114
        %p341 = pneg %p111
        %p342 = pneg %p135
        %p343 = pneg %p132
        %p344 = pneg %p156
        %p345 = pneg %p153
        %p346 = pneg %p177
        %p347 = pneg %p174
        %p348 = pneg %p198
        %p349 = pneg %p195
        %p350 = pneg %p219
        %p351 = pneg %p216
        %p352 = pneg %p245
        %p353 = pneg %p242
        %s354 = sand.u32 %s232, 1
        %s355 = scalar_lea.sflag [#allocation5], %s354
        %s356 = sand.u32 %s232, 1
        %s357 = smul.addr %s356, 128
        %s358 = scalar_lea.vmem [#allocation4], %s357
        %p359 = pneg %p271
        %p360 = pneg %p268
        %s361 = sand.u32 %s258, 1
        %s362 = scalar_lea.sflag [#allocation7], %s361
        %s363 = sand.u32 %s258, 1
        %s364 = scalar_lea.vmem [#allocation6], %s363
        %p365 = scmp.lt.s32.totalorder %s30, 1
        %s366 = scalar_select %p365, %s30, 1
        %s367 = smul.addr %s366, 32
        %s368 = smul.addr %s367, 8
        %s369 = scalar_lea.vmem %s0, %s368
        %v371 = vld [vmem:[%s369] sm:$0xff]
        %v372 = vld [vmem:[%s369 + $0x8] sm:$0xff]
        %v373 = vld [vmem:[%s369 + $0x10] sm:$0xff]
        %v374 = vld [vmem:[%s369 + $0x18] sm:$0xff]
        %v375 = vld [vmem:[%s369 + $0x20] sm:$0xff]
        %v376 = vld [vmem:[%s369 + $0x28] sm:$0xff]
        %v377 = vld [vmem:[%s369 + $0x30] sm:$0xff]
        %v378 = vld [vmem:[%s369 + $0x38] sm:$0xff]
        %v379 = vld [vmem:[%s369 + $0x40] sm:$0xff]
        %v380 = vld [vmem:[%s369 + $0x48] sm:$0xff]
        %v381 = vld [vmem:[%s369 + $0x50] sm:$0xff]
        %v382 = vld [vmem:[%s369 + $0x58] sm:$0xff]
        %v383 = vld [vmem:[%s369 + $0x60] sm:$0xff]
        %v384 = vld [vmem:[%s369 + $0x68] sm:$0xff]
        %v385 = vld [vmem:[%s369 + $0x70] sm:$0xff]
        %v386 = vld [vmem:[%s369 + $0x78] sm:$0xff]
        %v387 = vld [vmem:[%s369 + $0x80] sm:$0xff]
        %v388 = vld [vmem:[%s369 + $0x88] sm:$0xff]
        %v389 = vld [vmem:[%s369 + $0x90] sm:$0xff]
        %v390 = vld [vmem:[%s369 + $0x98] sm:$0xff]
        %v391 = vld [vmem:[%s369 + $0xa0] sm:$0xff]
        %v392 = vld [vmem:[%s369 + $0xa8] sm:$0xff]
        %v393 = vld [vmem:[%s369 + $0xb0] sm:$0xff]
        %v394 = vld [vmem:[%s369 + $0xb8] sm:$0xff]
        %v395 = vld [vmem:[%s369 + $0xc0] sm:$0xff]
        %v396 = vld [vmem:[%s369 + $0xc8] sm:$0xff]
        %v397 = vld [vmem:[%s369 + $0xd0] sm:$0xff]
        %v398 = vld [vmem:[%s369 + $0xd8] sm:$0xff]
        %v399 = vld [vmem:[%s369 + $0xe0] sm:$0xff]
        %v400 = vld [vmem:[%s369 + $0xe8] sm:$0xff]
        %v401 = vld [vmem:[%s369 + $0xf0] sm:$0xff]
        %v402 = vld [vmem:[%s369 + $0xf8] sm:$0xff]
        %v403 = vpack.c.bf16 %v372, %v371
        %v404 = vpack.c.bf16 %v374, %v373
        %v405 = vpack.c.bf16 %v376, %v375
        %v406 = vpack.c.bf16 %v378, %v377
        %v407 = vpack.c.bf16 %v380, %v379
        %v408 = vpack.c.bf16 %v382, %v381
        %v409 = vpack.c.bf16 %v384, %v383
        %v410 = vpack.c.bf16 %v386, %v385
        %v411 = vpack.c.bf16 %v388, %v387
        %v412 = vpack.c.bf16 %v390, %v389
        %v413 = vpack.c.bf16 %v392, %v391
        %v414 = vpack.c.bf16 %v394, %v393
        %v415 = vpack.c.bf16 %v396, %v395
        %v416 = vpack.c.bf16 %v398, %v397
        %v417 = vpack.c.bf16 %v400, %v399
        %v418 = vpack.c.bf16 %v402, %v401
        %v419 = vld [vmem:[%s1] sm:$0x3]
        %v420 = vld [vmem:[%s2] sm:$0x1]
        %v422 = vperm.slane %v420, 0
        %vm424 = vcmask 31744
        %v426 = vsel %vm424, %v403, 0
        %v429 = vsel %vm424, %v404, 0
        %v432 = vsel %vm424, %v405, 0
        %v435 = vsel %vm424, %v406, 0
        %v438 = vsel %vm424, %v407, 0
        %v441 = vsel %vm424, %v408, 0
        %v444 = vsel %vm424, %v409, 0
        %v447 = vsel %vm424, %v410, 0
        %v450 = vsel %vm424, %v411, 0
        %v453 = vsel %vm424, %v412, 0
        %v456 = vsel %vm424, %v413, 0
        %v459 = vsel %vm424, %v414, 0
        %v462 = vsel %vm424, %v415, 0
        %v465 = vsel %vm424, %v416, 0
        %v468 = vsel %vm424, %v417, 0
        %v471 = vsel %vm424, %v418, 0
        %vm473 = vcmask 1041408
        %v475 = vsel %vm473, %v419, 0
        %477 = vmatpush.bf16.msra.mxu0 0
        %478 = vmatpush.bf16.msra.mxu0 0
        %479 = vmatpush.bf16.msra.mxu0 0
        %480 = vmatpush.bf16.msra.mxu0 0
        %481 = vmatpush.bf16.msra.mxu0 0
        %482 = vmatpush.bf16.msra.mxu0 0
        %483 = vmatpush.bf16.msra.mxu0 0
        %484 = vmatpush.bf16.msra.mxu0 %v475
        %485 = vmatmul.bf16.gmra.mxu0 %v426
        %v486 = vpop.f32.mrf.mxu0
        %v487 = vadd.f32 %v422, %v486
        %v488 = vpop.f32.mrf.mxu0
        %v489 = vadd.f32 %v422, %v488
        %490 = vmatmul.bf16.gmra.mxu0 %v429
        %v491 = vpop.f32.mrf.mxu0
        %v492 = vadd.f32 %v422, %v491
        %v493 = vpop.f32.mrf.mxu0
        %v494 = vadd.f32 %v422, %v493
        %495 = vmatmul.bf16.gmra.mxu0 %v432
        %v496 = vpop.f32.mrf.mxu0
        %v497 = vadd.f32 %v422, %v496
        %v498 = vpop.f32.mrf.mxu0
        %v499 = vadd.f32 %v422, %v498
        %500 = vmatmul.bf16.gmra.mxu0 %v435
        %v501 = vpop.f32.mrf.mxu0
        %v502 = vadd.f32 %v422, %v501
        %v503 = vpop.f32.mrf.mxu0
        %v504 = vadd.f32 %v422, %v503
        %505 = vmatmul.bf16.gmra.mxu0 %v438
        %v506 = vpop.f32.mrf.mxu0
        %v507 = vadd.f32 %v422, %v506
        %v508 = vpop.f32.mrf.mxu0
        %v509 = vadd.f32 %v422, %v508
        %510 = vmatmul.bf16.gmra.mxu0 %v441
        %v511 = vpop.f32.mrf.mxu0
        %v512 = vadd.f32 %v422, %v511
        %v513 = vpop.f32.mrf.mxu0
        %v514 = vadd.f32 %v422, %v513
        %515 = vmatmul.bf16.gmra.mxu0 %v444
        %v516 = vpop.f32.mrf.mxu0
        %v517 = vadd.f32 %v422, %v516
        %v518 = vpop.f32.mrf.mxu0
        %v519 = vadd.f32 %v422, %v518
        %520 = vmatmul.bf16.gmra.mxu0 %v447
        %v521 = vpop.f32.mrf.mxu0
        %v522 = vadd.f32 %v422, %v521
        %v523 = vpop.f32.mrf.mxu0
        %v524 = vadd.f32 %v422, %v523
        %525 = vmatmul.bf16.gmra.mxu0 %v450
        %v526 = vpop.f32.mrf.mxu0
        %v527 = vadd.f32 %v422, %v526
        %v528 = vpop.f32.mrf.mxu0
        %v529 = vadd.f32 %v422, %v528
        %530 = vmatmul.bf16.gmra.mxu0 %v453
        %v531 = vpop.f32.mrf.mxu0
        %v532 = vadd.f32 %v422, %v531
        %v533 = vpop.f32.mrf.mxu0
        %v534 = vadd.f32 %v422, %v533
        %535 = vmatmul.bf16.gmra.mxu0 %v456
        %v536 = vpop.f32.mrf.mxu0
        %v537 = vadd.f32 %v422, %v536
        %v538 = vpop.f32.mrf.mxu0
        %v539 = vadd.f32 %v422, %v538
        %540 = vmatmul.bf16.gmra.mxu0 %v459
        %v541 = vpop.f32.mrf.mxu0
        %v542 = vadd.f32 %v422, %v541
        %v543 = vpop.f32.mrf.mxu0
        %v544 = vadd.f32 %v422, %v543
        %545 = vmatmul.bf16.gmra.mxu0 %v462
        %v546 = vpop.f32.mrf.mxu0
        %v547 = vadd.f32 %v422, %v546
        %v548 = vpop.f32.mrf.mxu0
        %v549 = vadd.f32 %v422, %v548
        %550 = vmatmul.bf16.gmra.mxu0 %v465
        %v551 = vpop.f32.mrf.mxu0
        %v552 = vadd.f32 %v422, %v551
        %v553 = vpop.f32.mrf.mxu0
        %v554 = vadd.f32 %v422, %v553
        %555 = vmatmul.bf16.gmra.mxu0 %v468
        %v556 = vpop.f32.mrf.mxu0
        %v557 = vadd.f32 %v422, %v556
        %v558 = vpop.f32.mrf.mxu0
        %v559 = vadd.f32 %v422, %v558
        %560 = vmatmul.bf16.gmra.mxu0 %v471
        %v561 = vpop.f32.mrf.mxu0
        %v562 = vadd.f32 %v422, %v561
        %v563 = vpop.f32.mrf.mxu0
        %v564 = vadd.f32 %v422, %v563
        %565 = vdwg.mxu0
        %v566 = vmul.f32 %v487, 0.5
        %v567 = vmul.f32 %v489, 0.5
        %v568 = vmul.f32 %v492, 0.5
        %v569 = vmul.f32 %v494, 0.5
        %v570 = vmul.f32 %v497, 0.5
        %v571 = vmul.f32 %v499, 0.5
        %v572 = vmul.f32 %v502, 0.5
        %v573 = vmul.f32 %v504, 0.5
        %v574 = vmul.f32 %v507, 0.5
        %v575 = vmul.f32 %v509, 0.5
        %v576 = vmul.f32 %v512, 0.5
        %v577 = vmul.f32 %v514, 0.5
        %v578 = vmul.f32 %v517, 0.5
        %v579 = vmul.f32 %v519, 0.5
        %v580 = vmul.f32 %v522, 0.5
        %v581 = vmul.f32 %v524, 0.5
        %v582 = vmul.f32 %v527, 0.5
        %v583 = vmul.f32 %v529, 0.5
        %v584 = vmul.f32 %v532, 0.5
        %v585 = vmul.f32 %v534, 0.5
        %v586 = vmul.f32 %v537, 0.5
        %v587 = vmul.f32 %v539, 0.5
        %v588 = vmul.f32 %v542, 0.5
        %v589 = vmul.f32 %v544, 0.5
        %v590 = vmul.f32 %v547, 0.5
        %v591 = vmul.f32 %v549, 0.5
        %v592 = vmul.f32 %v552, 0.5
        %v593 = vmul.f32 %v554, 0.5
        %v594 = vmul.f32 %v557, 0.5
        %v595 = vmul.f32 %v559, 0.5
        %v596 = vmul.f32 %v562, 0.5
        %v597 = vmul.f32 %v564, 0.5
        %v598 = vtanh.pop %v566
        %v599 = vtanh.pop %v567
        %v600 = vtanh.pop %v568
        %v601 = vtanh.pop %v569
        %v602 = vtanh.pop %v570
        %v603 = vtanh.pop %v571
        %v604 = vtanh.pop %v572
        %v605 = vtanh.pop %v573
        %v606 = vtanh.pop %v574
        %v607 = vtanh.pop %v575
        %v608 = vtanh.pop %v576
        %v609 = vtanh.pop %v577
        %v610 = vtanh.pop %v578
        %v611 = vtanh.pop %v579
        %v612 = vtanh.pop %v580
        %v613 = vtanh.pop %v581
        %v614 = vtanh.pop %v582
        %v615 = vtanh.pop %v583
        %v616 = vtanh.pop %v584
        %v617 = vtanh.pop %v585
        %v618 = vtanh.pop %v586
        %v619 = vtanh.pop %v587
        %v620 = vtanh.pop %v588
        %v621 = vtanh.pop %v589
        %v622 = vtanh.pop %v590
        %v623 = vtanh.pop %v591
        %v624 = vtanh.pop %v592
        %v625 = vtanh.pop %v593
        %v626 = vtanh.pop %v594
        %v627 = vtanh.pop %v595
        %v628 = vtanh.pop %v596
        %v629 = vtanh.pop %v597
        %v630 = vadd.f32 %v598, 1.0
        %v631 = vadd.f32 %v599, 1.0
        %v632 = vadd.f32 %v600, 1.0
        %v633 = vadd.f32 %v601, 1.0
        %v634 = vadd.f32 %v602, 1.0
        %v635 = vadd.f32 %v603, 1.0
        %v636 = vadd.f32 %v604, 1.0
        %v637 = vadd.f32 %v605, 1.0
        %v638 = vadd.f32 %v606, 1.0
        %v639 = vadd.f32 %v607, 1.0
        %v640 = vadd.f32 %v608, 1.0
        %v641 = vadd.f32 %v609, 1.0
        %v642 = vadd.f32 %v610, 1.0
        %v643 = vadd.f32 %v611, 1.0
        %v644 = vadd.f32 %v612, 1.0
        %v645 = vadd.f32 %v613, 1.0
        %v646 = vadd.f32 %v614, 1.0
        %v647 = vadd.f32 %v615, 1.0
        %v648 = vadd.f32 %v616, 1.0
        %v649 = vadd.f32 %v617, 1.0
        %v650 = vadd.f32 %v618, 1.0
        %v651 = vadd.f32 %v619, 1.0
        %v652 = vadd.f32 %v620, 1.0
        %v653 = vadd.f32 %v621, 1.0
        %v654 = vadd.f32 %v622, 1.0
        %v655 = vadd.f32 %v623, 1.0
        %v656 = vadd.f32 %v624, 1.0
        %v657 = vadd.f32 %v625, 1.0
        %v658 = vadd.f32 %v626, 1.0
        %v659 = vadd.f32 %v627, 1.0
        %v660 = vadd.f32 %v628, 1.0
        %v661 = vadd.f32 %v629, 1.0
        %v662 = vmul.f32 %v630, 0.5
        %v663 = vmul.f32 %v631, 0.5
        %v664 = vmul.f32 %v632, 0.5
        %v665 = vmul.f32 %v633, 0.5
        %v666 = vmul.f32 %v634, 0.5
        %v667 = vmul.f32 %v635, 0.5
        %v668 = vmul.f32 %v636, 0.5
        %v669 = vmul.f32 %v637, 0.5
        %v670 = vmul.f32 %v638, 0.5
        %v671 = vmul.f32 %v639, 0.5
        %v672 = vmul.f32 %v640, 0.5
        %v673 = vmul.f32 %v641, 0.5
        %v674 = vmul.f32 %v642, 0.5
        %v675 = vmul.f32 %v643, 0.5
        %v676 = vmul.f32 %v644, 0.5
        %v677 = vmul.f32 %v645, 0.5
        %v678 = vmul.f32 %v646, 0.5
        %v679 = vmul.f32 %v647, 0.5
        %v680 = vmul.f32 %v648, 0.5
        %v681 = vmul.f32 %v649, 0.5
        %v682 = vmul.f32 %v650, 0.5
        %v683 = vmul.f32 %v651, 0.5
        %v684 = vmul.f32 %v652, 0.5
        %v685 = vmul.f32 %v653, 0.5
        %v686 = vmul.f32 %v654, 0.5
        %v687 = vmul.f32 %v655, 0.5
        %v688 = vmul.f32 %v656, 0.5
        %v689 = vmul.f32 %v657, 0.5
        %v690 = vmul.f32 %v658, 0.5
        %v691 = vmul.f32 %v659, 0.5
        %v692 = vmul.f32 %v660, 0.5
        %v693 = vmul.f32 %v661, 0.5
        %v694 = vmul.f32 %v487, %v662
        %v695 = vmul.f32 %v489, %v663
        %v696 = vmul.f32 %v492, %v664
        %v697 = vmul.f32 %v494, %v665
        %v698 = vmul.f32 %v497, %v666
        %v699 = vmul.f32 %v499, %v667
        %v700 = vmul.f32 %v502, %v668
        %v701 = vmul.f32 %v504, %v669
        %v702 = vmul.f32 %v507, %v670
        %v703 = vmul.f32 %v509, %v671
        %v704 = vmul.f32 %v512, %v672
        %v705 = vmul.f32 %v514, %v673
        %v706 = vmul.f32 %v517, %v674
        %v707 = vmul.f32 %v519, %v675
        %v708 = vmul.f32 %v522, %v676
        %v709 = vmul.f32 %v524, %v677
        %v710 = vmul.f32 %v527, %v678
        %v711 = vmul.f32 %v529, %v679
        %v712 = vmul.f32 %v532, %v680
        %v713 = vmul.f32 %v534, %v681
        %v714 = vmul.f32 %v537, %v682
        %v715 = vmul.f32 %v539, %v683
        %v716 = vmul.f32 %v542, %v684
        %v717 = vmul.f32 %v544, %v685
        %v718 = vmul.f32 %v547, %v686
        %v719 = vmul.f32 %v549, %v687
        %v720 = vmul.f32 %v552, %v688
        %v721 = vmul.f32 %v554, %v689
        %v722 = vmul.f32 %v557, %v690
        %v723 = vmul.f32 %v559, %v691
        %v724 = vmul.f32 %v562, %v692
        %v725 = vmul.f32 %v564, %v693
        %vm726 = vcmask 130048
        %727 = vst.msk [vmem:[#allocation2] sm:$0xff] %vm726, 0.0
        %728 = vst.msk [vmem:[#allocation2 + $0x8] sm:$0xff] %vm726, 0.0
        %729 = vst.msk [vmem:[#allocation2 + $0x10] sm:$0xff] %vm726, 0.0
        %vm730 = vcmask 122880
        %731 = vst.msk [vmem:[#allocation2 + $0x18] sm:$0x1] %vm730, 0.0
        %s732 = scalar_lea.vmem [#allocation2], 544
        %733 = vst.msk [vmem:[%s732] sm:$0xff] %vm726, 0.0
        %734 = vst.msk [vmem:[%s732 + $0x8] sm:$0xff] %vm726, 0.0
        %735 = vst.msk [vmem:[%s732 + $0x10] sm:$0xff] %vm726, 0.0
        %736 = vst.msk [vmem:[%s732 + $0x18] sm:$0x1] %vm730, 0.0
        %737 = vst.msk [vmem:[#allocation2] sm:$0xff] %vm726, 0.0
        %738 = vst.msk [vmem:[#allocation2 + $0x20] sm:$0xff] %vm726, 0.0
        %739 = vst.msk [vmem:[#allocation2 + $0x40] sm:$0xff] %vm726, 0.0
        %740 = vst.msk [vmem:[#allocation2 + $0x60] sm:$0xff] %vm726, 0.0
        %741 = vst.msk [vmem:[#allocation2 + $0x80] sm:$0xff] %vm726, 0.0
        %742 = vst.msk [vmem:[#allocation2 + $0xa0] sm:$0xff] %vm726, 0.0
        %743 = vst.msk [vmem:[#allocation2 + $0xc0] sm:$0xff] %vm726, 0.0
        %744 = vst.msk [vmem:[#allocation2 + $0xe0] sm:$0xff] %vm726, 0.0
        %745 = vst.msk [vmem:[#allocation2 + $0x100] sm:$0xff] %vm726, 0.0
        %746 = vst.msk [vmem:[#allocation2 + $0x120] sm:$0xff] %vm726, 0.0
        %747 = vst.msk [vmem:[#allocation2 + $0x140] sm:$0xff] %vm726, 0.0
        %748 = vst.msk [vmem:[#allocation2 + $0x160] sm:$0xff] %vm726, 0.0
        %749 = vst.msk [vmem:[#allocation2 + $0x180] sm:$0xff] %vm726, 0.0
        %750 = vst.msk [vmem:[#allocation2 + $0x1a0] sm:$0xff] %vm726, 0.0
        %751 = vst.msk [vmem:[#allocation2 + $0x1c0] sm:$0xff] %vm726, 0.0
        %752 = vst.msk [vmem:[#allocation2 + $0x1e0] sm:$0xff] %vm726, 0.0
        %753 = vst.msk [vmem:[#allocation2 + $0x200] sm:$0xff] %vm726, 0.0
        %754 = vst.msk [vmem:[#allocation2 + $0x220] sm:$0xff] %vm726, 0.0
        %755 = vst.msk [vmem:[#allocation2 + $0x18] sm:$0x1] %vm730, 0.0
        %756 = vst.msk [vmem:[#allocation2 + $0x38] sm:$0x1] %vm730, 0.0
        %757 = vst.msk [vmem:[#allocation2 + $0x58] sm:$0x1] %vm730, 0.0
        %758 = vst.msk [vmem:[#allocation2 + $0x78] sm:$0x1] %vm730, 0.0
        %759 = vst.msk [vmem:[#allocation2 + $0x98] sm:$0x1] %vm730, 0.0
        %760 = vst.msk [vmem:[#allocation2 + $0xb8] sm:$0x1] %vm730, 0.0
        %761 = vst.msk [vmem:[#allocation2 + $0xd8] sm:$0x1] %vm730, 0.0
        %762 = vst.msk [vmem:[#allocation2 + $0xf8] sm:$0x1] %vm730, 0.0
        %763 = vst.msk [vmem:[#allocation2 + $0x118] sm:$0x1] %vm730, 0.0
        %764 = vst.msk [vmem:[#allocation2 + $0x138] sm:$0x1] %vm730, 0.0
        %765 = vst.msk [vmem:[#allocation2 + $0x158] sm:$0x1] %vm730, 0.0
        %766 = vst.msk [vmem:[#allocation2 + $0x178] sm:$0x1] %vm730, 0.0
        %767 = vst.msk [vmem:[#allocation2 + $0x198] sm:$0x1] %vm730, 0.0
        %768 = vst.msk [vmem:[#allocation2 + $0x1b8] sm:$0x1] %vm730, 0.0
        %769 = vst.msk [vmem:[#allocation2 + $0x1d8] sm:$0x1] %vm730, 0.0
        %770 = vst.msk [vmem:[#allocation2 + $0x1f8] sm:$0x1] %vm730, 0.0
        %771 = vst.msk [vmem:[#allocation2 + $0x218] sm:$0x1] %vm730, 0.0
        %772 = vst.msk [vmem:[#allocation2 + $0x238] sm:$0x1] %vm730, 0.0
        %s773 = scalar_lea.vmem [#allocation2], 32
        %774 = vst.msk [vmem:[%s773 + $0x8] sm:$0xff] %vm726, %v694
        %775 = vst.msk [vmem:[%s773 + $0x10] sm:$0xff] %vm726, %v695
        %776 = vst.msk [vmem:[%s773 + $0x28] sm:$0xff] %vm726, %v696
        %777 = vst.msk [vmem:[%s773 + $0x30] sm:$0xff] %vm726, %v697
        %778 = vst.msk [vmem:[%s773 + $0x48] sm:$0xff] %vm726, %v698
        %779 = vst.msk [vmem:[%s773 + $0x50] sm:$0xff] %vm726, %v699
        %780 = vst.msk [vmem:[%s773 + $0x68] sm:$0xff] %vm726, %v700
        %781 = vst.msk [vmem:[%s773 + $0x70] sm:$0xff] %vm726, %v701
        %782 = vst.msk [vmem:[%s773 + $0x88] sm:$0xff] %vm726, %v702
        %783 = vst.msk [vmem:[%s773 + $0x90] sm:$0xff] %vm726, %v703
        %784 = vst.msk [vmem:[%s773 + $0xa8] sm:$0xff] %vm726, %v704
        %785 = vst.msk [vmem:[%s773 + $0xb0] sm:$0xff] %vm726, %v705
        %786 = vst.msk [vmem:[%s773 + $0xc8] sm:$0xff] %vm726, %v706
        %787 = vst.msk [vmem:[%s773 + $0xd0] sm:$0xff] %vm726, %v707
        %788 = vst.msk [vmem:[%s773 + $0xe8] sm:$0xff] %vm726, %v708
        %789 = vst.msk [vmem:[%s773 + $0xf0] sm:$0xff] %vm726, %v709
        %790 = vst.msk [vmem:[%s773 + $0x108] sm:$0xff] %vm726, %v710
        %791 = vst.msk [vmem:[%s773 + $0x110] sm:$0xff] %vm726, %v711
        %792 = vst.msk [vmem:[%s773 + $0x128] sm:$0xff] %vm726, %v712
        %793 = vst.msk [vmem:[%s773 + $0x130] sm:$0xff] %vm726, %v713
        %794 = vst.msk [vmem:[%s773 + $0x148] sm:$0xff] %vm726, %v714
        %795 = vst.msk [vmem:[%s773 + $0x150] sm:$0xff] %vm726, %v715
        %796 = vst.msk [vmem:[%s773 + $0x168] sm:$0xff] %vm726, %v716
        %797 = vst.msk [vmem:[%s773 + $0x170] sm:$0xff] %vm726, %v717
        %798 = vst.msk [vmem:[%s773 + $0x188] sm:$0xff] %vm726, %v718
        %799 = vst.msk [vmem:[%s773 + $0x190] sm:$0xff] %vm726, %v719
        %800 = vst.msk [vmem:[%s773 + $0x1a8] sm:$0xff] %vm726, %v720
        %801 = vst.msk [vmem:[%s773 + $0x1b0] sm:$0xff] %vm726, %v721
        %802 = vst.msk [vmem:[%s773 + $0x1c8] sm:$0xff] %vm726, %v722
        %803 = vst.msk [vmem:[%s773 + $0x1d0] sm:$0xff] %vm726, %v723
        %804 = vst.msk [vmem:[%s773 + $0x1e8] sm:$0xff] %vm726, %v724
        %805 = vst.msk [vmem:[%s773 + $0x1f0] sm:$0xff] %vm726, %v725
        %v806 = vld [vmem:[#allocation2] sm:$0xff]
        %v807 = vld [vmem:[#allocation2 + $0x8] sm:$0xff]
        %v808 = vld [vmem:[#allocation2 + $0x10] sm:$0xff]
        %v809 = vld [vmem:[#allocation2 + $0x18] sm:$0x1]
        %v810 = vld [vmem:[#allocation2 + $0x20] sm:$0xff]
        %v811 = vld [vmem:[#allocation2 + $0x28] sm:$0xff]
        %v812 = vld [vmem:[#allocation2 + $0x30] sm:$0xff]
        %v813 = vld [vmem:[#allocation2 + $0x38] sm:$0x1]
        %v814 = vld [vmem:[#allocation2 + $0x40] sm:$0xff]
        %v815 = vld [vmem:[#allocation2 + $0x48] sm:$0xff]
        %v816 = vld [vmem:[#allocation2 + $0x50] sm:$0xff]
        %v817 = vld [vmem:[#allocation2 + $0x58] sm:$0x1]
        %v818 = vld [vmem:[#allocation2 + $0x60] sm:$0xff]
        %v819 = vld [vmem:[#allocation2 + $0x68] sm:$0xff]
        %v820 = vld [vmem:[#allocation2 + $0x70] sm:$0xff]
        %v821 = vld [vmem:[#allocation2 + $0x78] sm:$0x1]
        %v822 = vld [vmem:[#allocation2 + $0x80] sm:$0xff]
        %v823 = vld [vmem:[#allocation2 + $0x88] sm:$0xff]
        %v824 = vld [vmem:[#allocation2 + $0x90] sm:$0xff]
        %v825 = vld [vmem:[#allocation2 + $0x98] sm:$0x1]
        %v826 = vld [vmem:[#allocation2 + $0xa0] sm:$0xff]
        %v827 = vld [vmem:[#allocation2 + $0xa8] sm:$0xff]
        %v828 = vld [vmem:[#allocation2 + $0xb0] sm:$0xff]
        %v829 = vld [vmem:[#allocation2 + $0xb8] sm:$0x1]
        %v830 = vld [vmem:[#allocation2 + $0xc0] sm:$0xff]
        %v831 = vld [vmem:[#allocation2 + $0xc8] sm:$0xff]
        %v832 = vld [vmem:[#allocation2 + $0xd0] sm:$0xff]
        %v833 = vld [vmem:[#allocation2 + $0xd8] sm:$0x1]
        %v834 = vld [vmem:[#allocation2 + $0xe0] sm:$0xff]
        %v835 = vld [vmem:[#allocation2 + $0xe8] sm:$0xff]
        %v836 = vld [vmem:[#allocation2 + $0xf0] sm:$0xff]
        %v837 = vld [vmem:[#allocation2 + $0xf8] sm:$0x1]
        %v838 = vld [vmem:[#allocation2 + $0x100] sm:$0xff]
        %v839 = vld [vmem:[#allocation2 + $0x108] sm:$0xff]
        %v840 = vld [vmem:[#allocation2 + $0x110] sm:$0xff]
        %v841 = vld [vmem:[#allocation2 + $0x118] sm:$0x1]
        %v842 = vld [vmem:[#allocation2 + $0x120] sm:$0xff]
        %v843 = vld [vmem:[#allocation2 + $0x128] sm:$0xff]
        %v844 = vld [vmem:[#allocation2 + $0x130] sm:$0xff]
        %v845 = vld [vmem:[#allocation2 + $0x138] sm:$0x1]
        %v846 = vld [vmem:[#allocation2 + $0x140] sm:$0xff]
        %v847 = vld [vmem:[#allocation2 + $0x148] sm:$0xff]
        %v848 = vld [vmem:[#allocation2 + $0x150] sm:$0xff]
        %v849 = vld [vmem:[#allocation2 + $0x158] sm:$0x1]
        %v850 = vld [vmem:[#allocation2 + $0x160] sm:$0xff]
        %v851 = vld [vmem:[#allocation2 + $0x168] sm:$0xff]
        %v852 = vld [vmem:[#allocation2 + $0x170] sm:$0xff]
        %v853 = vld [vmem:[#allocation2 + $0x178] sm:$0x1]
        %v854 = vld [vmem:[#allocation2 + $0x180] sm:$0xff]
        %v855 = vld [vmem:[#allocation2 + $0x188] sm:$0xff]
        %v856 = vld [vmem:[#allocation2 + $0x190] sm:$0xff]
        %v857 = vld [vmem:[#allocation2 + $0x198] sm:$0x1]
        %v858 = vld [vmem:[#allocation2 + $0x1a0] sm:$0xff]
        %v859 = vld [vmem:[#allocation2 + $0x1a8] sm:$0xff]
        %v860 = vld [vmem:[#allocation2 + $0x1b0] sm:$0xff]
        %v861 = vld [vmem:[#allocation2 + $0x1b8] sm:$0x1]
        %v862 = vld [vmem:[#allocation2 + $0x1c0] sm:$0xff]
        %v863 = vld [vmem:[#allocation2 + $0x1c8] sm:$0xff]
        %v864 = vld [vmem:[#allocation2 + $0x1d0] sm:$0xff]
        %v865 = vld [vmem:[#allocation2 + $0x1d8] sm:$0x1]
        %v866 = vld [vmem:[#allocation2 + $0x1e0] sm:$0xff]
        %v867 = vld [vmem:[#allocation2 + $0x1e8] sm:$0xff]
        %v868 = vld [vmem:[#allocation2 + $0x1f0] sm:$0xff]
        %v869 = vld [vmem:[#allocation2 + $0x1f8] sm:$0x1]
        %v870 = vld [vmem:[#allocation2 + $0x200] sm:$0xff]
        %v871 = vld [vmem:[#allocation2 + $0x208] sm:$0xff]
        %v872 = vld [vmem:[#allocation2 + $0x210] sm:$0xff]
        %v873 = vld [vmem:[#allocation2 + $0x218] sm:$0x1]
        %v874 = vld [vmem:[#allocation2 + $0x220] sm:$0xff]
        %v875 = vld [vmem:[#allocation2 + $0x228] sm:$0xff]
        %v876 = vld [vmem:[#allocation2 + $0x230] sm:$0xff]
        %v877 = vld [vmem:[#allocation2 + $0x238] sm:$0x1]
        %v878 = vld [vmem:[%s3] sm:$0x7]
        %v879 = vld [vmem:[%s3 + $0x4] sm:$0x7]
        %v880 = vld [vmem:[%s3 + $0x8] sm:$0x7]
        %v881 = vperm.slane %v878, 0
        %v882 = vmul.f32 %v806, %v881
        %v883 = vmul.f32 %v807, %v881
        %v884 = vmul.f32 %v808, %v881
        %v885 = vmul.f32 %v810, %v881
        %v886 = vmul.f32 %v811, %v881
        %v887 = vmul.f32 %v812, %v881
        %v888 = vmul.f32 %v814, %v881
        %v889 = vmul.f32 %v815, %v881
        %v890 = vmul.f32 %v816, %v881
        %v891 = vmul.f32 %v818, %v881
        %v892 = vmul.f32 %v819, %v881
        %v893 = vmul.f32 %v820, %v881
        %v894 = vmul.f32 %v822, %v881
        %v895 = vmul.f32 %v823, %v881
        %v896 = vmul.f32 %v824, %v881
        %v897 = vmul.f32 %v826, %v881
        %v898 = vmul.f32 %v827, %v881
        %v899 = vmul.f32 %v828, %v881
        %v900 = vmul.f32 %v830, %v881
        %v901 = vmul.f32 %v831, %v881
        %v902 = vmul.f32 %v832, %v881
        %v903 = vmul.f32 %v834, %v881
        %v904 = vmul.f32 %v835, %v881
        %v905 = vmul.f32 %v836, %v881
        %v906 = vmul.f32 %v838, %v881
        %v907 = vmul.f32 %v839, %v881
        %v908 = vmul.f32 %v840, %v881
        %v909 = vmul.f32 %v842, %v881
        %v910 = vmul.f32 %v843, %v881
        %v911 = vmul.f32 %v844, %v881
        %v912 = vmul.f32 %v846, %v881
        %v913 = vmul.f32 %v847, %v881
        %v914 = vmul.f32 %v848, %v881
        %v915 = vmul.f32 %v850, %v881
        %v916 = vmul.f32 %v851, %v881
        %v917 = vmul.f32 %v852, %v881
        %v918 = vmul.f32 %v854, %v881
        %v919 = vmul.f32 %v855, %v881
        %v920 = vmul.f32 %v856, %v881
        %v921 = vmul.f32 %v858, %v881
        %v922 = vmul.f32 %v859, %v881
        %v923 = vmul.f32 %v860, %v881
        %v924 = vmul.f32 %v862, %v881
        %v925 = vmul.f32 %v863, %v881
        %v926 = vmul.f32 %v864, %v881
        %v927 = vmul.f32 %v866, %v881
        %v928 = vmul.f32 %v867, %v881
        %v929 = vmul.f32 %v868, %v881
        %v930 = vadd.f32 %v882, 0.0
        %v931 = vadd.f32 %v883, 0.0
        %v932 = vadd.f32 %v884, 0.0
        %v933 = vadd.f32 %v885, 0.0
        %v934 = vadd.f32 %v886, 0.0
        %v935 = vadd.f32 %v887, 0.0
        %v936 = vadd.f32 %v888, 0.0
        %v937 = vadd.f32 %v889, 0.0
        %v938 = vadd.f32 %v890, 0.0
        %v939 = vadd.f32 %v891, 0.0
        %v940 = vadd.f32 %v892, 0.0
        %v941 = vadd.f32 %v893, 0.0
        %v942 = vadd.f32 %v894, 0.0
        %v943 = vadd.f32 %v895, 0.0
        %v944 = vadd.f32 %v896, 0.0
        %v945 = vadd.f32 %v897, 0.0
        %v946 = vadd.f32 %v898, 0.0
        %v947 = vadd.f32 %v899, 0.0
        %v948 = vadd.f32 %v900, 0.0
        %v949 = vadd.f32 %v901, 0.0
        %v950 = vadd.f32 %v902, 0.0
        %v951 = vadd.f32 %v903, 0.0
        %v952 = vadd.f32 %v904, 0.0
        %v953 = vadd.f32 %v905, 0.0
        %v954 = vadd.f32 %v906, 0.0
        %v955 = vadd.f32 %v907, 0.0
        %v956 = vadd.f32 %v908, 0.0
        %v957 = vadd.f32 %v909, 0.0
        %v958 = vadd.f32 %v910, 0.0
        %v959 = vadd.f32 %v911, 0.0
        %v960 = vadd.f32 %v912, 0.0
        %v961 = vadd.f32 %v913, 0.0
        %v962 = vadd.f32 %v914, 0.0
        %v963 = vadd.f32 %v915, 0.0
        %v964 = vadd.f32 %v916, 0.0
        %v965 = vadd.f32 %v917, 0.0
        %v966 = vadd.f32 %v918, 0.0
        %v967 = vadd.f32 %v919, 0.0
        %v968 = vadd.f32 %v920, 0.0
        %v969 = vadd.f32 %v921, 0.0
        %v970 = vadd.f32 %v922, 0.0
        %v971 = vadd.f32 %v923, 0.0
        %v972 = vadd.f32 %v924, 0.0
        %v973 = vadd.f32 %v925, 0.0
        %v974 = vadd.f32 %v926, 0.0
        %v975 = vadd.f32 %v927, 0.0
        %v976 = vadd.f32 %v928, 0.0
        %v977 = vadd.f32 %v929, 0.0
        %v978 = vperm.slane %v878, 1
        %v979 = vmul.f32 %v807, %v978
        %v980 = vmul.f32 %v808, %v978
        %v981 = vmul.f32 %v811, %v978
        %v982 = vmul.f32 %v812, %v978
        %v983 = vmul.f32 %v815, %v978
        %v984 = vmul.f32 %v816, %v978
        %v985 = vmul.f32 %v819, %v978
        %v986 = vmul.f32 %v820, %v978
        %v987 = vmul.f32 %v823, %v978
        %v988 = vmul.f32 %v824, %v978
        %v989 = vmul.f32 %v827, %v978
        %v990 = vmul.f32 %v828, %v978
        %v991 = vmul.f32 %v831, %v978
        %v992 = vmul.f32 %v832, %v978
        %v993 = vmul.f32 %v835, %v978
        %v994 = vmul.f32 %v836, %v978
        %v995 = vmul.f32 %v839, %v978
        %v996 = vmul.f32 %v840, %v978
        %v997 = vmul.f32 %v843, %v978
        %v998 = vmul.f32 %v844, %v978
        %v999 = vmul.f32 %v847, %v978
        %v1000 = vmul.f32 %v848, %v978
        %v1001 = vmul.f32 %v851, %v978
        %v1002 = vmul.f32 %v852, %v978
        %v1003 = vmul.f32 %v855, %v978
        %v1004 = vmul.f32 %v856, %v978
        %v1005 = vmul.f32 %v859, %v978
        %v1006 = vmul.f32 %v860, %v978
        %v1007 = vmul.f32 %v863, %v978
        %v1008 = vmul.f32 %v864, %v978
        %v1009 = vmul.f32 %v867, %v978
        %v1010 = vmul.f32 %v868, %v978
        %vm1043 = vcmask 1046528
        %v1044 = vrot.slane %v979, 1
        %v1045 = vrot.slane %v980, 1
        %v1046 = vsel %vm1043, %v1044, %v1045
        %v1047 = vrot.slane %v981, 1
        %v1048 = vrot.slane %v982, 1
        %v1049 = vsel %vm1043, %v1047, %v1048
        %v1050 = vrot.slane %v983, 1
        %v1051 = vrot.slane %v984, 1
        %v1052 = vsel %vm1043, %v1050, %v1051
        %v1053 = vrot.slane %v985, 1
        %v1054 = vrot.slane %v986, 1
        %v1055 = vsel %vm1043, %v1053, %v1054
        %v1056 = vrot.slane %v987, 1
        %v1057 = vrot.slane %v988, 1
        %v1058 = vsel %vm1043, %v1056, %v1057
        %v1059 = vrot.slane %v989, 1
        %v1060 = vrot.slane %v990, 1
        %v1061 = vsel %vm1043, %v1059, %v1060
        %v1062 = vrot.slane %v991, 1
        %v1063 = vrot.slane %v992, 1
        %v1064 = vsel %vm1043, %v1062, %v1063
        %v1065 = vrot.slane %v993, 1
        %v1066 = vrot.slane %v994, 1
        %v1067 = vsel %vm1043, %v1065, %v1066
        %v1068 = vrot.slane %v995, 1
        %v1069 = vrot.slane %v996, 1
        %v1070 = vsel %vm1043, %v1068, %v1069
        %v1071 = vrot.slane %v997, 1
        %v1072 = vrot.slane %v998, 1
        %v1073 = vsel %vm1043, %v1071, %v1072
        %v1074 = vrot.slane %v999, 1
        %v1075 = vrot.slane %v1000, 1
        %v1076 = vsel %vm1043, %v1074, %v1075
        %v1077 = vrot.slane %v1001, 1
        %v1078 = vrot.slane %v1002, 1
        %v1079 = vsel %vm1043, %v1077, %v1078
        %v1080 = vrot.slane %v1003, 1
        %v1081 = vrot.slane %v1004, 1
        %v1082 = vsel %vm1043, %v1080, %v1081
        %v1083 = vrot.slane %v1005, 1
        %v1084 = vrot.slane %v1006, 1
        %v1085 = vsel %vm1043, %v1083, %v1084
        %v1086 = vrot.slane %v1007, 1
        %v1087 = vrot.slane %v1008, 1
        %v1088 = vsel %vm1043, %v1086, %v1087
        %v1089 = vrot.slane %v1009, 1
        %v1090 = vrot.slane %v1010, 1
        %v1091 = vsel %vm1043, %v1089, %v1090
        %v1140 = vadd.f32 %v930, %v1044
        %v1141 = vadd.f32 %v931, %v1046
        %v1142 = vadd.f32 %v932, %v1045
        %v1143 = vadd.f32 %v933, %v1047
        %v1144 = vadd.f32 %v934, %v1049
        %v1145 = vadd.f32 %v935, %v1048
        %v1146 = vadd.f32 %v936, %v1050
        %v1147 = vadd.f32 %v937, %v1052
        %v1148 = vadd.f32 %v938, %v1051
        %v1149 = vadd.f32 %v939, %v1053
        %v1150 = vadd.f32 %v940, %v1055
        %v1151 = vadd.f32 %v941, %v1054
        %v1152 = vadd.f32 %v942, %v1056
        %v1153 = vadd.f32 %v943, %v1058
        %v1154 = vadd.f32 %v944, %v1057
        %v1155 = vadd.f32 %v945, %v1059
        %v1156 = vadd.f32 %v946, %v1061
        %v1157 = vadd.f32 %v947, %v1060
        %v1158 = vadd.f32 %v948, %v1062
        %v1159 = vadd.f32 %v949, %v1064
        %v1160 = vadd.f32 %v950, %v1063
        %v1161 = vadd.f32 %v951, %v1065
        %v1162 = vadd.f32 %v952, %v1067
        %v1163 = vadd.f32 %v953, %v1066
        %v1164 = vadd.f32 %v954, %v1068
        %v1165 = vadd.f32 %v955, %v1070
        %v1166 = vadd.f32 %v956, %v1069
        %v1167 = vadd.f32 %v957, %v1071
        %v1168 = vadd.f32 %v958, %v1073
        %v1169 = vadd.f32 %v959, %v1072
        %v1170 = vadd.f32 %v960, %v1074
        %v1171 = vadd.f32 %v961, %v1076
        %v1172 = vadd.f32 %v962, %v1075
        %v1173 = vadd.f32 %v963, %v1077
        %v1174 = vadd.f32 %v964, %v1079
        %v1175 = vadd.f32 %v965, %v1078
        %v1176 = vadd.f32 %v966, %v1080
        %v1177 = vadd.f32 %v967, %v1082
        %v1178 = vadd.f32 %v968, %v1081
        %v1179 = vadd.f32 %v969, %v1083
        %v1180 = vadd.f32 %v970, %v1085
        %v1181 = vadd.f32 %v971, %v1084
        %v1182 = vadd.f32 %v972, %v1086
        %v1183 = vadd.f32 %v973, %v1088
        %v1184 = vadd.f32 %v974, %v1087
        %v1185 = vadd.f32 %v975, %v1089
        %v1186 = vadd.f32 %v976, %v1091
        %v1187 = vadd.f32 %v977, %v1090
        %v1188 = vperm.slane %v878, 2
        %v1189 = vmul.f32 %v807, %v1188
        %v1190 = vmul.f32 %v808, %v1188
        %v1191 = vmul.f32 %v809, %v1188
        %v1192 = vmul.f32 %v811, %v1188
        %v1193 = vmul.f32 %v812, %v1188
        %v1194 = vmul.f32 %v813, %v1188
        %v1195 = vmul.f32 %v815, %v1188
        %v1196 = vmul.f32 %v816, %v1188
        %v1197 = vmul.f32 %v817, %v1188
        %v1198 = vmul.f32 %v819, %v1188
        %v1199 = vmul.f32 %v820, %v1188
        %v1200 = vmul.f32 %v821, %v1188
        %v1201 = vmul.f32 %v823, %v1188
        %v1202 = vmul.f32 %v824, %v1188
        %v1203 = vmul.f32 %v825, %v1188
        %v1204 = vmul.f32 %v827, %v1188
        %v1205 = vmul.f32 %v828, %v1188
        %v1206 = vmul.f32 %v829, %v1188
        %v1207 = vmul.f32 %v831, %v1188
        %v1208 = vmul.f32 %v832, %v1188
        %v1209 = vmul.f32 %v833, %v1188
        %v1210 = vmul.f32 %v835, %v1188
        %v1211 = vmul.f32 %v836, %v1188
        %v1212 = vmul.f32 %v837, %v1188
        %v1213 = vmul.f32 %v839, %v1188
        %v1214 = vmul.f32 %v840, %v1188
        %v1215 = vmul.f32 %v841, %v1188
        %v1216 = vmul.f32 %v843, %v1188
        %v1217 = vmul.f32 %v844, %v1188
        %v1218 = vmul.f32 %v845, %v1188
        %v1219 = vmul.f32 %v847, %v1188
        %v1220 = vmul.f32 %v848, %v1188
        %v1221 = vmul.f32 %v849, %v1188
        %v1222 = vmul.f32 %v851, %v1188
        %v1223 = vmul.f32 %v852, %v1188
        %v1224 = vmul.f32 %v853, %v1188
        %v1225 = vmul.f32 %v855, %v1188
        %v1226 = vmul.f32 %v856, %v1188
        %v1227 = vmul.f32 %v857, %v1188
        %v1228 = vmul.f32 %v859, %v1188
        %v1229 = vmul.f32 %v860, %v1188
        %v1230 = vmul.f32 %v861, %v1188
        %v1231 = vmul.f32 %v863, %v1188
        %v1232 = vmul.f32 %v864, %v1188
        %v1233 = vmul.f32 %v865, %v1188
        %v1234 = vmul.f32 %v867, %v1188
        %v1235 = vmul.f32 %v868, %v1188
        %v1236 = vmul.f32 %v869, %v1188
        %vm1285 = vcmask 1045504
        %v1286 = vrot.slane %v1189, 2
        %v1287 = vrot.slane %v1190, 2
        %v1288 = vsel %vm1285, %v1286, %v1287
        %v1289 = vrot.slane %v1191, 2
        %v1290 = vsel %vm1285, %v1287, %v1289
        %v1291 = vrot.slane %v1192, 2
        %v1292 = vrot.slane %v1193, 2
        %v1293 = vsel %vm1285, %v1291, %v1292
        %v1294 = vrot.slane %v1194, 2
        %v1295 = vsel %vm1285, %v1292, %v1294
        %v1296 = vrot.slane %v1195, 2
        %v1297 = vrot.slane %v1196, 2
        %v1298 = vsel %vm1285, %v1296, %v1297
        %v1299 = vrot.slane %v1197, 2
        %v1300 = vsel %vm1285, %v1297, %v1299
        %v1301 = vrot.slane %v1198, 2
        %v1302 = vrot.slane %v1199, 2
        %v1303 = vsel %vm1285, %v1301, %v1302
        %v1304 = vrot.slane %v1200, 2
        %v1305 = vsel %vm1285, %v1302, %v1304
        %v1306 = vrot.slane %v1201, 2
        %v1307 = vrot.slane %v1202, 2
        %v1308 = vsel %vm1285, %v1306, %v1307
        %v1309 = vrot.slane %v1203, 2
        %v1310 = vsel %vm1285, %v1307, %v1309
        %v1311 = vrot.slane %v1204, 2
        %v1312 = vrot.slane %v1205, 2
        %v1313 = vsel %vm1285, %v1311, %v1312
        %v1314 = vrot.slane %v1206, 2
        %v1315 = vsel %vm1285, %v1312, %v1314
        %v1316 = vrot.slane %v1207, 2
        %v1317 = vrot.slane %v1208, 2
        %v1318 = vsel %vm1285, %v1316, %v1317
        %v1319 = vrot.slane %v1209, 2
        %v1320 = vsel %vm1285, %v1317, %v1319
        %v1321 = vrot.slane %v1210, 2
        %v1322 = vrot.slane %v1211, 2
        %v1323 = vsel %vm1285, %v1321, %v1322
        %v1324 = vrot.slane %v1212, 2
        %v1325 = vsel %vm1285, %v1322, %v1324
        %v1326 = vrot.slane %v1213, 2
        %v1327 = vrot.slane %v1214, 2
        %v1328 = vsel %vm1285, %v1326, %v1327
        %v1329 = vrot.slane %v1215, 2
        %v1330 = vsel %vm1285, %v1327, %v1329
        %v1331 = vrot.slane %v1216, 2
        %v1332 = vrot.slane %v1217, 2
        %v1333 = vsel %vm1285, %v1331, %v1332
        %v1334 = vrot.slane %v1218, 2
        %v1335 = vsel %vm1285, %v1332, %v1334
        %v1336 = vrot.slane %v1219, 2
        %v1337 = vrot.slane %v1220, 2
        %v1338 = vsel %vm1285, %v1336, %v1337
        %v1339 = vrot.slane %v1221, 2
        %v1340 = vsel %vm1285, %v1337, %v1339
        %v1341 = vrot.slane %v1222, 2
        %v1342 = vrot.slane %v1223, 2
        %v1343 = vsel %vm1285, %v1341, %v1342
        %v1344 = vrot.slane %v1224, 2
        %v1345 = vsel %vm1285, %v1342, %v1344
        %v1346 = vrot.slane %v1225, 2
        %v1347 = vrot.slane %v1226, 2
        %v1348 = vsel %vm1285, %v1346, %v1347
        %v1349 = vrot.slane %v1227, 2
        %v1350 = vsel %vm1285, %v1347, %v1349
        %v1351 = vrot.slane %v1228, 2
        %v1352 = vrot.slane %v1229, 2
        %v1353 = vsel %vm1285, %v1351, %v1352
        %v1354 = vrot.slane %v1230, 2
        %v1355 = vsel %vm1285, %v1352, %v1354
        %v1356 = vrot.slane %v1231, 2
        %v1357 = vrot.slane %v1232, 2
        %v1358 = vsel %vm1285, %v1356, %v1357
        %v1359 = vrot.slane %v1233, 2
        %v1360 = vsel %vm1285, %v1357, %v1359
        %v1361 = vrot.slane %v1234, 2
        %v1362 = vrot.slane %v1235, 2
        %v1363 = vsel %vm1285, %v1361, %v1362
        %v1364 = vrot.slane %v1236, 2
        %v1365 = vsel %vm1285, %v1362, %v1364
        %v1414 = vadd.f32 %v1140, %v1286
        %v1415 = vadd.f32 %v1141, %v1288
        %v1416 = vadd.f32 %v1142, %v1290
        %v1417 = vadd.f32 %v1143, %v1291
        %v1418 = vadd.f32 %v1144, %v1293
        %v1419 = vadd.f32 %v1145, %v1295
        %v1420 = vadd.f32 %v1146, %v1296
        %v1421 = vadd.f32 %v1147, %v1298
        %v1422 = vadd.f32 %v1148, %v1300
        %v1423 = vadd.f32 %v1149, %v1301
        %v1424 = vadd.f32 %v1150, %v1303
        %v1425 = vadd.f32 %v1151, %v1305
        %v1426 = vadd.f32 %v1152, %v1306
        %v1427 = vadd.f32 %v1153, %v1308
        %v1428 = vadd.f32 %v1154, %v1310
        %v1429 = vadd.f32 %v1155, %v1311
        %v1430 = vadd.f32 %v1156, %v1313
        %v1431 = vadd.f32 %v1157, %v1315
        %v1432 = vadd.f32 %v1158, %v1316
        %v1433 = vadd.f32 %v1159, %v1318
        %v1434 = vadd.f32 %v1160, %v1320
        %v1435 = vadd.f32 %v1161, %v1321
        %v1436 = vadd.f32 %v1162, %v1323
        %v1437 = vadd.f32 %v1163, %v1325
        %v1438 = vadd.f32 %v1164, %v1326
        %v1439 = vadd.f32 %v1165, %v1328
        %v1440 = vadd.f32 %v1166, %v1330
        %v1441 = vadd.f32 %v1167, %v1331
        %v1442 = vadd.f32 %v1168, %v1333
        %v1443 = vadd.f32 %v1169, %v1335
        %v1444 = vadd.f32 %v1170, %v1336
        %v1445 = vadd.f32 %v1171, %v1338
        %v1446 = vadd.f32 %v1172, %v1340
        %v1447 = vadd.f32 %v1173, %v1341
        %v1448 = vadd.f32 %v1174, %v1343
        %v1449 = vadd.f32 %v1175, %v1345
        %v1450 = vadd.f32 %v1176, %v1346
        %v1451 = vadd.f32 %v1177, %v1348
        %v1452 = vadd.f32 %v1178, %v1350
        %v1453 = vadd.f32 %v1179, %v1351
        %v1454 = vadd.f32 %v1180, %v1353
        %v1455 = vadd.f32 %v1181, %v1355
        %v1456 = vadd.f32 %v1182, %v1356
        %v1457 = vadd.f32 %v1183, %v1358
        %v1458 = vadd.f32 %v1184, %v1360
        %v1459 = vadd.f32 %v1185, %v1361
        %v1460 = vadd.f32 %v1186, %v1363
        %v1461 = vadd.f32 %v1187, %v1365
        %v1462 = vperm.slane %v879, 0
        %v1463 = vmul.f32 %v810, %v1462
        %v1464 = vmul.f32 %v811, %v1462
        %v1465 = vmul.f32 %v812, %v1462
        %v1466 = vmul.f32 %v814, %v1462
        %v1467 = vmul.f32 %v815, %v1462
        %v1468 = vmul.f32 %v816, %v1462
        %v1469 = vmul.f32 %v818, %v1462
        %v1470 = vmul.f32 %v819, %v1462
        %v1471 = vmul.f32 %v820, %v1462
        %v1472 = vmul.f32 %v822, %v1462
        %v1473 = vmul.f32 %v823, %v1462
        %v1474 = vmul.f32 %v824, %v1462
        %v1475 = vmul.f32 %v826, %v1462
        %v1476 = vmul.f32 %v827, %v1462
        %v1477 = vmul.f32 %v828, %v1462
        %v1478 = vmul.f32 %v830, %v1462
        %v1479 = vmul.f32 %v831, %v1462
        %v1480 = vmul.f32 %v832, %v1462
        %v1481 = vmul.f32 %v834, %v1462
        %v1482 = vmul.f32 %v835, %v1462
        %v1483 = vmul.f32 %v836, %v1462
        %v1484 = vmul.f32 %v838, %v1462
        %v1485 = vmul.f32 %v839, %v1462
        %v1486 = vmul.f32 %v840, %v1462
        %v1487 = vmul.f32 %v842, %v1462
        %v1488 = vmul.f32 %v843, %v1462
        %v1489 = vmul.f32 %v844, %v1462
        %v1490 = vmul.f32 %v846, %v1462
        %v1491 = vmul.f32 %v847, %v1462
        %v1492 = vmul.f32 %v848, %v1462
        %v1493 = vmul.f32 %v850, %v1462
        %v1494 = vmul.f32 %v851, %v1462
        %v1495 = vmul.f32 %v852, %v1462
        %v1496 = vmul.f32 %v854, %v1462
        %v1497 = vmul.f32 %v855, %v1462
        %v1498 = vmul.f32 %v856, %v1462
        %v1499 = vmul.f32 %v858, %v1462
        %v1500 = vmul.f32 %v859, %v1462
        %v1501 = vmul.f32 %v860, %v1462
        %v1502 = vmul.f32 %v862, %v1462
        %v1503 = vmul.f32 %v863, %v1462
        %v1504 = vmul.f32 %v864, %v1462
        %v1505 = vmul.f32 %v866, %v1462
        %v1506 = vmul.f32 %v867, %v1462
        %v1507 = vmul.f32 %v868, %v1462
        %v1508 = vmul.f32 %v870, %v1462
        %v1509 = vmul.f32 %v871, %v1462
        %v1510 = vmul.f32 %v872, %v1462
        %v1511 = vadd.f32 %v1414, %v1463
        %v1512 = vadd.f32 %v1415, %v1464
        %v1513 = vadd.f32 %v1416, %v1465
        %v1514 = vadd.f32 %v1417, %v1466
        %v1515 = vadd.f32 %v1418, %v1467
        %v1516 = vadd.f32 %v1419, %v1468
        %v1517 = vadd.f32 %v1420, %v1469
        %v1518 = vadd.f32 %v1421, %v1470
        %v1519 = vadd.f32 %v1422, %v1471
        %v1520 = vadd.f32 %v1423, %v1472
        %v1521 = vadd.f32 %v1424, %v1473
        %v1522 = vadd.f32 %v1425, %v1474
        %v1523 = vadd.f32 %v1426, %v1475
        %v1524 = vadd.f32 %v1427, %v1476
        %v1525 = vadd.f32 %v1428, %v1477
        %v1526 = vadd.f32 %v1429, %v1478
        %v1527 = vadd.f32 %v1430, %v1479
        %v1528 = vadd.f32 %v1431, %v1480
        %v1529 = vadd.f32 %v1432, %v1481
        %v1530 = vadd.f32 %v1433, %v1482
        %v1531 = vadd.f32 %v1434, %v1483
        %v1532 = vadd.f32 %v1435, %v1484
        %v1533 = vadd.f32 %v1436, %v1485
        %v1534 = vadd.f32 %v1437, %v1486
        %v1535 = vadd.f32 %v1438, %v1487
        %v1536 = vadd.f32 %v1439, %v1488
        %v1537 = vadd.f32 %v1440, %v1489
        %v1538 = vadd.f32 %v1441, %v1490
        %v1539 = vadd.f32 %v1442, %v1491
        %v1540 = vadd.f32 %v1443, %v1492
        %v1541 = vadd.f32 %v1444, %v1493
        %v1542 = vadd.f32 %v1445, %v1494
        %v1543 = vadd.f32 %v1446, %v1495
        %v1544 = vadd.f32 %v1447, %v1496
        %v1545 = vadd.f32 %v1448, %v1497
        %v1546 = vadd.f32 %v1449, %v1498
        %v1547 = vadd.f32 %v1450, %v1499
        %v1548 = vadd.f32 %v1451, %v1500
        %v1549 = vadd.f32 %v1452, %v1501
        %v1550 = vadd.f32 %v1453, %v1502
        %v1551 = vadd.f32 %v1454, %v1503
        %v1552 = vadd.f32 %v1455, %v1504
        %v1553 = vadd.f32 %v1456, %v1505
        %v1554 = vadd.f32 %v1457, %v1506
        %v1555 = vadd.f32 %v1458, %v1507
        %v1556 = vadd.f32 %v1459, %v1508
        %v1557 = vadd.f32 %v1460, %v1509
        %v1558 = vadd.f32 %v1461, %v1510
        %v1559 = vperm.slane %v879, 1
        %v1560 = vmul.f32 %v811, %v1559
        %v1561 = vmul.f32 %v812, %v1559
        %v1562 = vmul.f32 %v815, %v1559
        %v1563 = vmul.f32 %v816, %v1559
        %v1564 = vmul.f32 %v819, %v1559
        %v1565 = vmul.f32 %v820, %v1559
        %v1566 = vmul.f32 %v823, %v1559
        %v1567 = vmul.f32 %v824, %v1559
        %v1568 = vmul.f32 %v827, %v1559
        %v1569 = vmul.f32 %v828, %v1559
        %v1570 = vmul.f32 %v831, %v1559
        %v1571 = vmul.f32 %v832, %v1559
        %v1572 = vmul.f32 %v835, %v1559
        %v1573 = vmul.f32 %v836, %v1559
        %v1574 = vmul.f32 %v839, %v1559
        %v1575 = vmul.f32 %v840, %v1559
        %v1576 = vmul.f32 %v843, %v1559
        %v1577 = vmul.f32 %v844, %v1559
        %v1578 = vmul.f32 %v847, %v1559
        %v1579 = vmul.f32 %v848, %v1559
        %v1580 = vmul.f32 %v851, %v1559
        %v1581 = vmul.f32 %v852, %v1559
        %v1582 = vmul.f32 %v855, %v1559
        %v1583 = vmul.f32 %v856, %v1559
        %v1584 = vmul.f32 %v859, %v1559
        %v1585 = vmul.f32 %v860, %v1559
        %v1586 = vmul.f32 %v863, %v1559
        %v1587 = vmul.f32 %v864, %v1559
        %v1588 = vmul.f32 %v867, %v1559
        %v1589 = vmul.f32 %v868, %v1559
        %v1590 = vmul.f32 %v871, %v1559
        %v1591 = vmul.f32 %v872, %v1559
        %v1624 = vrot.slane %v1560, 1
        %v1625 = vrot.slane %v1561, 1
        %v1626 = vsel %vm1043, %v1624, %v1625
        %v1627 = vrot.slane %v1562, 1
        %v1628 = vrot.slane %v1563, 1
        %v1629 = vsel %vm1043, %v1627, %v1628
        %v1630 = vrot.slane %v1564, 1
        %v1631 = vrot.slane %v1565, 1
        %v1632 = vsel %vm1043, %v1630, %v1631
        %v1633 = vrot.slane %v1566, 1
        %v1634 = vrot.slane %v1567, 1
        %v1635 = vsel %vm1043, %v1633, %v1634
        %v1636 = vrot.slane %v1568, 1
        %v1637 = vrot.slane %v1569, 1
        %v1638 = vsel %vm1043, %v1636, %v1637
        %v1639 = vrot.slane %v1570, 1
        %v1640 = vrot.slane %v1571, 1
        %v1641 = vsel %vm1043, %v1639, %v1640
        %v1642 = vrot.slane %v1572, 1
        %v1643 = vrot.slane %v1573, 1
        %v1644 = vsel %vm1043, %v1642, %v1643
        %v1645 = vrot.slane %v1574, 1
        %v1646 = vrot.slane %v1575, 1
        %v1647 = vsel %vm1043, %v1645, %v1646
        %v1648 = vrot.slane %v1576, 1
        %v1649 = vrot.slane %v1577, 1
        %v1650 = vsel %vm1043, %v1648, %v1649
        %v1651 = vrot.slane %v1578, 1
        %v1652 = vrot.slane %v1579, 1
        %v1653 = vsel %vm1043, %v1651, %v1652
        %v1654 = vrot.slane %v1580, 1
        %v1655 = vrot.slane %v1581, 1
        %v1656 = vsel %vm1043, %v1654, %v1655
        %v1657 = vrot.slane %v1582, 1
        %v1658 = vrot.slane %v1583, 1
        %v1659 = vsel %vm1043, %v1657, %v1658
        %v1660 = vrot.slane %v1584, 1
        %v1661 = vrot.slane %v1585, 1
        %v1662 = vsel %vm1043, %v1660, %v1661
        %v1663 = vrot.slane %v1586, 1
        %v1664 = vrot.slane %v1587, 1
        %v1665 = vsel %vm1043, %v1663, %v1664
        %v1666 = vrot.slane %v1588, 1
        %v1667 = vrot.slane %v1589, 1
        %v1668 = vsel %vm1043, %v1666, %v1667
        %v1669 = vrot.slane %v1590, 1
        %v1670 = vrot.slane %v1591, 1
        %v1671 = vsel %vm1043, %v1669, %v1670
        %v1720 = vadd.f32 %v1511, %v1624
        %v1721 = vadd.f32 %v1512, %v1626
        %v1722 = vadd.f32 %v1513, %v1625
        %v1723 = vadd.f32 %v1514, %v1627
        %v1724 = vadd.f32 %v1515, %v1629
        %v1725 = vadd.f32 %v1516, %v1628
        %v1726 = vadd.f32 %v1517, %v1630
        %v1727 = vadd.f32 %v1518, %v1632
        %v1728 = vadd.f32 %v1519, %v1631
        %v1729 = vadd.f32 %v1520, %v1633
        %v1730 = vadd.f32 %v1521, %v1635
        %v1731 = vadd.f32 %v1522, %v1634
        %v1732 = vadd.f32 %v1523, %v1636
        %v1733 = vadd.f32 %v1524, %v1638
        %v1734 = vadd.f32 %v1525, %v1637
        %v1735 = vadd.f32 %v1526, %v1639
        %v1736 = vadd.f32 %v1527, %v1641
        %v1737 = vadd.f32 %v1528, %v1640
        %v1738 = vadd.f32 %v1529, %v1642
        %v1739 = vadd.f32 %v1530, %v1644
        %v1740 = vadd.f32 %v1531, %v1643
        %v1741 = vadd.f32 %v1532, %v1645
        %v1742 = vadd.f32 %v1533, %v1647
        %v1743 = vadd.f32 %v1534, %v1646
        %v1744 = vadd.f32 %v1535, %v1648
        %v1745 = vadd.f32 %v1536, %v1650
        %v1746 = vadd.f32 %v1537, %v1649
        %v1747 = vadd.f32 %v1538, %v1651
        %v1748 = vadd.f32 %v1539, %v1653
        %v1749 = vadd.f32 %v1540, %v1652
        %v1750 = vadd.f32 %v1541, %v1654
        %v1751 = vadd.f32 %v1542, %v1656
        %v1752 = vadd.f32 %v1543, %v1655
        %v1753 = vadd.f32 %v1544, %v1657
        %v1754 = vadd.f32 %v1545, %v1659
        %v1755 = vadd.f32 %v1546, %v1658
        %v1756 = vadd.f32 %v1547, %v1660
        %v1757 = vadd.f32 %v1548, %v1662
        %v1758 = vadd.f32 %v1549, %v1661
        %v1759 = vadd.f32 %v1550, %v1663
        %v1760 = vadd.f32 %v1551, %v1665
        %v1761 = vadd.f32 %v1552, %v1664
        %v1762 = vadd.f32 %v1553, %v1666
        %v1763 = vadd.f32 %v1554, %v1668
        %v1764 = vadd.f32 %v1555, %v1667
        %v1765 = vadd.f32 %v1556, %v1669
        %v1766 = vadd.f32 %v1557, %v1671
        %v1767 = vadd.f32 %v1558, %v1670
        %v1768 = vperm.slane %v879, 2
        %v1769 = vmul.f32 %v811, %v1768
        %v1770 = vmul.f32 %v812, %v1768
        %v1771 = vmul.f32 %v813, %v1768
        %v1772 = vmul.f32 %v815, %v1768
        %v1773 = vmul.f32 %v816, %v1768
        %v1774 = vmul.f32 %v817, %v1768
        %v1775 = vmul.f32 %v819, %v1768
        %v1776 = vmul.f32 %v820, %v1768
        %v1777 = vmul.f32 %v821, %v1768
        %v1778 = vmul.f32 %v823, %v1768
        %v1779 = vmul.f32 %v824, %v1768
        %v1780 = vmul.f32 %v825, %v1768
        %v1781 = vmul.f32 %v827, %v1768
        %v1782 = vmul.f32 %v828, %v1768
        %v1783 = vmul.f32 %v829, %v1768
        %v1784 = vmul.f32 %v831, %v1768
        %v1785 = vmul.f32 %v832, %v1768
        %v1786 = vmul.f32 %v833, %v1768
        %v1787 = vmul.f32 %v835, %v1768
        %v1788 = vmul.f32 %v836, %v1768
        %v1789 = vmul.f32 %v837, %v1768
        %v1790 = vmul.f32 %v839, %v1768
        %v1791 = vmul.f32 %v840, %v1768
        %v1792 = vmul.f32 %v841, %v1768
        %v1793 = vmul.f32 %v843, %v1768
        %v1794 = vmul.f32 %v844, %v1768
        %v1795 = vmul.f32 %v845, %v1768
        %v1796 = vmul.f32 %v847, %v1768
        %v1797 = vmul.f32 %v848, %v1768
        %v1798 = vmul.f32 %v849, %v1768
        %v1799 = vmul.f32 %v851, %v1768
        %v1800 = vmul.f32 %v852, %v1768
        %v1801 = vmul.f32 %v853, %v1768
        %v1802 = vmul.f32 %v855, %v1768
        %v1803 = vmul.f32 %v856, %v1768
        %v1804 = vmul.f32 %v857, %v1768
        %v1805 = vmul.f32 %v859, %v1768
        %v1806 = vmul.f32 %v860, %v1768
        %v1807 = vmul.f32 %v861, %v1768
        %v1808 = vmul.f32 %v863, %v1768
        %v1809 = vmul.f32 %v864, %v1768
        %v1810 = vmul.f32 %v865, %v1768
        %v1811 = vmul.f32 %v867, %v1768
        %v1812 = vmul.f32 %v868, %v1768
        %v1813 = vmul.f32 %v869, %v1768
        %v1814 = vmul.f32 %v871, %v1768
        %v1815 = vmul.f32 %v872, %v1768
        %v1816 = vmul.f32 %v873, %v1768
        %v1865 = vrot.slane %v1769, 2
        %v1866 = vrot.slane %v1770, 2
        %v1867 = vsel %vm1285, %v1865, %v1866
        %v1868 = vrot.slane %v1771, 2
        %v1869 = vsel %vm1285, %v1866, %v1868
        %v1870 = vrot.slane %v1772, 2
        %v1871 = vrot.slane %v1773, 2
        %v1872 = vsel %vm1285, %v1870, %v1871
        %v1873 = vrot.slane %v1774, 2
        %v1874 = vsel %vm1285, %v1871, %v1873
        %v1875 = vrot.slane %v1775, 2
        %v1876 = vrot.slane %v1776, 2
        %v1877 = vsel %vm1285, %v1875, %v1876
        %v1878 = vrot.slane %v1777, 2
        %v1879 = vsel %vm1285, %v1876, %v1878
        %v1880 = vrot.slane %v1778, 2
        %v1881 = vrot.slane %v1779, 2
        %v1882 = vsel %vm1285, %v1880, %v1881
        %v1883 = vrot.slane %v1780, 2
        %v1884 = vsel %vm1285, %v1881, %v1883
        %v1885 = vrot.slane %v1781, 2
        %v1886 = vrot.slane %v1782, 2
        %v1887 = vsel %vm1285, %v1885, %v1886
        %v1888 = vrot.slane %v1783, 2
        %v1889 = vsel %vm1285, %v1886, %v1888
        %v1890 = vrot.slane %v1784, 2
        %v1891 = vrot.slane %v1785, 2
        %v1892 = vsel %vm1285, %v1890, %v1891
        %v1893 = vrot.slane %v1786, 2
        %v1894 = vsel %vm1285, %v1891, %v1893
        %v1895 = vrot.slane %v1787, 2
        %v1896 = vrot.slane %v1788, 2
        %v1897 = vsel %vm1285, %v1895, %v1896
        %v1898 = vrot.slane %v1789, 2
        %v1899 = vsel %vm1285, %v1896, %v1898
        %v1900 = vrot.slane %v1790, 2
        %v1901 = vrot.slane %v1791, 2
        %v1902 = vsel %vm1285, %v1900, %v1901
        %v1903 = vrot.slane %v1792, 2
        %v1904 = vsel %vm1285, %v1901, %v1903
        %v1905 = vrot.slane %v1793, 2
        %v1906 = vrot.slane %v1794, 2
        %v1907 = vsel %vm1285, %v1905, %v1906
        %v1908 = vrot.slane %v1795, 2
        %v1909 = vsel %vm1285, %v1906, %v1908
        %v1910 = vrot.slane %v1796, 2
        %v1911 = vrot.slane %v1797, 2
        %v1912 = vsel %vm1285, %v1910, %v1911
        %v1913 = vrot.slane %v1798, 2
        %v1914 = vsel %vm1285, %v1911, %v1913
        %v1915 = vrot.slane %v1799, 2
        %v1916 = vrot.slane %v1800, 2
        %v1917 = vsel %vm1285, %v1915, %v1916
        %v1918 = vrot.slane %v1801, 2
        %v1919 = vsel %vm1285, %v1916, %v1918
        %v1920 = vrot.slane %v1802, 2
        %v1921 = vrot.slane %v1803, 2
        %v1922 = vsel %vm1285, %v1920, %v1921
        %v1923 = vrot.slane %v1804, 2
        %v1924 = vsel %vm1285, %v1921, %v1923
        %v1925 = vrot.slane %v1805, 2
        %v1926 = vrot.slane %v1806, 2
        %v1927 = vsel %vm1285, %v1925, %v1926
        %v1928 = vrot.slane %v1807, 2
        %v1929 = vsel %vm1285, %v1926, %v1928
        %v1930 = vrot.slane %v1808, 2
        %v1931 = vrot.slane %v1809, 2
        %v1932 = vsel %vm1285, %v1930, %v1931
        %v1933 = vrot.slane %v1810, 2
        %v1934 = vsel %vm1285, %v1931, %v1933
        %v1935 = vrot.slane %v1811, 2
        %v1936 = vrot.slane %v1812, 2
        %v1937 = vsel %vm1285, %v1935, %v1936
        %v1938 = vrot.slane %v1813, 2
        %v1939 = vsel %vm1285, %v1936, %v1938
        %v1940 = vrot.slane %v1814, 2
        %v1941 = vrot.slane %v1815, 2
        %v1942 = vsel %vm1285, %v1940, %v1941
        %v1943 = vrot.slane %v1816, 2
        %v1944 = vsel %vm1285, %v1941, %v1943
        %v1993 = vadd.f32 %v1720, %v1865
        %v1994 = vadd.f32 %v1721, %v1867
        %v1995 = vadd.f32 %v1722, %v1869
        %v1996 = vadd.f32 %v1723, %v1870
        %v1997 = vadd.f32 %v1724, %v1872
        %v1998 = vadd.f32 %v1725, %v1874
        %v1999 = vadd.f32 %v1726, %v1875
        %v2000 = vadd.f32 %v1727, %v1877
        %v2001 = vadd.f32 %v1728, %v1879
        %v2002 = vadd.f32 %v1729, %v1880
        %v2003 = vadd.f32 %v1730, %v1882
        %v2004 = vadd.f32 %v1731, %v1884
        %v2005 = vadd.f32 %v1732, %v1885
        %v2006 = vadd.f32 %v1733, %v1887
        %v2007 = vadd.f32 %v1734, %v1889
        %v2008 = vadd.f32 %v1735, %v1890
        %v2009 = vadd.f32 %v1736, %v1892
        %v2010 = vadd.f32 %v1737, %v1894
        %v2011 = vadd.f32 %v1738, %v1895
        %v2012 = vadd.f32 %v1739, %v1897
        %v2013 = vadd.f32 %v1740, %v1899
        %v2014 = vadd.f32 %v1741, %v1900
        %v2015 = vadd.f32 %v1742, %v1902
        %v2016 = vadd.f32 %v1743, %v1904
        %v2017 = vadd.f32 %v1744, %v1905
        %v2018 = vadd.f32 %v1745, %v1907
        %v2019 = vadd.f32 %v1746, %v1909
        %v2020 = vadd.f32 %v1747, %v1910
        %v2021 = vadd.f32 %v1748, %v1912
        %v2022 = vadd.f32 %v1749, %v1914
        %v2023 = vadd.f32 %v1750, %v1915
        %v2024 = vadd.f32 %v1751, %v1917
        %v2025 = vadd.f32 %v1752, %v1919
        %v2026 = vadd.f32 %v1753, %v1920
        %v2027 = vadd.f32 %v1754, %v1922
        %v2028 = vadd.f32 %v1755, %v1924
        %v2029 = vadd.f32 %v1756, %v1925
        %v2030 = vadd.f32 %v1757, %v1927
        %v2031 = vadd.f32 %v1758, %v1929
        %v2032 = vadd.f32 %v1759, %v1930
        %v2033 = vadd.f32 %v1760, %v1932
        %v2034 = vadd.f32 %v1761, %v1934
        %v2035 = vadd.f32 %v1762, %v1935
        %v2036 = vadd.f32 %v1763, %v1937
        %v2037 = vadd.f32 %v1764, %v1939
        %v2038 = vadd.f32 %v1765, %v1940
        %v2039 = vadd.f32 %v1766, %v1942
        %v2040 = vadd.f32 %v1767, %v1944
        %v2041 = vperm.slane %v880, 0
        %v2042 = vmul.f32 %v814, %v2041
        %v2043 = vmul.f32 %v815, %v2041
        %v2044 = vmul.f32 %v816, %v2041
        %v2045 = vmul.f32 %v818, %v2041
        %v2046 = vmul.f32 %v819, %v2041
        %v2047 = vmul.f32 %v820, %v2041
        %v2048 = vmul.f32 %v822, %v2041
        %v2049 = vmul.f32 %v823, %v2041
        %v2050 = vmul.f32 %v824, %v2041
        %v2051 = vmul.f32 %v826, %v2041
        %v2052 = vmul.f32 %v827, %v2041
        %v2053 = vmul.f32 %v828, %v2041
        %v2054 = vmul.f32 %v830, %v2041
        %v2055 = vmul.f32 %v831, %v2041
        %v2056 = vmul.f32 %v832, %v2041
        %v2057 = vmul.f32 %v834, %v2041
        %v2058 = vmul.f32 %v835, %v2041
        %v2059 = vmul.f32 %v836, %v2041
        %v2060 = vmul.f32 %v838, %v2041
        %v2061 = vmul.f32 %v839, %v2041
        %v2062 = vmul.f32 %v840, %v2041
        %v2063 = vmul.f32 %v842, %v2041
        %v2064 = vmul.f32 %v843, %v2041
        %v2065 = vmul.f32 %v844, %v2041
        %v2066 = vmul.f32 %v846, %v2041
        %v2067 = vmul.f32 %v847, %v2041
        %v2068 = vmul.f32 %v848, %v2041
        %v2069 = vmul.f32 %v850, %v2041
        %v2070 = vmul.f32 %v851, %v2041
        %v2071 = vmul.f32 %v852, %v2041
        %v2072 = vmul.f32 %v854, %v2041
        %v2073 = vmul.f32 %v855, %v2041
        %v2074 = vmul.f32 %v856, %v2041
        %v2075 = vmul.f32 %v858, %v2041
        %v2076 = vmul.f32 %v859, %v2041
        %v2077 = vmul.f32 %v860, %v2041
        %v2078 = vmul.f32 %v862, %v2041
        %v2079 = vmul.f32 %v863, %v2041
        %v2080 = vmul.f32 %v864, %v2041
        %v2081 = vmul.f32 %v866, %v2041
        %v2082 = vmul.f32 %v867, %v2041
        %v2083 = vmul.f32 %v868, %v2041
        %v2084 = vmul.f32 %v870, %v2041
        %v2085 = vmul.f32 %v871, %v2041
        %v2086 = vmul.f32 %v872, %v2041
        %v2087 = vmul.f32 %v874, %v2041
        %v2088 = vmul.f32 %v875, %v2041
        %v2089 = vmul.f32 %v876, %v2041
        %v2090 = vadd.f32 %v1993, %v2042
        %v2091 = vadd.f32 %v1994, %v2043
        %v2092 = vadd.f32 %v1995, %v2044
        %v2093 = vadd.f32 %v1996, %v2045
        %v2094 = vadd.f32 %v1997, %v2046
        %v2095 = vadd.f32 %v1998, %v2047
        %v2096 = vadd.f32 %v1999, %v2048
        %v2097 = vadd.f32 %v2000, %v2049
        %v2098 = vadd.f32 %v2001, %v2050
        %v2099 = vadd.f32 %v2002, %v2051
        %v2100 = vadd.f32 %v2003, %v2052
        %v2101 = vadd.f32 %v2004, %v2053
        %v2102 = vadd.f32 %v2005, %v2054
        %v2103 = vadd.f32 %v2006, %v2055
        %v2104 = vadd.f32 %v2007, %v2056
        %v2105 = vadd.f32 %v2008, %v2057
        %v2106 = vadd.f32 %v2009, %v2058
        %v2107 = vadd.f32 %v2010, %v2059
        %v2108 = vadd.f32 %v2011, %v2060
        %v2109 = vadd.f32 %v2012, %v2061
        %v2110 = vadd.f32 %v2013, %v2062
        %v2111 = vadd.f32 %v2014, %v2063
        %v2112 = vadd.f32 %v2015, %v2064
        %v2113 = vadd.f32 %v2016, %v2065
        %v2114 = vadd.f32 %v2017, %v2066
        %v2115 = vadd.f32 %v2018, %v2067
        %v2116 = vadd.f32 %v2019, %v2068
        %v2117 = vadd.f32 %v2020, %v2069
        %v2118 = vadd.f32 %v2021, %v2070
        %v2119 = vadd.f32 %v2022, %v2071
        %v2120 = vadd.f32 %v2023, %v2072
        %v2121 = vadd.f32 %v2024, %v2073
        %v2122 = vadd.f32 %v2025, %v2074
        %v2123 = vadd.f32 %v2026, %v2075
        %v2124 = vadd.f32 %v2027, %v2076
        %v2125 = vadd.f32 %v2028, %v2077
        %v2126 = vadd.f32 %v2029, %v2078
        %v2127 = vadd.f32 %v2030, %v2079
        %v2128 = vadd.f32 %v2031, %v2080
        %v2129 = vadd.f32 %v2032, %v2081
        %v2130 = vadd.f32 %v2033, %v2082
        %v2131 = vadd.f32 %v2034, %v2083
        %v2132 = vadd.f32 %v2035, %v2084
        %v2133 = vadd.f32 %v2036, %v2085
        %v2134 = vadd.f32 %v2037, %v2086
        %v2135 = vadd.f32 %v2038, %v2087
        %v2136 = vadd.f32 %v2039, %v2088
        %v2137 = vadd.f32 %v2040, %v2089
        %v2138 = vperm.slane %v880, 1
        %v2139 = vmul.f32 %v815, %v2138
        %v2140 = vmul.f32 %v816, %v2138
        %v2141 = vmul.f32 %v819, %v2138
        %v2142 = vmul.f32 %v820, %v2138
        %v2143 = vmul.f32 %v823, %v2138
        %v2144 = vmul.f32 %v824, %v2138
        %v2145 = vmul.f32 %v827, %v2138
        %v2146 = vmul.f32 %v828, %v2138
        %v2147 = vmul.f32 %v831, %v2138
        %v2148 = vmul.f32 %v832, %v2138
        %v2149 = vmul.f32 %v835, %v2138
        %v2150 = vmul.f32 %v836, %v2138
        %v2151 = vmul.f32 %v839, %v2138
        %v2152 = vmul.f32 %v840, %v2138
        %v2153 = vmul.f32 %v843, %v2138
        %v2154 = vmul.f32 %v844, %v2138
        %v2155 = vmul.f32 %v847, %v2138
        %v2156 = vmul.f32 %v848, %v2138
        %v2157 = vmul.f32 %v851, %v2138
        %v2158 = vmul.f32 %v852, %v2138
        %v2159 = vmul.f32 %v855, %v2138
        %v2160 = vmul.f32 %v856, %v2138
        %v2161 = vmul.f32 %v859, %v2138
        %v2162 = vmul.f32 %v860, %v2138
        %v2163 = vmul.f32 %v863, %v2138
        %v2164 = vmul.f32 %v864, %v2138
        %v2165 = vmul.f32 %v867, %v2138
        %v2166 = vmul.f32 %v868, %v2138
        %v2167 = vmul.f32 %v871, %v2138
        %v2168 = vmul.f32 %v872, %v2138
        %v2169 = vmul.f32 %v875, %v2138
        %v2170 = vmul.f32 %v876, %v2138
        %v2203 = vrot.slane %v2139, 1
        %v2204 = vrot.slane %v2140, 1
        %v2205 = vsel %vm1043, %v2203, %v2204
        %v2206 = vrot.slane %v2141, 1
        %v2207 = vrot.slane %v2142, 1
        %v2208 = vsel %vm1043, %v2206, %v2207
        %v2209 = vrot.slane %v2143, 1
        %v2210 = vrot.slane %v2144, 1
        %v2211 = vsel %vm1043, %v2209, %v2210
        %v2212 = vrot.slane %v2145, 1
        %v2213 = vrot.slane %v2146, 1
        %v2214 = vsel %vm1043, %v2212, %v2213
        %v2215 = vrot.slane %v2147, 1
        %v2216 = vrot.slane %v2148, 1
        %v2217 = vsel %vm1043, %v2215, %v2216
        %v2218 = vrot.slane %v2149, 1
        %v2219 = vrot.slane %v2150, 1
        %v2220 = vsel %vm1043, %v2218, %v2219
        %v2221 = vrot.slane %v2151, 1
        %v2222 = vrot.slane %v2152, 1
        %v2223 = vsel %vm1043, %v2221, %v2222
        %v2224 = vrot.slane %v2153, 1
        %v2225 = vrot.slane %v2154, 1
        %v2226 = vsel %vm1043, %v2224, %v2225
        %v2227 = vrot.slane %v2155, 1
        %v2228 = vrot.slane %v2156, 1
        %v2229 = vsel %vm1043, %v2227, %v2228
        %v2230 = vrot.slane %v2157, 1
        %v2231 = vrot.slane %v2158, 1
        %v2232 = vsel %vm1043, %v2230, %v2231
        %v2233 = vrot.slane %v2159, 1
        %v2234 = vrot.slane %v2160, 1
        %v2235 = vsel %vm1043, %v2233, %v2234
        %v2236 = vrot.slane %v2161, 1
        %v2237 = vrot.slane %v2162, 1
        %v2238 = vsel %vm1043, %v2236, %v2237
        %v2239 = vrot.slane %v2163, 1
        %v2240 = vrot.slane %v2164, 1
        %v2241 = vsel %vm1043, %v2239, %v2240
        %v2242 = vrot.slane %v2165, 1
        %v2243 = vrot.slane %v2166, 1
        %v2244 = vsel %vm1043, %v2242, %v2243
        %v2245 = vrot.slane %v2167, 1
        %v2246 = vrot.slane %v2168, 1
        %v2247 = vsel %vm1043, %v2245, %v2246
        %v2248 = vrot.slane %v2169, 1
        %v2249 = vrot.slane %v2170, 1
        %v2250 = vsel %vm1043, %v2248, %v2249
        %v2299 = vadd.f32 %v2090, %v2203
        %v2300 = vadd.f32 %v2091, %v2205
        %v2301 = vadd.f32 %v2092, %v2204
        %v2302 = vadd.f32 %v2093, %v2206
        %v2303 = vadd.f32 %v2094, %v2208
        %v2304 = vadd.f32 %v2095, %v2207
        %v2305 = vadd.f32 %v2096, %v2209
        %v2306 = vadd.f32 %v2097, %v2211
        %v2307 = vadd.f32 %v2098, %v2210
        %v2308 = vadd.f32 %v2099, %v2212
        %v2309 = vadd.f32 %v2100, %v2214
        %v2310 = vadd.f32 %v2101, %v2213
        %v2311 = vadd.f32 %v2102, %v2215
        %v2312 = vadd.f32 %v2103, %v2217
        %v2313 = vadd.f32 %v2104, %v2216
        %v2314 = vadd.f32 %v2105, %v2218
        %v2315 = vadd.f32 %v2106, %v2220
        %v2316 = vadd.f32 %v2107, %v2219
        %v2317 = vadd.f32 %v2108, %v2221
        %v2318 = vadd.f32 %v2109, %v2223
        %v2319 = vadd.f32 %v2110, %v2222
        %v2320 = vadd.f32 %v2111, %v2224
        %v2321 = vadd.f32 %v2112, %v2226
        %v2322 = vadd.f32 %v2113, %v2225
        %v2323 = vadd.f32 %v2114, %v2227
        %v2324 = vadd.f32 %v2115, %v2229
        %v2325 = vadd.f32 %v2116, %v2228
        %v2326 = vadd.f32 %v2117, %v2230
        %v2327 = vadd.f32 %v2118, %v2232
        %v2328 = vadd.f32 %v2119, %v2231
        %v2329 = vadd.f32 %v2120, %v2233
        %v2330 = vadd.f32 %v2121, %v2235
        %v2331 = vadd.f32 %v2122, %v2234
        %v2332 = vadd.f32 %v2123, %v2236
        %v2333 = vadd.f32 %v2124, %v2238
        %v2334 = vadd.f32 %v2125, %v2237
        %v2335 = vadd.f32 %v2126, %v2239
        %v2336 = vadd.f32 %v2127, %v2241
        %v2337 = vadd.f32 %v2128, %v2240
        %v2338 = vadd.f32 %v2129, %v2242
        %v2339 = vadd.f32 %v2130, %v2244
        %v2340 = vadd.f32 %v2131, %v2243
        %v2341 = vadd.f32 %v2132, %v2245
        %v2342 = vadd.f32 %v2133, %v2247
        %v2343 = vadd.f32 %v2134, %v2246
        %v2344 = vadd.f32 %v2135, %v2248
        %v2345 = vadd.f32 %v2136, %v2250
        %v2346 = vadd.f32 %v2137, %v2249
        %v2347 = vperm.slane %v880, 2
        %v2348 = vmul.f32 %v815, %v2347
        %v2349 = vmul.f32 %v816, %v2347
        %v2350 = vmul.f32 %v817, %v2347
        %v2351 = vmul.f32 %v819, %v2347
        %v2352 = vmul.f32 %v820, %v2347
        %v2353 = vmul.f32 %v821, %v2347
        %v2354 = vmul.f32 %v823, %v2347
        %v2355 = vmul.f32 %v824, %v2347
        %v2356 = vmul.f32 %v825, %v2347
        %v2357 = vmul.f32 %v827, %v2347
        %v2358 = vmul.f32 %v828, %v2347
        %v2359 = vmul.f32 %v829, %v2347
        %v2360 = vmul.f32 %v831, %v2347
        %v2361 = vmul.f32 %v832, %v2347
        %v2362 = vmul.f32 %v833, %v2347
        %v2363 = vmul.f32 %v835, %v2347
        %v2364 = vmul.f32 %v836, %v2347
        %v2365 = vmul.f32 %v837, %v2347
        %v2366 = vmul.f32 %v839, %v2347
        %v2367 = vmul.f32 %v840, %v2347
        %v2368 = vmul.f32 %v841, %v2347
        %v2369 = vmul.f32 %v843, %v2347
        %v2370 = vmul.f32 %v844, %v2347
        %v2371 = vmul.f32 %v845, %v2347
        %v2372 = vmul.f32 %v847, %v2347
        %v2373 = vmul.f32 %v848, %v2347
        %v2374 = vmul.f32 %v849, %v2347
        %v2375 = vmul.f32 %v851, %v2347
        %v2376 = vmul.f32 %v852, %v2347
        %v2377 = vmul.f32 %v853, %v2347
        %v2378 = vmul.f32 %v855, %v2347
        %v2379 = vmul.f32 %v856, %v2347
        %v2380 = vmul.f32 %v857, %v2347
        %v2381 = vmul.f32 %v859, %v2347
        %v2382 = vmul.f32 %v860, %v2347
        %v2383 = vmul.f32 %v861, %v2347
        %v2384 = vmul.f32 %v863, %v2347
        %v2385 = vmul.f32 %v864, %v2347
        %v2386 = vmul.f32 %v865, %v2347
        %v2387 = vmul.f32 %v867, %v2347
        %v2388 = vmul.f32 %v868, %v2347
        %v2389 = vmul.f32 %v869, %v2347
        %v2390 = vmul.f32 %v871, %v2347
        %v2391 = vmul.f32 %v872, %v2347
        %v2392 = vmul.f32 %v873, %v2347
        %v2393 = vmul.f32 %v875, %v2347
        %v2394 = vmul.f32 %v876, %v2347
        %v2395 = vmul.f32 %v877, %v2347
        %v2444 = vrot.slane %v2348, 2
        %v2445 = vrot.slane %v2349, 2
        %v2446 = vsel %vm1285, %v2444, %v2445
        %v2447 = vrot.slane %v2350, 2
        %v2448 = vsel %vm1285, %v2445, %v2447
        %v2449 = vrot.slane %v2351, 2
        %v2450 = vrot.slane %v2352, 2
        %v2451 = vsel %vm1285, %v2449, %v2450
        %v2452 = vrot.slane %v2353, 2
        %v2453 = vsel %vm1285, %v2450, %v2452
        %v2454 = vrot.slane %v2354, 2
        %v2455 = vrot.slane %v2355, 2
        %v2456 = vsel %vm1285, %v2454, %v2455
        %v2457 = vrot.slane %v2356, 2
        %v2458 = vsel %vm1285, %v2455, %v2457
        %v2459 = vrot.slane %v2357, 2
        %v2460 = vrot.slane %v2358, 2
        %v2461 = vsel %vm1285, %v2459, %v2460
        %v2462 = vrot.slane %v2359, 2
        %v2463 = vsel %vm1285, %v2460, %v2462
        %v2464 = vrot.slane %v2360, 2
        %v2465 = vrot.slane %v2361, 2
        %v2466 = vsel %vm1285, %v2464, %v2465
        %v2467 = vrot.slane %v2362, 2
        %v2468 = vsel %vm1285, %v2465, %v2467
        %v2469 = vrot.slane %v2363, 2
        %v2470 = vrot.slane %v2364, 2
        %v2471 = vsel %vm1285, %v2469, %v2470
        %v2472 = vrot.slane %v2365, 2
        %v2473 = vsel %vm1285, %v2470, %v2472
        %v2474 = vrot.slane %v2366, 2
        %v2475 = vrot.slane %v2367, 2
        %v2476 = vsel %vm1285, %v2474, %v2475
        %v2477 = vrot.slane %v2368, 2
        %v2478 = vsel %vm1285, %v2475, %v2477
        %v2479 = vrot.slane %v2369, 2
        %v2480 = vrot.slane %v2370, 2
        %v2481 = vsel %vm1285, %v2479, %v2480
        %v2482 = vrot.slane %v2371, 2
        %v2483 = vsel %vm1285, %v2480, %v2482
        %v2484 = vrot.slane %v2372, 2
        %v2485 = vrot.slane %v2373, 2
        %v2486 = vsel %vm1285, %v2484, %v2485
        %v2487 = vrot.slane %v2374, 2
        %v2488 = vsel %vm1285, %v2485, %v2487
        %v2489 = vrot.slane %v2375, 2
        %v2490 = vrot.slane %v2376, 2
        %v2491 = vsel %vm1285, %v2489, %v2490
        %v2492 = vrot.slane %v2377, 2
        %v2493 = vsel %vm1285, %v2490, %v2492
        %v2494 = vrot.slane %v2378, 2
        %v2495 = vrot.slane %v2379, 2
        %v2496 = vsel %vm1285, %v2494, %v2495
        %v2497 = vrot.slane %v2380, 2
        %v2498 = vsel %vm1285, %v2495, %v2497
        %v2499 = vrot.slane %v2381, 2
        %v2500 = vrot.slane %v2382, 2
        %v2501 = vsel %vm1285, %v2499, %v2500
        %v2502 = vrot.slane %v2383, 2
        %v2503 = vsel %vm1285, %v2500, %v2502
        %v2504 = vrot.slane %v2384, 2
        %v2505 = vrot.slane %v2385, 2
        %v2506 = vsel %vm1285, %v2504, %v2505
        %v2507 = vrot.slane %v2386, 2
        %v2508 = vsel %vm1285, %v2505, %v2507
        %v2509 = vrot.slane %v2387, 2
        %v2510 = vrot.slane %v2388, 2
        %v2511 = vsel %vm1285, %v2509, %v2510
        %v2512 = vrot.slane %v2389, 2
        %v2513 = vsel %vm1285, %v2510, %v2512
        %v2514 = vrot.slane %v2390, 2
        %v2515 = vrot.slane %v2391, 2
        %v2516 = vsel %vm1285, %v2514, %v2515
        %v2517 = vrot.slane %v2392, 2
        %v2518 = vsel %vm1285, %v2515, %v2517
        %v2519 = vrot.slane %v2393, 2
        %v2520 = vrot.slane %v2394, 2
        %v2521 = vsel %vm1285, %v2519, %v2520
        %v2522 = vrot.slane %v2395, 2
        %v2523 = vsel %vm1285, %v2520, %v2522
        %v2572 = vadd.f32 %v2299, %v2444
        %v2573 = vadd.f32 %v2300, %v2446
        %v2574 = vadd.f32 %v2301, %v2448
        %v2575 = vadd.f32 %v2302, %v2449
        %v2576 = vadd.f32 %v2303, %v2451
        %v2577 = vadd.f32 %v2304, %v2453
        %v2578 = vadd.f32 %v2305, %v2454
        %v2579 = vadd.f32 %v2306, %v2456
        %v2580 = vadd.f32 %v2307, %v2458
        %v2581 = vadd.f32 %v2308, %v2459
        %v2582 = vadd.f32 %v2309, %v2461
        %v2583 = vadd.f32 %v2310, %v2463
        %v2584 = vadd.f32 %v2311, %v2464
        %v2585 = vadd.f32 %v2312, %v2466
        %v2586 = vadd.f32 %v2313, %v2468
        %v2587 = vadd.f32 %v2314, %v2469
        %v2588 = vadd.f32 %v2315, %v2471
        %v2589 = vadd.f32 %v2316, %v2473
        %v2590 = vadd.f32 %v2317, %v2474
        %v2591 = vadd.f32 %v2318, %v2476
        %v2592 = vadd.f32 %v2319, %v2478
        %v2593 = vadd.f32 %v2320, %v2479
        %v2594 = vadd.f32 %v2321, %v2481
        %v2595 = vadd.f32 %v2322, %v2483
        %v2596 = vadd.f32 %v2323, %v2484
        %v2597 = vadd.f32 %v2324, %v2486
        %v2598 = vadd.f32 %v2325, %v2488
        %v2599 = vadd.f32 %v2326, %v2489
        %v2600 = vadd.f32 %v2327, %v2491
        %v2601 = vadd.f32 %v2328, %v2493
        %v2602 = vadd.f32 %v2329, %v2494
        %v2603 = vadd.f32 %v2330, %v2496
        %v2604 = vadd.f32 %v2331, %v2498
        %v2605 = vadd.f32 %v2332, %v2499
        %v2606 = vadd.f32 %v2333, %v2501
        %v2607 = vadd.f32 %v2334, %v2503
        %v2608 = vadd.f32 %v2335, %v2504
        %v2609 = vadd.f32 %v2336, %v2506
        %v2610 = vadd.f32 %v2337, %v2508
        %v2611 = vadd.f32 %v2338, %v2509
        %v2612 = vadd.f32 %v2339, %v2511
        %v2613 = vadd.f32 %v2340, %v2513
        %v2614 = vadd.f32 %v2341, %v2514
        %v2615 = vadd.f32 %v2342, %v2516
        %v2616 = vadd.f32 %v2343, %v2518
        %v2617 = vadd.f32 %v2344, %v2519
        %v2618 = vadd.f32 %v2345, %v2521
        %v2619 = vadd.f32 %v2346, %v2523
        %v2620 = vld [vmem:[%s4] sm:$0x1]
        %v2622 = vperm.slane %v2620, 0
        %v2624 = vadd.f32 %v2572, %v2622
        %v2625 = vadd.f32 %v2573, %v2622
        %v2626 = vadd.f32 %v2574, %v2622
        %v2627 = vadd.f32 %v2575, %v2622
        %v2628 = vadd.f32 %v2576, %v2622
        %v2629 = vadd.f32 %v2577, %v2622
        %v2630 = vadd.f32 %v2578, %v2622
        %v2631 = vadd.f32 %v2579, %v2622
        %v2632 = vadd.f32 %v2580, %v2622
        %v2633 = vadd.f32 %v2581, %v2622
        %v2634 = vadd.f32 %v2582, %v2622
        %v2635 = vadd.f32 %v2583, %v2622
        %v2636 = vadd.f32 %v2584, %v2622
        %v2637 = vadd.f32 %v2585, %v2622
        %v2638 = vadd.f32 %v2586, %v2622
        %v2639 = vadd.f32 %v2587, %v2622
        %v2640 = vadd.f32 %v2588, %v2622
        %v2641 = vadd.f32 %v2589, %v2622
        %v2642 = vadd.f32 %v2590, %v2622
        %v2643 = vadd.f32 %v2591, %v2622
        %v2644 = vadd.f32 %v2592, %v2622
        %v2645 = vadd.f32 %v2593, %v2622
        %v2646 = vadd.f32 %v2594, %v2622
        %v2647 = vadd.f32 %v2595, %v2622
        %v2648 = vadd.f32 %v2596, %v2622
        %v2649 = vadd.f32 %v2597, %v2622
        %v2650 = vadd.f32 %v2598, %v2622
        %v2651 = vadd.f32 %v2599, %v2622
        %v2652 = vadd.f32 %v2600, %v2622
        %v2653 = vadd.f32 %v2601, %v2622
        %v2654 = vadd.f32 %v2602, %v2622
        %v2655 = vadd.f32 %v2603, %v2622
        %v2656 = vadd.f32 %v2604, %v2622
        %v2657 = vadd.f32 %v2605, %v2622
        %v2658 = vadd.f32 %v2606, %v2622
        %v2659 = vadd.f32 %v2607, %v2622
        %v2660 = vadd.f32 %v2608, %v2622
        %v2661 = vadd.f32 %v2609, %v2622
        %v2662 = vadd.f32 %v2610, %v2622
        %v2663 = vadd.f32 %v2611, %v2622
        %v2664 = vadd.f32 %v2612, %v2622
        %v2665 = vadd.f32 %v2613, %v2622
        %v2666 = vadd.f32 %v2614, %v2622
        %v2667 = vadd.f32 %v2615, %v2622
        %v2668 = vadd.f32 %v2616, %v2622
        %v2669 = vadd.f32 %v2617, %v2622
        %v2670 = vadd.f32 %v2618, %v2622
        %v2671 = vadd.f32 %v2619, %v2622
        %v2672 = vmul.f32 %v2624, 0.5
        %v2673 = vmul.f32 %v2625, 0.5
        %v2674 = vmul.f32 %v2626, 0.5
        %v2675 = vmul.f32 %v2627, 0.5
        %v2676 = vmul.f32 %v2628, 0.5
        %v2677 = vmul.f32 %v2629, 0.5
        %v2678 = vmul.f32 %v2630, 0.5
        %v2679 = vmul.f32 %v2631, 0.5
        %v2680 = vmul.f32 %v2632, 0.5
        %v2681 = vmul.f32 %v2633, 0.5
        %v2682 = vmul.f32 %v2634, 0.5
        %v2683 = vmul.f32 %v2635, 0.5
        %v2684 = vmul.f32 %v2636, 0.5
        %v2685 = vmul.f32 %v2637, 0.5
        %v2686 = vmul.f32 %v2638, 0.5
        %v2687 = vmul.f32 %v2639, 0.5
        %v2688 = vmul.f32 %v2640, 0.5
        %v2689 = vmul.f32 %v2641, 0.5
        %v2690 = vmul.f32 %v2642, 0.5
        %v2691 = vmul.f32 %v2643, 0.5
        %v2692 = vmul.f32 %v2644, 0.5
        %v2693 = vmul.f32 %v2645, 0.5
        %v2694 = vmul.f32 %v2646, 0.5
        %v2695 = vmul.f32 %v2647, 0.5
        %v2696 = vmul.f32 %v2648, 0.5
        %v2697 = vmul.f32 %v2649, 0.5
        %v2698 = vmul.f32 %v2650, 0.5
        %v2699 = vmul.f32 %v2651, 0.5
        %v2700 = vmul.f32 %v2652, 0.5
        %v2701 = vmul.f32 %v2653, 0.5
        %v2702 = vmul.f32 %v2654, 0.5
        %v2703 = vmul.f32 %v2655, 0.5
        %v2704 = vmul.f32 %v2656, 0.5
        %v2705 = vmul.f32 %v2657, 0.5
        %v2706 = vmul.f32 %v2658, 0.5
        %v2707 = vmul.f32 %v2659, 0.5
        %v2708 = vmul.f32 %v2660, 0.5
        %v2709 = vmul.f32 %v2661, 0.5
        %v2710 = vmul.f32 %v2662, 0.5
        %v2711 = vmul.f32 %v2663, 0.5
        %v2712 = vmul.f32 %v2664, 0.5
        %v2713 = vmul.f32 %v2665, 0.5
        %v2714 = vmul.f32 %v2666, 0.5
        %v2715 = vmul.f32 %v2667, 0.5
        %v2716 = vmul.f32 %v2668, 0.5
        %v2717 = vmul.f32 %v2669, 0.5
        %v2718 = vmul.f32 %v2670, 0.5
        %v2719 = vmul.f32 %v2671, 0.5
        %v2720 = vtanh.pop %v2672
        %v2721 = vtanh.pop %v2673
        %v2722 = vtanh.pop %v2674
        %v2723 = vtanh.pop %v2675
        %v2724 = vtanh.pop %v2676
        %v2725 = vtanh.pop %v2677
        %v2726 = vtanh.pop %v2678
        %v2727 = vtanh.pop %v2679
        %v2728 = vtanh.pop %v2680
        %v2729 = vtanh.pop %v2681
        %v2730 = vtanh.pop %v2682
        %v2731 = vtanh.pop %v2683
        %v2732 = vtanh.pop %v2684
        %v2733 = vtanh.pop %v2685
        %v2734 = vtanh.pop %v2686
        %v2735 = vtanh.pop %v2687
        %v2736 = vtanh.pop %v2688
        %v2737 = vtanh.pop %v2689
        %v2738 = vtanh.pop %v2690
        %v2739 = vtanh.pop %v2691
        %v2740 = vtanh.pop %v2692
        %v2741 = vtanh.pop %v2693
        %v2742 = vtanh.pop %v2694
        %v2743 = vtanh.pop %v2695
        %v2744 = vtanh.pop %v2696
        %v2745 = vtanh.pop %v2697
        %v2746 = vtanh.pop %v2698
        %v2747 = vtanh.pop %v2699
        %v2748 = vtanh.pop %v2700
        %v2749 = vtanh.pop %v2701
        %v2750 = vtanh.pop %v2702
        %v2751 = vtanh.pop %v2703
        %v2752 = vtanh.pop %v2704
        %v2753 = vtanh.pop %v2705
        %v2754 = vtanh.pop %v2706
        %v2755 = vtanh.pop %v2707
        %v2756 = vtanh.pop %v2708
        %v2757 = vtanh.pop %v2709
        %v2758 = vtanh.pop %v2710
        %v2759 = vtanh.pop %v2711
        %v2760 = vtanh.pop %v2712
        %v2761 = vtanh.pop %v2713
        %v2762 = vtanh.pop %v2714
        %v2763 = vtanh.pop %v2715
        %v2764 = vtanh.pop %v2716
        %v2765 = vtanh.pop %v2717
        %v2766 = vtanh.pop %v2718
        %v2767 = vtanh.pop %v2719
        %v2768 = vadd.f32 %v2720, 1.0
        %v2769 = vadd.f32 %v2721, 1.0
        %v2770 = vadd.f32 %v2722, 1.0
        %v2771 = vadd.f32 %v2723, 1.0
        %v2772 = vadd.f32 %v2724, 1.0
        %v2773 = vadd.f32 %v2725, 1.0
        %v2774 = vadd.f32 %v2726, 1.0
        %v2775 = vadd.f32 %v2727, 1.0
        %v2776 = vadd.f32 %v2728, 1.0
        %v2777 = vadd.f32 %v2729, 1.0
        %v2778 = vadd.f32 %v2730, 1.0
        %v2779 = vadd.f32 %v2731, 1.0
        %v2780 = vadd.f32 %v2732, 1.0
        %v2781 = vadd.f32 %v2733, 1.0
        %v2782 = vadd.f32 %v2734, 1.0
        %v2783 = vadd.f32 %v2735, 1.0
        %v2784 = vadd.f32 %v2736, 1.0
        %v2785 = vadd.f32 %v2737, 1.0
        %v2786 = vadd.f32 %v2738, 1.0
        %v2787 = vadd.f32 %v2739, 1.0
        %v2788 = vadd.f32 %v2740, 1.0
        %v2789 = vadd.f32 %v2741, 1.0
        %v2790 = vadd.f32 %v2742, 1.0
        %v2791 = vadd.f32 %v2743, 1.0
        %v2792 = vadd.f32 %v2744, 1.0
        %v2793 = vadd.f32 %v2745, 1.0
        %v2794 = vadd.f32 %v2746, 1.0
        %v2795 = vadd.f32 %v2747, 1.0
        %v2796 = vadd.f32 %v2748, 1.0
        %v2797 = vadd.f32 %v2749, 1.0
        %v2798 = vadd.f32 %v2750, 1.0
        %v2799 = vadd.f32 %v2751, 1.0
        %v2800 = vadd.f32 %v2752, 1.0
        %v2801 = vadd.f32 %v2753, 1.0
        %v2802 = vadd.f32 %v2754, 1.0
        %v2803 = vadd.f32 %v2755, 1.0
        %v2804 = vadd.f32 %v2756, 1.0
        %v2805 = vadd.f32 %v2757, 1.0
        %v2806 = vadd.f32 %v2758, 1.0
        %v2807 = vadd.f32 %v2759, 1.0
        %v2808 = vadd.f32 %v2760, 1.0
        %v2809 = vadd.f32 %v2761, 1.0
        %v2810 = vadd.f32 %v2762, 1.0
        %v2811 = vadd.f32 %v2763, 1.0
        %v2812 = vadd.f32 %v2764, 1.0
        %v2813 = vadd.f32 %v2765, 1.0
        %v2814 = vadd.f32 %v2766, 1.0
        %v2815 = vadd.f32 %v2767, 1.0
        %v2816 = vmul.f32 %v2768, 0.5
        %v2817 = vmul.f32 %v2769, 0.5
        %v2818 = vmul.f32 %v2770, 0.5
        %v2819 = vmul.f32 %v2771, 0.5
        %v2820 = vmul.f32 %v2772, 0.5
        %v2821 = vmul.f32 %v2773, 0.5
        %v2822 = vmul.f32 %v2774, 0.5
        %v2823 = vmul.f32 %v2775, 0.5
        %v2824 = vmul.f32 %v2776, 0.5
        %v2825 = vmul.f32 %v2777, 0.5
        %v2826 = vmul.f32 %v2778, 0.5
        %v2827 = vmul.f32 %v2779, 0.5
        %v2828 = vmul.f32 %v2780, 0.5
        %v2829 = vmul.f32 %v2781, 0.5
        %v2830 = vmul.f32 %v2782, 0.5
        %v2831 = vmul.f32 %v2783, 0.5
        %v2832 = vmul.f32 %v2784, 0.5
        %v2833 = vmul.f32 %v2785, 0.5
        %v2834 = vmul.f32 %v2786, 0.5
        %v2835 = vmul.f32 %v2787, 0.5
        %v2836 = vmul.f32 %v2788, 0.5
        %v2837 = vmul.f32 %v2789, 0.5
        %v2838 = vmul.f32 %v2790, 0.5
        %v2839 = vmul.f32 %v2791, 0.5
        %v2840 = vmul.f32 %v2792, 0.5
        %v2841 = vmul.f32 %v2793, 0.5
        %v2842 = vmul.f32 %v2794, 0.5
        %v2843 = vmul.f32 %v2795, 0.5
        %v2844 = vmul.f32 %v2796, 0.5
        %v2845 = vmul.f32 %v2797, 0.5
        %v2846 = vmul.f32 %v2798, 0.5
        %v2847 = vmul.f32 %v2799, 0.5
        %v2848 = vmul.f32 %v2800, 0.5
        %v2849 = vmul.f32 %v2801, 0.5
        %v2850 = vmul.f32 %v2802, 0.5
        %v2851 = vmul.f32 %v2803, 0.5
        %v2852 = vmul.f32 %v2804, 0.5
        %v2853 = vmul.f32 %v2805, 0.5
        %v2854 = vmul.f32 %v2806, 0.5
        %v2855 = vmul.f32 %v2807, 0.5
        %v2856 = vmul.f32 %v2808, 0.5
        %v2857 = vmul.f32 %v2809, 0.5
        %v2858 = vmul.f32 %v2810, 0.5
        %v2859 = vmul.f32 %v2811, 0.5
        %v2860 = vmul.f32 %v2812, 0.5
        %v2861 = vmul.f32 %v2813, 0.5
        %v2862 = vmul.f32 %v2814, 0.5
        %v2863 = vmul.f32 %v2815, 0.5
        %v2864 = vmul.f32 %v2624, %v2816
        %v2865 = vmul.f32 %v2625, %v2817
        %v2866 = vmul.f32 %v2626, %v2818
        %v2867 = vmul.f32 %v2627, %v2819
        %v2868 = vmul.f32 %v2628, %v2820
        %v2869 = vmul.f32 %v2629, %v2821
        %v2870 = vmul.f32 %v2630, %v2822
        %v2871 = vmul.f32 %v2631, %v2823
        %v2872 = vmul.f32 %v2632, %v2824
        %v2873 = vmul.f32 %v2633, %v2825
        %v2874 = vmul.f32 %v2634, %v2826
        %v2875 = vmul.f32 %v2635, %v2827
        %v2876 = vmul.f32 %v2636, %v2828
        %v2877 = vmul.f32 %v2637, %v2829
        %v2878 = vmul.f32 %v2638, %v2830
        %v2879 = vmul.f32 %v2639, %v2831
        %v2880 = vmul.f32 %v2640, %v2832
        %v2881 = vmul.f32 %v2641, %v2833
        %v2882 = vmul.f32 %v2642, %v2834
        %v2883 = vmul.f32 %v2643, %v2835
        %v2884 = vmul.f32 %v2644, %v2836
        %v2885 = vmul.f32 %v2645, %v2837
        %v2886 = vmul.f32 %v2646, %v2838
        %v2887 = vmul.f32 %v2647, %v2839
        %v2888 = vmul.f32 %v2648, %v2840
        %v2889 = vmul.f32 %v2649, %v2841
        %v2890 = vmul.f32 %v2650, %v2842
        %v2891 = vmul.f32 %v2651, %v2843
        %v2892 = vmul.f32 %v2652, %v2844
        %v2893 = vmul.f32 %v2653, %v2845
        %v2894 = vmul.f32 %v2654, %v2846
        %v2895 = vmul.f32 %v2655, %v2847
        %v2896 = vmul.f32 %v2656, %v2848
        %v2897 = vmul.f32 %v2657, %v2849
        %v2898 = vmul.f32 %v2658, %v2850
        %v2899 = vmul.f32 %v2659, %v2851
        %v2900 = vmul.f32 %v2660, %v2852
        %v2901 = vmul.f32 %v2661, %v2853
        %v2902 = vmul.f32 %v2662, %v2854
        %v2903 = vmul.f32 %v2663, %v2855
        %v2904 = vmul.f32 %v2664, %v2856
        %v2905 = vmul.f32 %v2665, %v2857
        %v2906 = vmul.f32 %v2666, %v2858
        %v2907 = vmul.f32 %v2667, %v2859
        %v2908 = vmul.f32 %v2668, %v2860
        %v2909 = vmul.f32 %v2669, %v2861
        %v2910 = vmul.f32 %v2670, %v2862
        %v2911 = vmul.f32 %v2671, %v2863
        %v2912 = vpack.c.bf16 %v2864, %v2864
        %v2913 = vpack.c.bf16 %v2865, %v2865
        %v2914 = vpack.c.bf16 %v2866, %v2866
        %v2915 = vpack.c.bf16 %v2867, %v2867
        %v2916 = vpack.c.bf16 %v2868, %v2868
        %v2917 = vpack.c.bf16 %v2869, %v2869
        %v2918 = vpack.c.bf16 %v2870, %v2870
        %v2919 = vpack.c.bf16 %v2871, %v2871
        %v2920 = vpack.c.bf16 %v2872, %v2872
        %v2921 = vpack.c.bf16 %v2873, %v2873
        %v2922 = vpack.c.bf16 %v2874, %v2874
        %v2923 = vpack.c.bf16 %v2875, %v2875
        %v2924 = vpack.c.bf16 %v2876, %v2876
        %v2925 = vpack.c.bf16 %v2877, %v2877
        %v2926 = vpack.c.bf16 %v2878, %v2878
        %v2927 = vpack.c.bf16 %v2879, %v2879
        %v2928 = vpack.c.bf16 %v2880, %v2880
        %v2929 = vpack.c.bf16 %v2881, %v2881
        %v2930 = vpack.c.bf16 %v2882, %v2882
        %v2931 = vpack.c.bf16 %v2883, %v2883
        %v2932 = vpack.c.bf16 %v2884, %v2884
        %v2933 = vpack.c.bf16 %v2885, %v2885
        %v2934 = vpack.c.bf16 %v2886, %v2886
        %v2935 = vpack.c.bf16 %v2887, %v2887
        %v2936 = vpack.c.bf16 %v2888, %v2888
        %v2937 = vpack.c.bf16 %v2889, %v2889
        %v2938 = vpack.c.bf16 %v2890, %v2890
        %v2939 = vpack.c.bf16 %v2891, %v2891
        %v2940 = vpack.c.bf16 %v2892, %v2892
        %v2941 = vpack.c.bf16 %v2893, %v2893
        %v2942 = vpack.c.bf16 %v2894, %v2894
        %v2943 = vpack.c.bf16 %v2895, %v2895
        %v2944 = vpack.c.bf16 %v2896, %v2896
        %v2945 = vpack.c.bf16 %v2897, %v2897
        %v2946 = vpack.c.bf16 %v2898, %v2898
        %v2947 = vpack.c.bf16 %v2899, %v2899
        %v2948 = vpack.c.bf16 %v2900, %v2900
        %v2949 = vpack.c.bf16 %v2901, %v2901
        %v2950 = vpack.c.bf16 %v2902, %v2902
        %v2951 = vpack.c.bf16 %v2903, %v2903
        %v2952 = vpack.c.bf16 %v2904, %v2904
        %v2953 = vpack.c.bf16 %v2905, %v2905
        %v2954 = vpack.c.bf16 %v2906, %v2906
        %v2955 = vpack.c.bf16 %v2907, %v2907
        %v2956 = vpack.c.bf16 %v2908, %v2908
        %v2957 = vpack.c.bf16 %v2909, %v2909
        %v2958 = vpack.c.bf16 %v2910, %v2910
        %v2959 = vpack.c.bf16 %v2911, %v2911
        %vm2960 = vsmask.f32 256
        %vm2961 = vsmask.f32 4368
        %vm2962 = vmor %vm2960, %vm2961
        %v2964 = vshrl.u32 %v2912, 16
        %v2966 = vrot.slane %v2964, 7
        %v2967 = vrot.slane %v2966, 4
        %v2969 = vshrl.u32 %v2913, 16
        %v2971 = vrot.slane %v2969, 7
        %v2972 = vshll.u32 %v2913, 16
        %v2974 = vor.u32 %v2971, %v2972
        %v2975 = vsel %vm2962, %v2967, %v2974
        %v2976 = vrot.slane %v2971, 4
        %v2978 = vshrl.u32 %v2914, 16
        %v2980 = vrot.slane %v2978, 7
        %v2981 = vshll.u32 %v2914, 16
        %v2983 = vor.u32 %v2980, %v2981
        %v2984 = vsel %vm2962, %v2976, %v2983
        %v2986 = vshrl.u32 %v2915, 16
        %v2988 = vrot.slane %v2986, 7
        %v2989 = vrot.slane %v2988, 4
        %v2991 = vshrl.u32 %v2916, 16
        %v2993 = vrot.slane %v2991, 7
        %v2994 = vshll.u32 %v2916, 16
        %v2996 = vor.u32 %v2993, %v2994
        %v2997 = vsel %vm2962, %v2989, %v2996
        %v2998 = vrot.slane %v2993, 4
        %v3000 = vshrl.u32 %v2917, 16
        %v3002 = vrot.slane %v3000, 7
        %v3003 = vshll.u32 %v2917, 16
        %v3005 = vor.u32 %v3002, %v3003
        %v3006 = vsel %vm2962, %v2998, %v3005
        %v3008 = vshrl.u32 %v2918, 16
        %v3010 = vrot.slane %v3008, 7
        %v3011 = vrot.slane %v3010, 4
        %v3013 = vshrl.u32 %v2919, 16
        %v3015 = vrot.slane %v3013, 7
        %v3016 = vshll.u32 %v2919, 16
        %v3018 = vor.u32 %v3015, %v3016
        %v3019 = vsel %vm2962, %v3011, %v3018
        %v3020 = vrot.slane %v3015, 4
        %v3022 = vshrl.u32 %v2920, 16
        %v3024 = vrot.slane %v3022, 7
        %v3025 = vshll.u32 %v2920, 16
        %v3027 = vor.u32 %v3024, %v3025
        %v3028 = vsel %vm2962, %v3020, %v3027
        %v3030 = vshrl.u32 %v2921, 16
        %v3032 = vrot.slane %v3030, 7
        %v3033 = vrot.slane %v3032, 4
        %v3035 = vshrl.u32 %v2922, 16
        %v3037 = vrot.slane %v3035, 7
        %v3038 = vshll.u32 %v2922, 16
        %v3040 = vor.u32 %v3037, %v3038
        %v3041 = vsel %vm2962, %v3033, %v3040
        %v3042 = vrot.slane %v3037, 4
        %v3044 = vshrl.u32 %v2923, 16
        %v3046 = vrot.slane %v3044, 7
        %v3047 = vshll.u32 %v2923, 16
        %v3049 = vor.u32 %v3046, %v3047
        %v3050 = vsel %vm2962, %v3042, %v3049
        %v3052 = vshrl.u32 %v2924, 16
        %v3054 = vrot.slane %v3052, 7
        %v3055 = vrot.slane %v3054, 4
        %v3057 = vshrl.u32 %v2925, 16
        %v3059 = vrot.slane %v3057, 7
        %v3060 = vshll.u32 %v2925, 16
        %v3062 = vor.u32 %v3059, %v3060
        %v3063 = vsel %vm2962, %v3055, %v3062
        %v3064 = vrot.slane %v3059, 4
        %v3066 = vshrl.u32 %v2926, 16
        %v3068 = vrot.slane %v3066, 7
        %v3069 = vshll.u32 %v2926, 16
        %v3071 = vor.u32 %v3068, %v3069
        %v3072 = vsel %vm2962, %v3064, %v3071
        %v3074 = vshrl.u32 %v2927, 16
        %v3076 = vrot.slane %v3074, 7
        %v3077 = vrot.slane %v3076, 4
        %v3079 = vshrl.u32 %v2928, 16
        %v3081 = vrot.slane %v3079, 7
        %v3082 = vshll.u32 %v2928, 16
        %v3084 = vor.u32 %v3081, %v3082
        %v3085 = vsel %vm2962, %v3077, %v3084
        %v3086 = vrot.slane %v3081, 4
        %v3088 = vshrl.u32 %v2929, 16
        %v3090 = vrot.slane %v3088, 7
        %v3091 = vshll.u32 %v2929, 16
        %v3093 = vor.u32 %v3090, %v3091
        %v3094 = vsel %vm2962, %v3086, %v3093
        %v3096 = vshrl.u32 %v2930, 16
        %v3098 = vrot.slane %v3096, 7
        %v3099 = vrot.slane %v3098, 4
        %v3101 = vshrl.u32 %v2931, 16
        %v3103 = vrot.slane %v3101, 7
        %v3104 = vshll.u32 %v2931, 16
        %v3106 = vor.u32 %v3103, %v3104
        %v3107 = vsel %vm2962, %v3099, %v3106
        %v3108 = vrot.slane %v3103, 4
        %v3110 = vshrl.u32 %v2932, 16
        %v3112 = vrot.slane %v3110, 7
        %v3113 = vshll.u32 %v2932, 16
        %v3115 = vor.u32 %v3112, %v3113
        %v3116 = vsel %vm2962, %v3108, %v3115
        %v3118 = vshrl.u32 %v2933, 16
        %v3120 = vrot.slane %v3118, 7
        %v3121 = vrot.slane %v3120, 4
        %v3123 = vshrl.u32 %v2934, 16
        %v3125 = vrot.slane %v3123, 7
        %v3126 = vshll.u32 %v2934, 16
        %v3128 = vor.u32 %v3125, %v3126
        %v3129 = vsel %vm2962, %v3121, %v3128
        %v3130 = vrot.slane %v3125, 4
        %v3132 = vshrl.u32 %v2935, 16
        %v3134 = vrot.slane %v3132, 7
        %v3135 = vshll.u32 %v2935, 16
        %v3137 = vor.u32 %v3134, %v3135
        %v3138 = vsel %vm2962, %v3130, %v3137
        %v3140 = vshrl.u32 %v2936, 16
        %v3142 = vrot.slane %v3140, 7
        %v3143 = vrot.slane %v3142, 4
        %v3145 = vshrl.u32 %v2937, 16
        %v3147 = vrot.slane %v3145, 7
        %v3148 = vshll.u32 %v2937, 16
        %v3150 = vor.u32 %v3147, %v3148
        %v3151 = vsel %vm2962, %v3143, %v3150
        %v3152 = vrot.slane %v3147, 4
        %v3154 = vshrl.u32 %v2938, 16
        %v3156 = vrot.slane %v3154, 7
        %v3157 = vshll.u32 %v2938, 16
        %v3159 = vor.u32 %v3156, %v3157
        %v3160 = vsel %vm2962, %v3152, %v3159
        %v3162 = vshrl.u32 %v2939, 16
        %v3164 = vrot.slane %v3162, 7
        %v3165 = vrot.slane %v3164, 4
        %v3167 = vshrl.u32 %v2940, 16
        %v3169 = vrot.slane %v3167, 7
        %v3170 = vshll.u32 %v2940, 16
        %v3172 = vor.u32 %v3169, %v3170
        %v3173 = vsel %vm2962, %v3165, %v3172
        %v3174 = vrot.slane %v3169, 4
        %v3176 = vshrl.u32 %v2941, 16
        %v3178 = vrot.slane %v3176, 7
        %v3179 = vshll.u32 %v2941, 16
        %v3181 = vor.u32 %v3178, %v3179
        %v3182 = vsel %vm2962, %v3174, %v3181
        %v3184 = vshrl.u32 %v2942, 16
        %v3186 = vrot.slane %v3184, 7
        %v3187 = vrot.slane %v3186, 4
        %v3189 = vshrl.u32 %v2943, 16
        %v3191 = vrot.slane %v3189, 7
        %v3192 = vshll.u32 %v2943, 16
        %v3194 = vor.u32 %v3191, %v3192
        %v3195 = vsel %vm2962, %v3187, %v3194
        %v3196 = vrot.slane %v3191, 4
        %v3198 = vshrl.u32 %v2944, 16
        %v3200 = vrot.slane %v3198, 7
        %v3201 = vshll.u32 %v2944, 16
        %v3203 = vor.u32 %v3200, %v3201
        %v3204 = vsel %vm2962, %v3196, %v3203
        %v3206 = vshrl.u32 %v2945, 16
        %v3208 = vrot.slane %v3206, 7
        %v3209 = vrot.slane %v3208, 4
        %v3211 = vshrl.u32 %v2946, 16
        %v3213 = vrot.slane %v3211, 7
        %v3214 = vshll.u32 %v2946, 16
        %v3216 = vor.u32 %v3213, %v3214
        %v3217 = vsel %vm2962, %v3209, %v3216
        %v3218 = vrot.slane %v3213, 4
        %v3220 = vshrl.u32 %v2947, 16
        %v3222 = vrot.slane %v3220, 7
        %v3223 = vshll.u32 %v2947, 16
        %v3225 = vor.u32 %v3222, %v3223
        %v3226 = vsel %vm2962, %v3218, %v3225
        %v3228 = vshrl.u32 %v2948, 16
        %v3230 = vrot.slane %v3228, 7
        %v3231 = vrot.slane %v3230, 4
        %v3233 = vshrl.u32 %v2949, 16
        %v3235 = vrot.slane %v3233, 7
        %v3236 = vshll.u32 %v2949, 16
        %v3238 = vor.u32 %v3235, %v3236
        %v3239 = vsel %vm2962, %v3231, %v3238
        %v3240 = vrot.slane %v3235, 4
        %v3242 = vshrl.u32 %v2950, 16
        %v3244 = vrot.slane %v3242, 7
        %v3245 = vshll.u32 %v2950, 16
        %v3247 = vor.u32 %v3244, %v3245
        %v3248 = vsel %vm2962, %v3240, %v3247
        %v3250 = vshrl.u32 %v2951, 16
        %v3252 = vrot.slane %v3250, 7
        %v3253 = vrot.slane %v3252, 4
        %v3255 = vshrl.u32 %v2952, 16
        %v3257 = vrot.slane %v3255, 7
        %v3258 = vshll.u32 %v2952, 16
        %v3260 = vor.u32 %v3257, %v3258
        %v3261 = vsel %vm2962, %v3253, %v3260
        %v3262 = vrot.slane %v3257, 4
        %v3264 = vshrl.u32 %v2953, 16
        %v3266 = vrot.slane %v3264, 7
        %v3267 = vshll.u32 %v2953, 16
        %v3269 = vor.u32 %v3266, %v3267
        %v3270 = vsel %vm2962, %v3262, %v3269
        %v3272 = vshrl.u32 %v2954, 16
        %v3274 = vrot.slane %v3272, 7
        %v3275 = vrot.slane %v3274, 4
        %v3277 = vshrl.u32 %v2955, 16
        %v3279 = vrot.slane %v3277, 7
        %v3280 = vshll.u32 %v2955, 16
        %v3282 = vor.u32 %v3279, %v3280
        %v3283 = vsel %vm2962, %v3275, %v3282
        %v3284 = vrot.slane %v3279, 4
        %v3286 = vshrl.u32 %v2956, 16
        %v3288 = vrot.slane %v3286, 7
        %v3289 = vshll.u32 %v2956, 16
        %v3291 = vor.u32 %v3288, %v3289
        %v3292 = vsel %vm2962, %v3284, %v3291
        %v3294 = vshrl.u32 %v2957, 16
        %v3296 = vrot.slane %v3294, 7
        %v3297 = vrot.slane %v3296, 4
        %v3299 = vshrl.u32 %v2958, 16
        %v3301 = vrot.slane %v3299, 7
        %v3302 = vshll.u32 %v2958, 16
        %v3304 = vor.u32 %v3301, %v3302
        %v3305 = vsel %vm2962, %v3297, %v3304
        %v3306 = vrot.slane %v3301, 4
        %v3308 = vshrl.u32 %v2959, 16
        %v3310 = vrot.slane %v3308, 7
        %v3311 = vshll.u32 %v2959, 16
        %v3313 = vor.u32 %v3310, %v3311
        %v3314 = vsel %vm2962, %v3306, %v3313
        %vm3347 = vcmask 125952
        %3348 = vst.msk [vmem:[%s358] sm:$0xf] %vm3347, %v2975
        %3349 = vst.msk [vmem:[%s358 + $0x4] sm:$0xf] %vm3347, %v2984
        %3350 = vst.msk [vmem:[%s358 + $0x8] sm:$0xf] %vm3347, %v2997
        %3351 = vst.msk [vmem:[%s358 + $0xc] sm:$0xf] %vm3347, %v3006
        %3352 = vst.msk [vmem:[%s358 + $0x10] sm:$0xf] %vm3347, %v3019
        %3353 = vst.msk [vmem:[%s358 + $0x14] sm:$0xf] %vm3347, %v3028
        %3354 = vst.msk [vmem:[%s358 + $0x18] sm:$0xf] %vm3347, %v3041
        %3355 = vst.msk [vmem:[%s358 + $0x1c] sm:$0xf] %vm3347, %v3050
        %3356 = vst.msk [vmem:[%s358 + $0x20] sm:$0xf] %vm3347, %v3063
        %3357 = vst.msk [vmem:[%s358 + $0x24] sm:$0xf] %vm3347, %v3072
        %3358 = vst.msk [vmem:[%s358 + $0x28] sm:$0xf] %vm3347, %v3085
        %3359 = vst.msk [vmem:[%s358 + $0x2c] sm:$0xf] %vm3347, %v3094
        %3360 = vst.msk [vmem:[%s358 + $0x30] sm:$0xf] %vm3347, %v3107
        %3361 = vst.msk [vmem:[%s358 + $0x34] sm:$0xf] %vm3347, %v3116
        %3362 = vst.msk [vmem:[%s358 + $0x38] sm:$0xf] %vm3347, %v3129
        %3363 = vst.msk [vmem:[%s358 + $0x3c] sm:$0xf] %vm3347, %v3138
        %3364 = vst.msk [vmem:[%s358 + $0x40] sm:$0xf] %vm3347, %v3151
        %3365 = vst.msk [vmem:[%s358 + $0x44] sm:$0xf] %vm3347, %v3160
        %3366 = vst.msk [vmem:[%s358 + $0x48] sm:$0xf] %vm3347, %v3173
        %3367 = vst.msk [vmem:[%s358 + $0x4c] sm:$0xf] %vm3347, %v3182
        %3368 = vst.msk [vmem:[%s358 + $0x50] sm:$0xf] %vm3347, %v3195
        %3369 = vst.msk [vmem:[%s358 + $0x54] sm:$0xf] %vm3347, %v3204
        %3370 = vst.msk [vmem:[%s358 + $0x58] sm:$0xf] %vm3347, %v3217
        %3371 = vst.msk [vmem:[%s358 + $0x5c] sm:$0xf] %vm3347, %v3226
        %3372 = vst.msk [vmem:[%s358 + $0x60] sm:$0xf] %vm3347, %v3239
        %3373 = vst.msk [vmem:[%s358 + $0x64] sm:$0xf] %vm3347, %v3248
        %3374 = vst.msk [vmem:[%s358 + $0x68] sm:$0xf] %vm3347, %v3261
        %3375 = vst.msk [vmem:[%s358 + $0x6c] sm:$0xf] %vm3347, %v3270
        %3376 = vst.msk [vmem:[%s358 + $0x70] sm:$0xf] %vm3347, %v3283
        %3377 = vst.msk [vmem:[%s358 + $0x74] sm:$0xf] %vm3347, %v3292
        %3378 = vst.msk [vmem:[%s358 + $0x78] sm:$0xf] %vm3347, %v3305
        %3379 = vst.msk [vmem:[%s358 + $0x7c] sm:$0xf] %vm3347, %v3314
        %vm3380 = vcmask 130055
        %v3381 = vsel %vm3380, %v2864, 0.0
        %v3382 = vsel %vm3380, %v2867, 0.0
        %v3383 = vadd.f32 %v3381, %v3382
        %v3384 = vsel %vm3380, %v2870, 0.0
        %v3385 = vadd.f32 %v3383, %v3384
        %v3386 = vsel %vm3380, %v2873, 0.0
        %v3387 = vadd.f32 %v3385, %v3386
        %v3388 = vsel %vm3380, %v2876, 0.0
        %v3389 = vadd.f32 %v3387, %v3388
        %v3390 = vsel %vm3380, %v2879, 0.0
        %v3391 = vadd.f32 %v3389, %v3390
        %v3392 = vsel %vm3380, %v2882, 0.0
        %v3393 = vadd.f32 %v3391, %v3392
        %v3394 = vsel %vm3380, %v2885, 0.0
        %v3395 = vadd.f32 %v3393, %v3394
        %v3396 = vsel %vm3380, %v2888, 0.0
        %v3397 = vadd.f32 %v3395, %v3396
        %v3398 = vsel %vm3380, %v2891, 0.0
        %v3399 = vadd.f32 %v3397, %v3398
        %v3400 = vsel %vm3380, %v2894, 0.0
        %v3401 = vadd.f32 %v3399, %v3400
        %v3402 = vsel %vm3380, %v2897, 0.0
        %v3403 = vadd.f32 %v3401, %v3402
        %v3404 = vsel %vm3380, %v2900, 0.0
        %v3405 = vadd.f32 %v3403, %v3404
        %v3406 = vsel %vm3380, %v2903, 0.0
        %v3407 = vadd.f32 %v3405, %v3406
        %v3408 = vsel %vm3380, %v2906, 0.0
        %v3409 = vadd.f32 %v3407, %v3408
        %v3410 = vsel %vm3380, %v2909, 0.0
        %v3411 = vadd.f32 %v3409, %v3410
        %v3412 = vsel %vm726, %v2865, 0.0
        %v3413 = vsel %vm726, %v2868, 0.0
        %v3414 = vadd.f32 %v3412, %v3413
        %v3415 = vsel %vm726, %v2871, 0.0
        %v3416 = vadd.f32 %v3414, %v3415
        %v3417 = vsel %vm726, %v2874, 0.0
        %v3418 = vadd.f32 %v3416, %v3417
        %v3419 = vsel %vm726, %v2877, 0.0
        %v3420 = vadd.f32 %v3418, %v3419
        %v3421 = vsel %vm726, %v2880, 0.0
        %v3422 = vadd.f32 %v3420, %v3421
        %v3423 = vsel %vm726, %v2883, 0.0
        %v3424 = vadd.f32 %v3422, %v3423
        %v3425 = vsel %vm726, %v2886, 0.0
        %v3426 = vadd.f32 %v3424, %v3425
        %v3427 = vsel %vm726, %v2889, 0.0
        %v3428 = vadd.f32 %v3426, %v3427
        %v3429 = vsel %vm726, %v2892, 0.0
        %v3430 = vadd.f32 %v3428, %v3429
        %v3431 = vsel %vm726, %v2895, 0.0
        %v3432 = vadd.f32 %v3430, %v3431
        %v3433 = vsel %vm726, %v2898, 0.0
        %v3434 = vadd.f32 %v3432, %v3433
        %v3435 = vsel %vm726, %v2901, 0.0
        %v3436 = vadd.f32 %v3434, %v3435
        %v3437 = vsel %vm726, %v2904, 0.0
        %v3438 = vadd.f32 %v3436, %v3437
        %v3439 = vsel %vm726, %v2907, 0.0
        %v3440 = vadd.f32 %v3438, %v3439
        %v3441 = vsel %vm726, %v2910, 0.0
        %v3442 = vadd.f32 %v3440, %v3441
        %vm3443 = vcmask 129024
        %v3444 = vsel %vm3443, %v2866, 0.0
        %v3445 = vsel %vm3443, %v2869, 0.0
        %v3446 = vadd.f32 %v3444, %v3445
        %v3447 = vsel %vm3443, %v2872, 0.0
        %v3448 = vadd.f32 %v3446, %v3447
        %v3449 = vsel %vm3443, %v2875, 0.0
        %v3450 = vadd.f32 %v3448, %v3449
        %v3451 = vsel %vm3443, %v2878, 0.0
        %v3452 = vadd.f32 %v3450, %v3451
        %v3453 = vsel %vm3443, %v2881, 0.0
        %v3454 = vadd.f32 %v3452, %v3453
        %v3455 = vsel %vm3443, %v2884, 0.0
        %v3456 = vadd.f32 %v3454, %v3455
        %v3457 = vsel %vm3443, %v2887, 0.0
        %v3458 = vadd.f32 %v3456, %v3457
        %v3459 = vsel %vm3443, %v2890, 0.0
        %v3460 = vadd.f32 %v3458, %v3459
        %v3461 = vsel %vm3443, %v2893, 0.0
        %v3462 = vadd.f32 %v3460, %v3461
        %v3463 = vsel %vm3443, %v2896, 0.0
        %v3464 = vadd.f32 %v3462, %v3463
        %v3465 = vsel %vm3443, %v2899, 0.0
        %v3466 = vadd.f32 %v3464, %v3465
        %v3467 = vsel %vm3443, %v2902, 0.0
        %v3468 = vadd.f32 %v3466, %v3467
        %v3469 = vsel %vm3443, %v2905, 0.0
        %v3470 = vadd.f32 %v3468, %v3469
        %v3471 = vsel %vm3443, %v2908, 0.0
        %v3472 = vadd.f32 %v3470, %v3471
        %v3473 = vsel %vm3443, %v2911, 0.0
        %v3474 = vadd.f32 %v3472, %v3473
        %vm3478 = vcmask 1040384
        %v3479 = vrot.slane %v3411, 7
        %v3480 = vrot.slane %v3442, 7
        %v3481 = vsel %vm3478, %v3479, %v3480
        %v3482 = vrot.slane %v3474, 7
        %v3483 = vsel %vm3478, %v3480, %v3482
        %v3486 = vsel %vm726, %v3481, 0.0
        %v3487 = vsel %vm726, %v3483, 0.0
        %v3488 = vadd.f32 %v3486, %v3487
        %v3489 = vrot.slane %v3488, 4
        %v3490 = vadd.f32 %v3488, %v3489
        %v3491 = vrot.slane %v3490, 2
        %v3492 = vadd.f32 %v3490, %v3491
        %v3493 = vrot.slane %v3492, 1
        %v3494 = vadd.f32 %v3492, %v3493
        %v3495 = vmul.f32 %v3494, 0.00390625
        %v3496 = vld [vmem:[%s5] sm:$0xff]
        %v3497 = vld [vmem:[%s5 + $0x8] sm:$0xff]
        %v3498 = vld [vmem:[#allocation3] sm:$0x1]
        %v3500 = vsel %vm726, %v3495, 0
        %3502 = vmatpush.msra.mxu0 0.0
        %3503 = vmatpush.msra.mxu0 0.0
        %3504 = vmatpush.msra.mxu0 0.0
        %3505 = vmatpush.msra.mxu0 0.0
        %3506 = vmatpush.msra.mxu0 0.0
        %3507 = vmatpush.msra.mxu0 0.0
        %3508 = vmatpush.msra.mxu0 0.0
        %3509 = vmatpush.msra.mxu0 0.0
        %3510 = vmatpush.msra.mxu0 0.0
        %3511 = vmatpush.msra.mxu0 0.0
        %3512 = vmatpush.msra.mxu0 0.0
        %3513 = vmatpush.msra.mxu0 0.0
        %3514 = vmatpush.msra.mxu0 0.0
        %3515 = vmatpush.msra.mxu0 0.0
        %3516 = vmatpush.msra.mxu0 %v3497
        %3517 = vmatpush.msra.mxu0 %v3496
        %3518 = vmatmul.f32.gmra.mxu0 %v3500
        %v3519 = vpop.f32.mrf.mxu0
        %v3520 = vadd.f32 %v3498, %v3519
        %3521 = vdwg.mxu0
        %v3522 = vmul.f32 %v3520, 0.5
        %v3523 = vtanh.pop %v3522
        %v3524 = vadd.f32 %v3523, 1.0
        %v3525 = vmul.f32 %v3524, 0.5
        %v3526 = vmul.f32 %v3520, %v3525
        %v3527 = vld [vmem:[%s7] sm:$0x1]
        %v3528 = vld [vmem:[%s8] sm:$0x1]
        %vm3529 = vcmask 7168
        %v3531 = vsel %vm3529, %v3526, 0
        %v3534 = vsel %vm3478, %v3527, 0
        %3536 = vmatpush.msra.mxu0 0.0
        %3537 = vmatpush.msra.mxu0 0.0
        %3538 = vmatpush.msra.mxu0 0.0
        %3539 = vmatpush.msra.mxu0 0.0
        %3540 = vmatpush.msra.mxu0 0.0
        %3541 = vmatpush.msra.mxu0 0.0
        %3542 = vmatpush.msra.mxu0 0.0
        %3543 = vmatpush.msra.mxu0 0.0
        %3544 = vmatpush.msra.mxu0 0.0
        %3545 = vmatpush.msra.mxu0 0.0
        %3546 = vmatpush.msra.mxu0 0.0
        %3547 = vmatpush.msra.mxu0 0.0
        %3548 = vmatpush.msra.mxu0 0.0
        %3549 = vmatpush.msra.mxu0 0.0
        %3550 = vmatpush.msra.mxu0 0.0
        %3551 = vmatpush.msra.mxu0 %v3534
        %3552 = vmatmul.f32.gmra.mxu0 %v3531
        %v3553 = vpop.f32.mrf.mxu0
        %v3554 = vadd.f32 %v3528, %v3553
        %3555 = vdwg.mxu0
        %v3556 = vmul.f32 %v3554, 0.5
        %v3557 = vtanh.pop %v3556
        %v3558 = vadd.f32 %v3557, 1.0
        %v3559 = vmul.f32 %v3558, 0.5
        %3560 = vst.msk [vmem:[%s364] sm:$0x1] %vm730, %v3559
        %s3561 = sand.u32 %s232, 1
        %s3562 = scalar_lea.sflag [#allocation5], %s3561
        %s3563 = sand.u32 %s232, 1
        %s3564 = smul.addr %s3563, 128
        %s3565 = scalar_lea.vmem [#allocation4], %s3564
        %s3566 = sand.u32 %s258, 1
        %s3567 = scalar_lea.sflag [#allocation7], %s3566
        %s3568 = sand.u32 %s258, 1
        %s3569 = scalar_lea.vmem [#allocation6], %s3568
        // Predicated region
        $region57: #{tpu_custom_call.1} parent=55 // pred_check
          %p3570 = pneg %p242
        $region58: #{tpu_custom_call.1} parent=55 // pred_check_branch
          %3572 = sbr.rel (%p3570) target = $region60
        $region59: #{tpu_custom_call.1} parent=55 // pred_region
          %3574 = vsyncadd %s3562, 0
          %s3575 = smul.addr %s30, 32
          %s3576 = smul.addr %s3575, 4
          %s3577 = scalar_lea.hbm %s9, %s3576
          %s3578 = sshll.u32 %s3565, 4
          %s3579 = int_to_ptr.vmem [resolvable:$true] %s3578
          %s3580 = sshll.u32 %s3577, 4
          %s3581 = int_to_ptr.hbm [resolvable:$true] %s3580
          %3586 = dma.vmem_to_hbm [thread:$0]  %s3579, 2048, %s3581, %s3562, 64, 64, 4
        $region60: #{tpu_custom_call.1} parent=55 // pred_fallthru
          _
        // Predicated region
        $region61: #{tpu_custom_call.1} parent=55 // pred_check
          %p3587 = pneg %p268
        $region62: #{tpu_custom_call.1} parent=55 // pred_check_branch
          %3589 = sbr.rel (%p3587) target = $region64
        $region63: #{tpu_custom_call.1} parent=55 // pred_region
          %3591 = vsyncadd %s3567, 0
          %s3592 = scalar_lea.hbm %s10, %s30
          %s3594 = sshll.u32 %s3569, 4
          %s3595 = int_to_ptr.vmem [resolvable:$true] %s3594
          %s3596 = sshll.u32 %s3592, 4
          %s3597 = int_to_ptr.hbm [resolvable:$true] %s3596
          %3599 = dma.vmem_to_hbm [thread:$0]  %s3595, 16, %s3597, %s3567
        $region64: #{tpu_custom_call.1} parent=55 // pred_fallthru
          _
      $region56: #{tpu_custom_call.1} parent=5 // pred_fallthru
        _
      %p3600 = scmp.le.s32.totalorder 2, %s25
      // Predicated region
      $region65: #{tpu_custom_call.1} parent=5 // pred_check
        %p3601 = pneg %p3600
      $region66: #{tpu_custom_call.1} parent=5 // pred_check_branch
        %3603 = sbr.rel (%p3601) target = $region68
      $region67: #{tpu_custom_call.1} parent=5 // pred_region
        %s3604 = ssub.s32 %s25, 2
        // Predicated region
        $region69: #{tpu_custom_call.1} parent=67 // pred_check
          %p3605 = pneg %p248
        $region70: #{tpu_custom_call.1} parent=67 // pred_check_branch
          %3607 = sbr.rel (%p3605) target = $region72
        $region71: #{tpu_custom_call.1} parent=67 // pred_region
          %s3608 = sand.u32 %s233, 1
          %s3609 = scalar_lea.sflag [#allocation5], %s3608
          %s3610 = sand.u32 %s233, 1
          %s3611 = smul.addr %s3610, 128
          %s3612 = scalar_lea.vmem [#allocation4], %s3611
          %3614 = dma.done %s3609, 2048
        $region72: #{tpu_custom_call.1} parent=67 // pred_fallthru
          _
        // Predicated region
        $region73: #{tpu_custom_call.1} parent=67 // pred_check
          %p3615 = pneg %p274
        $region74: #{tpu_custom_call.1} parent=67 // pred_check_branch
          %3617 = sbr.rel (%p3615) target = $region76
        $region75: #{tpu_custom_call.1} parent=67 // pred_region
          %s3618 = sand.u32 %s259, 1
          %s3619 = scalar_lea.sflag [#allocation7], %s3618
          %s3620 = sand.u32 %s259, 1
          %s3621 = scalar_lea.vmem [#allocation6], %s3620
          %3623 = dma.done %s3619, 16
        $region76: #{tpu_custom_call.1} parent=67 // pred_fallthru
          _
      $region68: #{tpu_custom_call.1} parent=5 // pred_fallthru
        _
    $region6: #{tpu_custom_call.1} parent=1 // loop_footer
      %s29 = sadd.s32 1, %s25
    $region7: #{tpu_custom_call.1} parent=1 // loop_footer_branch
      %24 = sbr.rel target = $region3
    $region8: #{tpu_custom_call.1} parent=1 // loop_exit
      _
    %3624 = vsyncpa [#allocation5], 1
    %s3625 = scalar_lea.sflag [#allocation5], 1
    %3626 = vsyncpa %s3625, 1
    %3627 = vsyncpa [#allocation7], 1
    %s3628 = scalar_lea.sflag [#allocation7], 1
    %3629 = vsyncpa %s3628, 1

</llo_original>
